<compile_context>
chip_gen: v7x
topology: tpu7x:2x2x1
jax: 0.10.0
libtpu: 0.0.40
codegen_flags: <defaults>
</compile_context>

<pallas_src>
import jax
import jax.numpy as jnp
from jax.experimental import pallas as pl
from jax.experimental.pallas import tpu as pltpu

LANE = 128                       # lane-dense padded width for every matmul output
VMEM_LIMIT = 32 * 1024 * 1024    # safe on v5e/v6e (128 MiB phys) and v7x (64 MiB phys)


def _round_up(x, m):
    return (x + m - 1) // m * m


def _cdiv(a, b):
    return -(-a // b)


def _choose_row_tile(m, max_tile=512, min_tiles=2):
    """Return (Mpad, TM): TM multiple of 8, Mpad = TM * ntiles, ntiles >= min_tiles.

    min_tiles=2 guarantees the 'parallel' M axis has work for both v7x
    TensorCores even at tiny batch sizes (harmless ~0.35us extra step on
    single-TC v5e/v6e).
    """
    ntiles = max(min_tiles, _cdiv(m, max_tile))
    tm = _round_up(_cdiv(m, ntiles), 8)
    return tm * ntiles, tm


# --------------- fused conv(5x5, valid) + bias + maxpool(2x2) kernel ---------

def _conv_pool_kernel(p_ref, w_ref, b_ref, o_ref):
    # p_ref: (4, TM, Kp) -- the 4 pool taps for this M tile.
    # max over taps commutes with the tap-independent bias add.
    w = w_ref[...]
    acc = jnp.dot(p_ref[0], w, preferred_element_type=jnp.float32)
    for t in range(1, 4):
        acc = jnp.maximum(
            acc, jnp.dot(p_ref[t], w, preferred_element_type=jnp.float32))
    o_ref[...] = (acc + b_ref[...]).astype(o_ref.dtype)


def conv5x5_pool2x2(x_nhwc, w_packed, b_row, cin, kh=5, kw=5):
    """Fused valid conv (stride 1) + bias + 2x2/2 maxpool.

    x_nhwc:   (N, H, W, >=cin) bf16 (channels beyond `cin` ignored)
    w_packed: (Kp, 128) bf16, rows ordered (i, j, ci), zero-padded
    b_row:    (1, 128) f32, zero-padded
    returns   (N, Hp, Wp, 128) bf16 (channels >= Cout are exactly zero)
    """
    N, H, W, _ = x_nhwc.shape
    x = x_nhwc[..., :cin]
    Ho, Wo = H - kh + 1, W - kw + 1
    Hp, Wp = Ho // 2, Wo // 2
    K = kh * kw * cin
    Kp = w_packed.shape[0]
    Mp = N * Hp * Wp
    Mpad, TM = _choose_row_tile(Mp)

    # Pool-tap-grouped im2col (XLA glue feeding the fused kernel), built in a
    # single concatenate per tap directly at the padded K width.
    # patches[t, m, k]: tap t of the 2x2 pool window, m = (n, hp, wp) flat,
    # k = (i, j, ci) flat (matches the packed weight row order).
    zpad = jnp.zeros((Mp, Kp - K), x.dtype) if Kp > K else None
    taps = []
    for di in range(2):
        for dj in range(2):
            cols = []
            for i in range(kh):
                for j in range(kw):
                    cols.append(
                        x[:, di + i: di + i + 2 * Hp: 2,
                          dj + j: dj + j + 2 * Wp: 2, :].reshape(Mp, cin))
            if zpad is not None:
                cols.append(zpad)
            taps.append(jnp.concatenate(cols, axis=1))       # (Mp, Kp)
    patches = jnp.stack(taps, axis=0)                        # (4, Mp, Kp)
    if Mpad != Mp:
        patches = jnp.pad(patches, ((0, 0), (0, Mpad - Mp), (0, 0)))

    cost = pl.CostEstimate(
        flops=2 * 4 * Mpad * Kp * LANE,
        transcendentals=0,
        bytes_accessed=(4 * Mpad * Kp + Kp * LANE + Mpad * LANE) * 2 + LANE * 4,
    )

    out = pl.pallas_call(
        _conv_pool_kernel,
        out_shape=jax.ShapeDtypeStruct((Mpad, LANE), jnp.bfloat16),
        grid_spec=pltpu.PrefetchScalarGridSpec(
            num_scalar_prefetch=0,
            grid=(Mpad // TM,),
            in_specs=[
                pl.BlockSpec((4, TM, Kp), lambda m: (0, m, 0)),
                pl.BlockSpec((Kp, LANE), lambda m: (0, 0)),
                pl.BlockSpec((1, LANE), lambda m: (0, 0)),
            ],
            out_specs=pl.BlockSpec((TM, LANE), lambda m: (m, 0)),
        ),
        compiler_params=pltpu.CompilerParams(
            dimension_semantics=("parallel",),
            vmem_limit_bytes=VMEM_LIMIT),
        cost_estimate=cost,
    )(patches, w_packed, b_row)

    return out[:Mp].reshape(N, Hp, Wp, LANE)


# --------------------------- fused 3-layer FC kernel -------------------------

def _fc3_kernel(x_ref, w1_ref, b1_ref, w2_ref, b2_ref, w3_ref, b3_ref, o_ref):
    h1 = jnp.dot(x_ref[...], w1_ref[...],
                 preferred_element_type=jnp.float32) + b1_ref[...]
    h2 = jnp.dot(h1.astype(jnp.bfloat16), w2_ref[...],
                 preferred_element_type=jnp.float32) + b2_ref[...]
    o_ref[...] = jnp.dot(h2.astype(jnp.bfloat16), w3_ref[...],
                         preferred_element_type=jnp.float32) + b3_ref[...]


def fc3(x, w1, b1, w2, b2, w3, b3):
    """x:(N,K1) bf16 -> (N,128) f32 logits (cols >= 10 are zero)."""
    N, K1 = x.shape
    Npad, TM = _choose_row_tile(N)
    if Npad != N:
        x = jnp.pad(x, ((0, Npad - N), (0, 0)))

    cost = pl.CostEstimate(
        flops=2 * Npad * (K1 * LANE + 2 * LANE * LANE),
        transcendentals=0,
        bytes_accessed=(Npad * K1 + K1 * LANE + 2 * LANE * LANE) * 2
                       + (3 * LANE + Npad * LANE) * 4,
    )

    out = pl.pallas_call(
        _fc3_kernel,
        out_shape=jax.ShapeDtypeStruct((Npad, LANE), jnp.float32),
        grid_spec=pltpu.PrefetchScalarGridSpec(
            num_scalar_prefetch=0,
            grid=(Npad // TM,),
            in_specs=[
                pl.BlockSpec((TM, K1), lambda i: (i, 0)),
                pl.BlockSpec((K1, LANE), lambda i: (0, 0)),
                pl.BlockSpec((1, LANE), lambda i: (0, 0)),
                pl.BlockSpec((LANE, LANE), lambda i: (0, 0)),
                pl.BlockSpec((1, LANE), lambda i: (0, 0)),
                pl.BlockSpec((LANE, LANE), lambda i: (0, 0)),
                pl.BlockSpec((1, LANE), lambda i: (0, 0)),
            ],
            out_specs=pl.BlockSpec((TM, LANE), lambda i: (i, 0)),
        ),
        compiler_params=pltpu.CompilerParams(
            dimension_semantics=("parallel",),
            vmem_limit_bytes=VMEM_LIMIT),
        cost_estimate=cost,
    )(x, w1, b1, w2, b2, w3, b3)
    return out[:N]


# ------------------------------- Parameters ----------------------------------

def init_params(key):
    """Raw parameters in PyTorch layout (same semantics as the nn.Module)."""
    ks = jax.random.split(key, 10)
    s = 0.05
    return {
        "c1_w": s * jax.random.normal(ks[0], (16, 3, 5, 5), jnp.float32),
        "c1_b": s * jax.random.normal(ks[1], (16,), jnp.float32),
        "c2_w": s * jax.random.normal(ks[2], (32, 16, 5, 5), jnp.float32),
        "c2_b": s * jax.random.normal(ks[3], (32,), jnp.float32),
        "l1_w": s * jax.random.normal(ks[4], (120, 800), jnp.float32),
        "l1_b": s * jax.random.normal(ks[5], (120,), jnp.float32),
        "l2_w": s * jax.random.normal(ks[6], (84, 120), jnp.float32),
        "l2_b": s * jax.random.normal(ks[7], (84,), jnp.float32),
        "l3_w": s * jax.random.normal(ks[8], (10, 84), jnp.float32),
        "l3_b": s * jax.random.normal(ks[9], (10,), jnp.float32),
    }


def _pack_conv(w_oihw, b):
    """(Cout,Cin,kh,kw) -> (Kp,128) bf16 matmul weight + (1,128) f32 bias."""
    cout, cin, kh, kw = w_oihw.shape
    k = kh * kw * cin
    kp = _round_up(k, LANE)
    w = jnp.transpose(w_oihw, (2, 3, 1, 0)).reshape(k, cout)   # rows = (i,j,ci)
    w = jnp.pad(w, ((0, kp - k), (0, LANE - cout))).astype(jnp.bfloat16)
    b = jnp.pad(b, (0, LANE - cout)).reshape(1, LANE).astype(jnp.float32)
    return w, b


def _pack_fc(w_oi, b, kpad):
    """PyTorch (out,in) Linear weight -> (kpad,128) bf16 + (1,128) f32 bias."""
    nout, nin = w_oi.shape
    w = jnp.pad(w_oi.T, ((0, kpad - nin), (0, LANE - nout))).astype(jnp.bfloat16)
    b = jnp.pad(b, (0, LANE - nout)).reshape(1, LANE).astype(jnp.float32)
    return w, b


def pack_params(p):
    """One-time weight packing: transpose / pad / permute off the hot path."""
    c1_w, c1_b = _pack_conv(p["c1_w"], p["c1_b"])
    c2_w, c2_b = _pack_conv(p["c2_w"], p["c2_b"])

    # FC1: fold nn.Flatten's NCHW (c,h,w) row order into the weight so the FC
    # can consume the conv pipeline's channel-padded NHWC activations directly
    # (no activation transpose / channel slice in the forward pass).
    cout2, hp, wp = 32, 5, 5
    w1 = p["l1_w"].T.reshape(cout2, hp, wp, 120)        # rows indexed (c,h,w)
    w1 = jnp.transpose(w1, (1, 2, 0, 3))                # -> (h,w,c,out)
    w1 = jnp.pad(w1, ((0, 0), (0, 0), (0, LANE - cout2), (0, 0)))
    w1 = w1.reshape(hp * wp * LANE, 120)                # (3200, 120)
    w1 = jnp.pad(w1, ((0, 0), (0, LANE - 120))).astype(jnp.bfloat16)
    b1 = jnp.pad(p["l1_b"], (0, LANE - 120)).reshape(1, LANE).astype(jnp.float32)

    w2, b2 = _pack_fc(p["l2_w"], p["l2_b"], LANE)
    w3, b3 = _pack_fc(p["l3_w"], p["l3_b"], LANE)

    return {"c1_w": c1_w, "c1_b": c1_b, "c2_w": c2_w, "c2_b": c2_b,
            "l1_w": w1, "l1_b": b1, "l2_w": w2, "l2_b": b2,
            "l3_w": w3, "l3_b": b3}


# ------------------------------- Forward pass --------------------------------

@jax.jit
def lenet_forward(packed, x_nchw):
    # NCHW (PyTorch) -> NHWC bf16 once at the boundary.
    x = jnp.transpose(x_nchw, (0, 2, 3, 1)).astype(jnp.bfloat16)   # (N,32,32,3)

    x = conv5x5_pool2x2(x, packed["c1_w"], packed["c1_b"], cin=3)   # (N,14,14,128)
    x = conv5x5_pool2x2(x, packed["c2_w"], packed["c2_b"], cin=16)  # (N, 5, 5,128)

    n = x.shape[0]
    x = x.reshape(n, -1)                                            # (N, 3200) bf16
    logits = fc3(x, packed["l1_w"], packed["l1_b"],
                 packed["l2_w"], packed["l2_b"],
                 packed["l3_w"], packed["l3_b"])                    # (N, 128) f32
    return logits[:, :10]


# ---------------------------------- Main --------------------------------------

if __name__ == "__main__":
    key = jax.random.PRNGKey(0)
    k_params, k_x = jax.random.split(key)

    raw_params = init_params(k_params)
    packed = pack_params(raw_params)

    # LeNet forward requires 32x32 spatial input (32->28->14->10->5), batch=2.
    x = jax.random.normal(k_x, (2, 3, 32, 32), jnp.float32)

    out = lenet_forward(packed, x)
    out = jax.block_until_ready(out)
    assert out.shape == (2, 10), out.shape
    assert bool(jnp.all(jnp.isfinite(out)))
    print("KERNEL_OK")
</pallas_src>

<mosaic_0001>
module attributes {stable_mosaic.version = 11 : i64} {
  func.func @_conv_pool_kernel(%arg0: i32, %arg1: memref<4x200x128xbf16, #tpu.memory_space<vmem>>, %arg2: memref<128x128xbf16, #tpu.memory_space<vmem>>, %arg3: memref<1x128xf32, #tpu.memory_space<vmem>>, %arg4: memref<200x128xbf16, #tpu.memory_space<vmem>>) attributes {dimension_semantics = [#tpu.dimension_semantics<parallel>], iteration_bounds = array<i64: 2>, scalar_prefetch = 0 : i64, scratch_operands = 0 : i64, tpu.core_type = #tpu.core_type<tc>, window_params = [{transform_indices = @transform_0, window_bounds = array<i64: 4, 200, 128>}, {pipeline_mode = #tpu.pipeline_mode<synchronous>, transform_indices = @transform_1, window_bounds = array<i64: 128, 128>}, {pipeline_mode = #tpu.pipeline_mode<synchronous>, transform_indices = @transform_2, window_bounds = array<i64: 1, 128>}, {transform_indices = @transform_3, window_bounds = array<i64: 200, 128>}]} {
    %c0 = arith.constant 0 : index
    %c0_0 = arith.constant 0 : index
    %0 = vector.load %arg2[%c0, %c0_0] : memref<128x128xbf16, #tpu.memory_space<vmem>>, vector<128x128xbf16>
    %c0_1 = arith.constant 0 : index
    %c0_2 = arith.constant 0 : index
    %c0_3 = arith.constant 0 : index
    %1 = vector.load %arg1[%c0_1, %c0_2, %c0_3] : memref<4x200x128xbf16, #tpu.memory_space<vmem>>, vector<1x200x128xbf16>
    %2 = vector.shape_cast %1 : vector<1x200x128xbf16> to vector<200x128xbf16>
    %cst = arith.constant dense<0.000000e+00> : vector<200x128xf32>
    %3 = tpu.matmul %2, %0, %cst {dimension_numbers = #tpu.dot_dimension_numbers<[1], [0], [0], [1], [0, 0, 1, 1], [], []>} : vector<200x128xbf16>, vector<128x128xbf16>, vector<200x128xf32> -> vector<200x128xf32>
    %c1 = arith.constant 1 : index
    %c0_4 = arith.constant 0 : index
    %c0_5 = arith.constant 0 : index
    %4 = vector.load %arg1[%c1, %c0_4, %c0_5] : memref<4x200x128xbf16, #tpu.memory_space<vmem>>, vector<1x200x128xbf16>
    %5 = vector.shape_cast %4 : vector<1x200x128xbf16> to vector<200x128xbf16>
    %cst_6 = arith.constant dense<0.000000e+00> : vector<200x128xf32>
    %6 = tpu.matmul %5, %0, %cst_6 {dimension_numbers = #tpu.dot_dimension_numbers<[1], [0], [0], [1], [0, 0, 1, 1], [], []>} : vector<200x128xbf16>, vector<128x128xbf16>, vector<200x128xf32> -> vector<200x128xf32>
    %7 = arith.maximumf %3, %6 : vector<200x128xf32>
    %c2 = arith.constant 2 : index
    %c0_7 = arith.constant 0 : index
    %c0_8 = arith.constant 0 : index
    %8 = vector.load %arg1[%c2, %c0_7, %c0_8] : memref<4x200x128xbf16, #tpu.memory_space<vmem>>, vector<1x200x128xbf16>
    %9 = vector.shape_cast %8 : vector<1x200x128xbf16> to vector<200x128xbf16>
    %cst_9 = arith.constant dense<0.000000e+00> : vector<200x128xf32>
    %10 = tpu.matmul %9, %0, %cst_9 {dimension_numbers = #tpu.dot_dimension_numbers<[1], [0], [0], [1], [0, 0, 1, 1], [], []>} : vector<200x128xbf16>, vector<128x128xbf16>, vector<200x128xf32> -> vector<200x128xf32>
    %11 = arith.maximumf %7, %10 : vector<200x128xf32>
    %c3 = arith.constant 3 : index
    %c0_10 = arith.constant 0 : index
    %c0_11 = arith.constant 0 : index
    %12 = vector.load %arg1[%c3, %c0_10, %c0_11] : memref<4x200x128xbf16, #tpu.memory_space<vmem>>, vector<1x200x128xbf16>
    %13 = vector.shape_cast %12 : vector<1x200x128xbf16> to vector<200x128xbf16>
    %cst_12 = arith.constant dense<0.000000e+00> : vector<200x128xf32>
    %14 = tpu.matmul %13, %0, %cst_12 {dimension_numbers = #tpu.dot_dimension_numbers<[1], [0], [0], [1], [0, 0, 1, 1], [], []>} : vector<200x128xbf16>, vector<128x128xbf16>, vector<200x128xf32> -> vector<200x128xf32>
    %15 = arith.maximumf %11, %14 : vector<200x128xf32>
    %c0_13 = arith.constant 0 : index
    %c0_14 = arith.constant 0 : index
    %16 = vector.load %arg3[%c0_13, %c0_14] : memref<1x128xf32, #tpu.memory_space<vmem>>, vector<1x128xf32>
    %17 = vector.broadcast %16 : vector<1x128xf32> to vector<200x128xf32>
    %18 = arith.addf %15, %17 : vector<200x128xf32>
    %19 = arith.truncf %18 : vector<200x128xf32> to vector<200x128xbf16>
    %c0_15 = arith.constant 0 : index
    %c0_16 = arith.constant 0 : index
    %20 = vector.load %arg4[%c0_15, %c0_16] : memref<200x128xbf16, #tpu.memory_space<vmem>>, vector<200x128xbf16>
    tpu.vector_store %arg4[%c0_15, %c0_16], %19 {strides = array<i32>} : memref<200x128xbf16, #tpu.memory_space<vmem>>, vector<200x128xbf16>,
    return
  }
  func.func @transform_0(%arg0: i32) -> (i32, i32, i32) {
    %c0_i32 = arith.constant 0 : i32
    %c0_i32_0 = arith.constant 0 : i32
    %c0_i32_1 = arith.constant 0 : i32
    return %c0_i32, %arg0, %c0_i32_0 : i32, i32, i32
  }
  func.func @transform_1(%arg0: i32) -> (i32, i32) {
    %c0_i32 = arith.constant 0 : i32
    %c0_i32_0 = arith.constant 0 : i32
    %c0_i32_1 = arith.constant 0 : i32
    return %c0_i32, %c0_i32_0 : i32, i32
  }
  func.func @transform_2(%arg0: i32) -> (i32, i32) {
    %c0_i32 = arith.constant 0 : i32
    %c0_i32_0 = arith.constant 0 : i32
    %c0_i32_1 = arith.constant 0 : i32
    return %c0_i32, %c0_i32_0 : i32, i32
  }
  func.func @transform_3(%arg0: i32) -> (i32, i32) {
    %c0_i32 = arith.constant 0 : i32
    %c0_i32_0 = arith.constant 0 : i32
    return %arg0, %c0_i32 : i32, i32
  }
}

module attributes {stable_mosaic.version = 11 : i64} {
  func.func @_conv_pool_kernel(%arg0: i32, %arg1: memref<4x32x512xbf16, #tpu.memory_space<vmem>>, %arg2: memref<512x128xbf16, #tpu.memory_space<vmem>>, %arg3: memref<1x128xf32, #tpu.memory_space<vmem>>, %arg4: memref<32x128xbf16, #tpu.memory_space<vmem>>) attributes {dimension_semantics = [#tpu.dimension_semantics<parallel>], iteration_bounds = array<i64: 2>, scalar_prefetch = 0 : i64, scratch_operands = 0 : i64, tpu.core_type = #tpu.core_type<tc>, window_params = [{transform_indices = @transform_0, window_bounds = array<i64: 4, 32, 512>}, {pipeline_mode = #tpu.pipeline_mode<synchronous>, transform_indices = @transform_1, window_bounds = array<i64: 512, 128>}, {pipeline_mode = #tpu.pipeline_mode<synchronous>, transform_indices = @transform_2, window_bounds = array<i64: 1, 128>}, {transform_indices = @transform_3, window_bounds = array<i64: 32, 128>}]} {
    %c0 = arith.constant 0 : index
    %c0_0 = arith.constant 0 : index
    %0 = vector.load %arg2[%c0, %c0_0] : memref<512x128xbf16, #tpu.memory_space<vmem>>, vector<512x128xbf16>
    %c0_1 = arith.constant 0 : index
    %c0_2 = arith.constant 0 : index
    %c0_3 = arith.constant 0 : index
    %1 = vector.load %arg1[%c0_1, %c0_2, %c0_3] : memref<4x32x512xbf16, #tpu.memory_space<vmem>>, vector<1x32x512xbf16>
    %2 = vector.shape_cast %1 : vector<1x32x512xbf16> to vector<32x512xbf16>
    %cst = arith.constant dense<0.000000e+00> : vector<32x128xf32>
    %3 = tpu.matmul %2, %0, %cst {dimension_numbers = #tpu.dot_dimension_numbers<[1], [0], [0], [1], [0, 0, 1, 1], [], []>} : vector<32x512xbf16>, vector<512x128xbf16>, vector<32x128xf32> -> vector<32x128xf32>
    %c1 = arith.constant 1 : index
    %c0_4 = arith.constant 0 : index
    %c0_5 = arith.constant 0 : index
    %4 = vector.load %arg1[%c1, %c0_4, %c0_5] : memref<4x32x512xbf16, #tpu.memory_space<vmem>>, vector<1x32x512xbf16>
    %5 = vector.shape_cast %4 : vector<1x32x512xbf16> to vector<32x512xbf16>
    %cst_6 = arith.constant dense<0.000000e+00> : vector<32x128xf32>
    %6 = tpu.matmul %5, %0, %cst_6 {dimension_numbers = #tpu.dot_dimension_numbers<[1], [0], [0], [1], [0, 0, 1, 1], [], []>} : vector<32x512xbf16>, vector<512x128xbf16>, vector<32x128xf32> -> vector<32x128xf32>
    %7 = arith.maximumf %3, %6 : vector<32x128xf32>
    %c2 = arith.constant 2 : index
    %c0_7 = arith.constant 0 : index
    %c0_8 = arith.constant 0 : index
    %8 = vector.load %arg1[%c2, %c0_7, %c0_8] : memref<4x32x512xbf16, #tpu.memory_space<vmem>>, vector<1x32x512xbf16>
    %9 = vector.shape_cast %8 : vector<1x32x512xbf16> to vector<32x512xbf16>
    %cst_9 = arith.constant dense<0.000000e+00> : vector<32x128xf32>
    %10 = tpu.matmul %9, %0, %cst_9 {dimension_numbers = #tpu.dot_dimension_numbers<[1], [0], [0], [1], [0, 0, 1, 1], [], []>} : vector<32x512xbf16>, vector<512x128xbf16>, vector<32x128xf32> -> vector<32x128xf32>
    %11 = arith.maximumf %7, %10 : vector<32x128xf32>
    %c3 = arith.constant 3 : index
    %c0_10 = arith.constant 0 : index
    %c0_11 = arith.constant 0 : index
    %12 = vector.load %arg1[%c3, %c0_10, %c0_11] : memref<4x32x512xbf16, #tpu.memory_space<vmem>>, vector<1x32x512xbf16>
    %13 = vector.shape_cast %12 : vector<1x32x512xbf16> to vector<32x512xbf16>
    %cst_12 = arith.constant dense<0.000000e+00> : vector<32x128xf32>
    %14 = tpu.matmul %13, %0, %cst_12 {dimension_numbers = #tpu.dot_dimension_numbers<[1], [0], [0], [1], [0, 0, 1, 1], [], []>} : vector<32x512xbf16>, vector<512x128xbf16>, vector<32x128xf32> -> vector<32x128xf32>
    %15 = arith.maximumf %11, %14 : vector<32x128xf32>
    %c0_13 = arith.constant 0 : index
    %c0_14 = arith.constant 0 : index
    %16 = vector.load %arg3[%c0_13, %c0_14] : memref<1x128xf32, #tpu.memory_space<vmem>>, vector<1x128xf32>
    %17 = vector.broadcast %16 : vector<1x128xf32> to vector<32x128xf32>
    %18 = arith.addf %15, %17 : vector<32x128xf32>
    %19 = arith.truncf %18 : vector<32x128xf32> to vector<32x128xbf16>
    %c0_15 = arith.constant 0 : index
    %c0_16 = arith.constant 0 : index
    %20 = vector.load %arg4[%c0_15, %c0_16] : memref<32x128xbf16, #tpu.memory_space<vmem>>, vector<32x128xbf16>
    tpu.vector_store %arg4[%c0_15, %c0_16], %19 {strides = array<i32>} : memref<32x128xbf16, #tpu.memory_space<vmem>>, vector<32x128xbf16>,
    return
  }
  func.func @transform_0(%arg0: i32) -> (i32, i32, i32) {
    %c0_i32 = arith.constant 0 : i32
    %c0_i32_0 = arith.constant 0 : i32
    %c0_i32_1 = arith.constant 0 : i32
    return %c0_i32, %arg0, %c0_i32_0 : i32, i32, i32
  }
  func.func @transform_1(%arg0: i32) -> (i32, i32) {
    %c0_i32 = arith.constant 0 : i32
    %c0_i32_0 = arith.constant 0 : i32
    %c0_i32_1 = arith.constant 0 : i32
    return %c0_i32, %c0_i32_0 : i32, i32
  }
  func.func @transform_2(%arg0: i32) -> (i32, i32) {
    %c0_i32 = arith.constant 0 : i32
    %c0_i32_0 = arith.constant 0 : i32
    %c0_i32_1 = arith.constant 0 : i32
    return %c0_i32, %c0_i32_0 : i32, i32
  }
  func.func @transform_3(%arg0: i32) -> (i32, i32) {
    %c0_i32 = arith.constant 0 : i32
    %c0_i32_0 = arith.constant 0 : i32
    return %arg0, %c0_i32 : i32, i32
  }
}

module attributes {stable_mosaic.version = 11 : i64} {
  func.func @_fc3_kernel(%arg0: i32, %arg1: memref<8x3200xbf16, #tpu.memory_space<vmem>>, %arg2: memref<3200x128xbf16, #tpu.memory_space<vmem>>, %arg3: memref<1x128xf32, #tpu.memory_space<vmem>>, %arg4: memref<128x128xbf16, #tpu.memory_space<vmem>>, %arg5: memref<1x128xf32, #tpu.memory_space<vmem>>, %arg6: memref<128x128xbf16, #tpu.memory_space<vmem>>, %arg7: memref<1x128xf32, #tpu.memory_space<vmem>>, %arg8: memref<8x128xf32, #tpu.memory_space<vmem>>) attributes {dimension_semantics = [#tpu.dimension_semantics<parallel>], iteration_bounds = array<i64: 2>, scalar_prefetch = 0 : i64, scratch_operands = 0 : i64, tpu.core_type = #tpu.core_type<tc>, window_params = [{transform_indices = @transform_0, window_bounds = array<i64: 8, 3200>}, {pipeline_mode = #tpu.pipeline_mode<synchronous>, transform_indices = @transform_1, window_bounds = array<i64: 3200, 128>}, {pipeline_mode = #tpu.pipeline_mode<synchronous>, transform_indices = @transform_2, window_bounds = array<i64: 1, 128>}, {pipeline_mode = #tpu.pipeline_mode<synchronous>, transform_indices = @transform_3, window_bounds = array<i64: 128, 128>}, {pipeline_mode = #tpu.pipeline_mode<synchronous>, transform_indices = @transform_4, window_bounds = array<i64: 1, 128>}, {pipeline_mode = #tpu.pipeline_mode<synchronous>, transform_indices = @transform_5, window_bounds = array<i64: 128, 128>}, {pipeline_mode = #tpu.pipeline_mode<synchronous>, transform_indices = @transform_6, window_bounds = array<i64: 1, 128>}, {transform_indices = @transform_7, window_bounds = array<i64: 8, 128>}]} {
    %c0 = arith.constant 0 : index
    %c0_0 = arith.constant 0 : index
    %0 = vector.load %arg1[%c0, %c0_0] : memref<8x3200xbf16, #tpu.memory_space<vmem>>, vector<8x3200xbf16>
    %c0_1 = arith.constant 0 : index
    %c0_2 = arith.constant 0 : index
    %1 = vector.load %arg2[%c0_1, %c0_2] : memref<3200x128xbf16, #tpu.memory_space<vmem>>, vector<3200x128xbf16>
    %cst = arith.constant dense<0.000000e+00> : vector<8x128xf32>
    %2 = tpu.matmul %0, %1, %cst {dimension_numbers = #tpu.dot_dimension_numbers<[1], [0], [0], [1], [0, 0, 1, 1], [], []>} : vector<8x3200xbf16>, vector<3200x128xbf16>, vector<8x128xf32> -> vector<8x128xf32>
    %c0_3 = arith.constant 0 : index
    %c0_4 = arith.constant 0 : index
    %3 = vector.load %arg3[%c0_3, %c0_4] : memref<1x128xf32, #tpu.memory_space<vmem>>, vector<1x128xf32>
    %4 = vector.broadcast %3 : vector<1x128xf32> to vector<8x128xf32>
    %5 = arith.addf %2, %4 : vector<8x128xf32>
    %6 = arith.truncf %5 : vector<8x128xf32> to vector<8x128xbf16>
    %c0_5 = arith.constant 0 : index
    %c0_6 = arith.constant 0 : index
    %7 = vector.load %arg4[%c0_5, %c0_6] : memref<128x128xbf16, #tpu.memory_space<vmem>>, vector<128x128xbf16>
    %cst_7 = arith.constant dense<0.000000e+00> : vector<8x128xf32>
    %8 = tpu.matmul %6, %7, %cst_7 {dimension_numbers = #tpu.dot_dimension_numbers<[1], [0], [0], [1], [0, 0, 1, 1], [], []>} : vector<8x128xbf16>, vector<128x128xbf16>, vector<8x128xf32> -> vector<8x128xf32>
    %c0_8 = arith.constant 0 : index
    %c0_9 = arith.constant 0 : index
    %9 = vector.load %arg5[%c0_8, %c0_9] : memref<1x128xf32, #tpu.memory_space<vmem>>, vector<1x128xf32>
    %10 = vector.broadcast %9 : vector<1x128xf32> to vector<8x128xf32>
    %11 = arith.addf %8, %10 : vector<8x128xf32>
    %12 = arith.truncf %11 : vector<8x128xf32> to vector<8x128xbf16>
    %c0_10 = arith.constant 0 : index
    %c0_11 = arith.constant 0 : index
    %13 = vector.load %arg6[%c0_10, %c0_11] : memref<128x128xbf16, #tpu.memory_space<vmem>>, vector<128x128xbf16>
    %cst_12 = arith.constant dense<0.000000e+00> : vector<8x128xf32>
    %14 = tpu.matmul %12, %13, %cst_12 {dimension_numbers = #tpu.dot_dimension_numbers<[1], [0], [0], [1], [0, 0, 1, 1], [], []>} : vector<8x128xbf16>, vector<128x128xbf16>, vector<8x128xf32> -> vector<8x128xf32>
    %c0_13 = arith.constant 0 : index
    %c0_14 = arith.constant 0 : index
    %15 = vector.load %arg7[%c0_13, %c0_14] : memref<1x128xf32, #tpu.memory_space<vmem>>, vector<1x128xf32>
    %16 = vector.broadcast %15 : vector<1x128xf32> to vector<8x128xf32>
    %17 = arith.addf %14, %16 : vector<8x128xf32>
    %c0_15 = arith.constant 0 : index
    %c0_16 = arith.constant 0 : index
    %18 = vector.load %arg8[%c0_15, %c0_16] : memref<8x128xf32, #tpu.memory_space<vmem>>, vector<8x128xf32>
    tpu.vector_store %arg8[%c0_15, %c0_16], %17 {strides = array<i32>} : memref<8x128xf32, #tpu.memory_space<vmem>>, vector<8x128xf32>,
    return
  }
  func.func @transform_0(%arg0: i32) -> (i32, i32) {
    %c0_i32 = arith.constant 0 : i32
    %c0_i32_0 = arith.constant 0 : i32
    return %arg0, %c0_i32 : i32, i32
  }
  func.func @transform_1(%arg0: i32) -> (i32, i32) {
    %c0_i32 = arith.constant 0 : i32
    %c0_i32_0 = arith.constant 0 : i32
    %c0_i32_1 = arith.constant 0 : i32
    return %c0_i32, %c0_i32_0 : i32, i32
  }
  func.func @transform_2(%arg0: i32) -> (i32, i32) {
    %c0_i32 = arith.constant 0 : i32
    %c0_i32_0 = arith.constant 0 : i32
    %c0_i32_1 = arith.constant 0 : i32
    return %c0_i32, %c0_i32_0 : i32, i32
  }
  func.func @transform_3(%arg0: i32) -> (i32, i32) {
    %c0_i32 = arith.constant 0 : i32
    %c0_i32_0 = arith.constant 0 : i32
    %c0_i32_1 = arith.constant 0 : i32
    return %c0_i32, %c0_i32_0 : i32, i32
  }
  func.func @transform_4(%arg0: i32) -> (i32, i32) {
    %c0_i32 = arith.constant 0 : i32
    %c0_i32_0 = arith.constant 0 : i32
    %c0_i32_1 = arith.constant 0 : i32
    return %c0_i32, %c0_i32_0 : i32, i32
  }
  func.func @transform_5(%arg0: i32) -> (i32, i32) {
    %c0_i32 = arith.constant 0 : i32
    %c0_i32_0 = arith.constant 0 : i32
    %c0_i32_1 = arith.constant 0 : i32
    return %c0_i32, %c0_i32_0 : i32, i32
  }
  func.func @transform_6(%arg0: i32) -> (i32, i32) {
    %c0_i32 = arith.constant 0 : i32
    %c0_i32_0 = arith.constant 0 : i32
    %c0_i32_1 = arith.constant 0 : i32
    return %c0_i32, %c0_i32_0 : i32, i32
  }
  func.func @transform_7(%arg0: i32) -> (i32, i32) {
    %c0_i32 = arith.constant 0 : i32
    %c0_i32_0 = arith.constant 0 : i32
    return %arg0, %c0_i32 : i32, i32
  }
}

</mosaic_0001>

<llo_original>
// kernel: lenet_forward.3
$region0: #{lenet_forward.3}
  #allocation0 [shape = 'u32[]', space=smem, size = 0x4, offset = 0x4, fixed_abs, tag = 'smem constant byte address 0x4 - core index']
  #allocation1 [shape = 'u32[144,128]{1,0:T(1,128)}', space=vmem, size = 0x12000, scoped, tag = 'internal scratch']
  %s0 = inlined_call_operand.vmem [shape: bf16[4,400,128], index: 0, kind: input, shape index: {}]
  %s1 = inlined_call_operand.vmem [shape: bf16[128,128], index: 1, kind: input, shape index: {}]
  %s2 = inlined_call_operand.vmem [shape: f32[1,128], index: 2, kind: input, shape index: {}]
  %s3 = inlined_call_operand.vmem [shape: bf16[400,128], index: 3, kind: output, shape index: {}]
  %s4 = sld [smem:[#allocation0]]
  $region86: #{lenet_forward.3} parent=0
    _
  %s6 = ssub.s32 1, %s4
  %s7 = scalar_select 0, %s6, %s4
  $region1: #{lenet_forward.3} parent=0
    #allocation2 [shape = 'u8[409600]{0}', space=vmem, size = 0x64000, scoped, tag = 'input window, operand 0']
    loop: start=0, step=1, limit=4
    $region2: #{lenet_forward.3} parent=1 // loop_pre_header
      _
    $region3: #{lenet_forward.3} parent=1 // loop_header
      %s9 = sphi 0, %s13
      %p10 = scmp.ge.s32.totalorder %s9, 4
      %s19 = sphi 0, %s21
      %s22 = sphi 0, %s19
      %s23 = sphi 0, %s22
      %s39 = sphi 0, %s23
      %s43 = sphi 0, %s43
      %s45 = sphi 0, %s43
      %s46 = sphi 0, %s45
      %s60 = sphi 0, %s46
      %s64 = sphi 0, %s64
      %s66 = sphi 0, %s64
      %s67 = sphi 0, %s66
      %s81 = sphi 0, %s67
      %s87 = sphi 0, %s89
      %s90 = sphi 0, %s87
      %s91 = sphi 0, %s90
      %s107 = sphi 0, %s91
    $region4: #{lenet_forward.3} parent=1 // loop_header_branch
      %12 = sbr.rel (%p10) target = $region8
    $region5: #{lenet_forward.3} parent=1 // loop_body
      %s14 = ssub.s32 %s9, 1
      %s15 = ssub.s32 %s9, 2
      %s16 = sadd.s32 %s9, 1
      %s17 = ssub.s32 %s9, %s16
      %p18 = scmp.eq.s32.totalorder %s17, 0
      %s20 = sadd.s32 %s19, 1
      %s21 = scalar_select %p18, %s19, %s20
      %p24 = pneg %p18
      %p25 = scmp.eq.s32.totalorder %s9, 1
      %p26 = por %p24, %p25
      %p27 = scmp.ne.s32.totalorder %s19, %s22
      %p28 = scmp.eq.s32.totalorder %s9, 0
      %p29 = por %p27, %p28
      %p30 = scmp.ne.s32.totalorder %s19, %s22
      %p31 = scmp.eq.s32.totalorder %s14, 1
      %p32 = por %p30, %p31
      %p33 = scmp.ne.s32.totalorder %s22, %s23
      %p34 = scmp.eq.s32.totalorder %s14, 0
      %p35 = por %p33, %p34
      %p36 = scmp.ne.s32.totalorder %s22, %s23
      %p37 = scmp.eq.s32.totalorder %s15, 1
      %p38 = por %p36, %p37
      %p40 = scmp.ne.s32.totalorder %s23, %s39
      %p41 = scmp.eq.s32.totalorder %s15, 0
      %p42 = por %p40, %p41
      %s44 = sadd.s32 %s43, 1
      %p47 = scmp.eq.s32.totalorder %s9, 1
      %p48 = scmp.ne.s32.totalorder %s43, %s45
      %p49 = scmp.eq.s32.totalorder %s9, 0
      %p50 = por %p48, %p49
      %p51 = scmp.ne.s32.totalorder %s43, %s45
      %p52 = scmp.eq.s32.totalorder %s14, 1
      %p53 = por %p51, %p52
      %p54 = scmp.ne.s32.totalorder %s45, %s46
      %p55 = scmp.eq.s32.totalorder %s14, 0
      %p56 = por %p54, %p55
      %p57 = scmp.ne.s32.totalorder %s45, %s46
      %p58 = scmp.eq.s32.totalorder %s15, 1
      %p59 = por %p57, %p58
      %p61 = scmp.ne.s32.totalorder %s46, %s60
      %p62 = scmp.eq.s32.totalorder %s15, 0
      %p63 = por %p61, %p62
      %s65 = sadd.s32 %s64, 1
      %p68 = scmp.eq.s32.totalorder %s9, 1
      %p69 = scmp.ne.s32.totalorder %s64, %s66
      %p70 = scmp.eq.s32.totalorder %s9, 0
      %p71 = por %p69, %p70
      %p72 = scmp.ne.s32.totalorder %s64, %s66
      %p73 = scmp.eq.s32.totalorder %s14, 1
      %p74 = por %p72, %p73
      %p75 = scmp.ne.s32.totalorder %s66, %s67
      %p76 = scmp.eq.s32.totalorder %s14, 0
      %p77 = por %p75, %p76
      %p78 = scmp.ne.s32.totalorder %s66, %s67
      %p79 = scmp.eq.s32.totalorder %s15, 1
      %p80 = por %p78, %p79
      %p82 = scmp.ne.s32.totalorder %s67, %s81
      %p83 = scmp.eq.s32.totalorder %s15, 0
      %p84 = por %p82, %p83
      %s85 = ssub.s32 %s9, %s16
      %p86 = scmp.eq.s32.totalorder %s85, 0
      %s88 = sadd.s32 %s87, 1
      %s89 = scalar_select %p86, %s87, %s88
      %p92 = pneg %p86
      %p93 = scmp.eq.s32.totalorder %s9, 1
      %p94 = por %p92, %p93
      %p95 = scmp.ne.s32.totalorder %s87, %s90
      %p96 = scmp.eq.s32.totalorder %s9, 0
      %p97 = por %p95, %p96
      %p98 = scmp.ne.s32.totalorder %s87, %s90
      %p99 = scmp.eq.s32.totalorder %s14, 1
      %p100 = por %p98, %p99
      %p101 = scmp.ne.s32.totalorder %s90, %s91
      %p102 = scmp.eq.s32.totalorder %s14, 0
      %p103 = por %p101, %p102
      %p104 = scmp.ne.s32.totalorder %s90, %s91
      %p105 = scmp.eq.s32.totalorder %s15, 1
      %p106 = por %p104, %p105
      %p108 = scmp.ne.s32.totalorder %s91, %s107
      %p109 = scmp.eq.s32.totalorder %s15, 0
      %p110 = por %p108, %p109
      %p111 = scmp.le.s32.totalorder 1, %s9
      %p112 = scmp.lt.s32.totalorder %s9, 3
      %p113 = pnand %p111, %p112
      %p114 = pneg %p113
      // Predicated region
      $region9: #{lenet_forward.3} parent=5 // pred_check
        _
      $region10: #{lenet_forward.3} parent=5 // pred_check_branch
        %116 = sbr.rel (%p113) target = $region12
      $region11: #{lenet_forward.3} parent=5 // pred_region
        %s117 = ssub.s32 %s9, 1
        // Predicated region
        $region13: #{lenet_forward.3} parent=11 // pred_check
          %p118 = pneg %p56
        $region14: #{lenet_forward.3} parent=11 // pred_check_branch
          %120 = sbr.rel (%p118) target = $region16
        $region15: #{lenet_forward.3} parent=11 // pred_region
          _
        $region16: #{lenet_forward.3} parent=11 // pred_fallthru
          _
        // Predicated region
        $region17: #{lenet_forward.3} parent=11 // pred_check
          %p121 = pneg %p77
        $region18: #{lenet_forward.3} parent=11 // pred_check_branch
          %123 = sbr.rel (%p121) target = $region20
        $region19: #{lenet_forward.3} parent=11 // pred_region
          _
        $region20: #{lenet_forward.3} parent=11 // pred_fallthru
          _
      $region12: #{lenet_forward.3} parent=5 // pred_fallthru
        _
      %p124 = scmp.lt.s32.totalorder %s9, 2
      // Predicated region
      $region21: #{lenet_forward.3} parent=5 // pred_check
        %p125 = pneg %p124
      $region22: #{lenet_forward.3} parent=5 // pred_check_branch
        %127 = sbr.rel (%p125) target = $region24
      $region23: #{lenet_forward.3} parent=5 // pred_region
        // Predicated region
        $region25: #{lenet_forward.3} parent=23 // pred_check
          %p128 = pneg %p29
        $region26: #{lenet_forward.3} parent=23 // pred_check_branch
          %130 = sbr.rel (%p128) target = $region28
        $region27: #{lenet_forward.3} parent=23 // pred_region
          %s131 = sand.u32 %s19, 1
          %s132 = sand.u32 %s19, 1
          %s133 = smul.addr %s132, 400
          %s134 = scalar_lea.vmem [#allocation2], %s133
          %s135 = smul.u32 25, %s9
          %s136 = smul.addr %s135, 4
          %s137 = scalar_lea.vmem %s0, %s136
          // Predicated region
          $region29: #{lenet_forward.3} parent=27 // pred_check
            _
          $region30: #{lenet_forward.3} parent=27 // pred_check_branch
            %139 = sbr.rel (0) target = $region32
          $region31: #{lenet_forward.3} parent=27 // pred_region
            // Predicated region
            $region33: #{lenet_forward.3} parent=31 // pred_check
              _
            $region34: #{lenet_forward.3} parent=31 // pred_check_branch
              %141 = sbr.rel target = $region36
            $region35: #{lenet_forward.3} parent=31 // pred_region
              // Predicated region
              $region48: #{lenet_forward.3} parent=35 // pred_check
                _
              $region49: #{lenet_forward.3} parent=35 // pred_check_branch
                %354 = sbr.rel (0) target = $region51
              $region50: #{lenet_forward.3} parent=35 // pred_region
                loop: start=0, step=1, limit=1
                $region52: #{lenet_forward.3} parent=50 // loop_pre_header
                  _
                $region53: #{lenet_forward.3} parent=50 // loop_header
                  %s356 = sphi 0, %s360
                  %p357 = scmp.ge.s32.totalorder %s356, 1
                  %s361 = sphi %s137, %s137
                  %s362 = sphi %s134, %s134
                $region54: #{lenet_forward.3} parent=50 // loop_header_branch
                  %359 = sbr.rel (%p357) target = $region58
                $region55: #{lenet_forward.3} parent=50 // loop_body
                  _
                $region56: #{lenet_forward.3} parent=50 // loop_footer
                  %s360 = sadd.s32 1, %s356
                $region57: #{lenet_forward.3} parent=50 // loop_footer_branch
                  %355 = sbr.rel target = $region53
                $region58: #{lenet_forward.3} parent=50 // loop_exit
                  _
                loop: start=0, step=1, limit=1
                $region59: #{lenet_forward.3} parent=50 // loop_pre_header
                  _
                $region60: #{lenet_forward.3} parent=50 // loop_header
                  %s365 = sphi 0, %s369
                  %p366 = scmp.ge.s32.totalorder %s365, 1
                  %s370 = sphi %s137, %s137
                  %s371 = sphi %s134, %s134
                $region61: #{lenet_forward.3} parent=50 // loop_header_branch
                  %368 = sbr.rel (%p366) target = $region65
                $region62: #{lenet_forward.3} parent=50 // loop_body
                  %v372 = vld [vmem:[%s370] sm:$0xf]
                  %373 = vst [vmem:[%s371] sm:$0xf] %v372
                  %v374 = vld [vmem:[%s370 + $0x4] sm:$0xf]
                  %375 = vst [vmem:[%s371 + $0x4] sm:$0xf] %v374
                  %v376 = vld [vmem:[%s370 + $0x8] sm:$0xf]
                  %377 = vst [vmem:[%s371 + $0x8] sm:$0xf] %v376
                  %v378 = vld [vmem:[%s370 + $0xc] sm:$0xf]
                  %379 = vst [vmem:[%s371 + $0xc] sm:$0xf] %v378
                  %v380 = vld [vmem:[%s370 + $0x10] sm:$0xf]
                  %381 = vst [vmem:[%s371 + $0x10] sm:$0xf] %v380
                  %v382 = vld [vmem:[%s370 + $0x14] sm:$0xf]
                  %383 = vst [vmem:[%s371 + $0x14] sm:$0xf] %v382
                  %v384 = vld [vmem:[%s370 + $0x18] sm:$0xf]
                  %385 = vst [vmem:[%s371 + $0x18] sm:$0xf] %v384
                  %v386 = vld [vmem:[%s370 + $0x1c] sm:$0xf]
                  %387 = vst [vmem:[%s371 + $0x1c] sm:$0xf] %v386
                  %v388 = vld [vmem:[%s370 + $0x20] sm:$0xf]
                  %389 = vst [vmem:[%s371 + $0x20] sm:$0xf] %v388
                  %v390 = vld [vmem:[%s370 + $0x24] sm:$0xf]
                  %391 = vst [vmem:[%s371 + $0x24] sm:$0xf] %v390
                  %v392 = vld [vmem:[%s370 + $0x28] sm:$0xf]
                  %393 = vst [vmem:[%s371 + $0x28] sm:$0xf] %v392
                  %v394 = vld [vmem:[%s370 + $0x2c] sm:$0xf]
                  %395 = vst [vmem:[%s371 + $0x2c] sm:$0xf] %v394
                  %v396 = vld [vmem:[%s370 + $0x30] sm:$0xf]
                  %397 = vst [vmem:[%s371 + $0x30] sm:$0xf] %v396
                  %v398 = vld [vmem:[%s370 + $0x34] sm:$0xf]
                  %399 = vst [vmem:[%s371 + $0x34] sm:$0xf] %v398
                  %v400 = vld [vmem:[%s370 + $0x38] sm:$0xf]
                  %401 = vst [vmem:[%s371 + $0x38] sm:$0xf] %v400
                  %v402 = vld [vmem:[%s370 + $0x3c] sm:$0xf]
                  %403 = vst [vmem:[%s371 + $0x3c] sm:$0xf] %v402
                  %v404 = vld [vmem:[%s370 + $0x40] sm:$0xf]
                  %405 = vst [vmem:[%s371 + $0x40] sm:$0xf] %v404
                  %v406 = vld [vmem:[%s370 + $0x44] sm:$0xf]
                  %407 = vst [vmem:[%s371 + $0x44] sm:$0xf] %v406
                  %v408 = vld [vmem:[%s370 + $0x48] sm:$0xf]
                  %409 = vst [vmem:[%s371 + $0x48] sm:$0xf] %v408
                  %v410 = vld [vmem:[%s370 + $0x4c] sm:$0xf]
                  %411 = vst [vmem:[%s371 + $0x4c] sm:$0xf] %v410
                  %v412 = vld [vmem:[%s370 + $0x50] sm:$0xf]
                  %413 = vst [vmem:[%s371 + $0x50] sm:$0xf] %v412
                  %v414 = vld [vmem:[%s370 + $0x54] sm:$0xf]
                  %415 = vst [vmem:[%s371 + $0x54] sm:$0xf] %v414
                  %v416 = vld [vmem:[%s370 + $0x58] sm:$0xf]
                  %417 = vst [vmem:[%s371 + $0x58] sm:$0xf] %v416
                  %v418 = vld [vmem:[%s370 + $0x5c] sm:$0xf]
                  %419 = vst [vmem:[%s371 + $0x5c] sm:$0xf] %v418
                  %v420 = vld [vmem:[%s370 + $0x60] sm:$0xf]
                  %421 = vst [vmem:[%s371 + $0x60] sm:$0xf] %v420
                  %v422 = vld [vmem:[%s370 + $0xc8] sm:$0xf]
                  %423 = vst [vmem:[%s371 + $0x64] sm:$0xf] %v422
                  %v424 = vld [vmem:[%s370 + $0xcc] sm:$0xf]
                  %425 = vst [vmem:[%s371 + $0x68] sm:$0xf] %v424
                  %v426 = vld [vmem:[%s370 + $0xd0] sm:$0xf]
                  %427 = vst [vmem:[%s371 + $0x6c] sm:$0xf] %v426
                  %v428 = vld [vmem:[%s370 + $0xd4] sm:$0xf]
                  %429 = vst [vmem:[%s371 + $0x70] sm:$0xf] %v428
                  %v430 = vld [vmem:[%s370 + $0xd8] sm:$0xf]
                  %431 = vst [vmem:[%s371 + $0x74] sm:$0xf] %v430
                  %v432 = vld [vmem:[%s370 + $0xdc] sm:$0xf]
                  %433 = vst [vmem:[%s371 + $0x78] sm:$0xf] %v432
                  %v434 = vld [vmem:[%s370 + $0xe0] sm:$0xf]
                  %435 = vst [vmem:[%s371 + $0x7c] sm:$0xf] %v434
                  %v436 = vld [vmem:[%s370 + $0xe4] sm:$0xf]
                  %437 = vst [vmem:[%s371 + $0x80] sm:$0xf] %v436
                  %v438 = vld [vmem:[%s370 + $0xe8] sm:$0xf]
                  %439 = vst [vmem:[%s371 + $0x84] sm:$0xf] %v438
                  %v440 = vld [vmem:[%s370 + $0xec] sm:$0xf]
                  %441 = vst [vmem:[%s371 + $0x88] sm:$0xf] %v440
                  %v442 = vld [vmem:[%s370 + $0xf0] sm:$0xf]
                  %443 = vst [vmem:[%s371 + $0x8c] sm:$0xf] %v442
                  %v444 = vld [vmem:[%s370 + $0xf4] sm:$0xf]
                  %445 = vst [vmem:[%s371 + $0x90] sm:$0xf] %v444
                  %v446 = vld [vmem:[%s370 + $0xf8] sm:$0xf]
                  %447 = vst [vmem:[%s371 + $0x94] sm:$0xf] %v446
                  %v448 = vld [vmem:[%s370 + $0xfc] sm:$0xf]
                  %449 = vst [vmem:[%s371 + $0x98] sm:$0xf] %v448
                  %v450 = vld [vmem:[%s370 + $0x100] sm:$0xf]
                  %451 = vst [vmem:[%s371 + $0x9c] sm:$0xf] %v450
                  %v452 = vld [vmem:[%s370 + $0x104] sm:$0xf]
                  %453 = vst [vmem:[%s371 + $0xa0] sm:$0xf] %v452
                  %v454 = vld [vmem:[%s370 + $0x108] sm:$0xf]
                  %455 = vst [vmem:[%s371 + $0xa4] sm:$0xf] %v454
                  %v456 = vld [vmem:[%s370 + $0x10c] sm:$0xf]
                  %457 = vst [vmem:[%s371 + $0xa8] sm:$0xf] %v456
                  %v458 = vld [vmem:[%s370 + $0x110] sm:$0xf]
                  %459 = vst [vmem:[%s371 + $0xac] sm:$0xf] %v458
                  %v460 = vld [vmem:[%s370 + $0x114] sm:$0xf]
                  %461 = vst [vmem:[%s371 + $0xb0] sm:$0xf] %v460
                  %v462 = vld [vmem:[%s370 + $0x118] sm:$0xf]
                  %463 = vst [vmem:[%s371 + $0xb4] sm:$0xf] %v462
                  %v464 = vld [vmem:[%s370 + $0x11c] sm:$0xf]
                  %465 = vst [vmem:[%s371 + $0xb8] sm:$0xf] %v464
                  %v466 = vld [vmem:[%s370 + $0x120] sm:$0xf]
                  %467 = vst [vmem:[%s371 + $0xbc] sm:$0xf] %v466
                  %v468 = vld [vmem:[%s370 + $0x124] sm:$0xf]
                  %469 = vst [vmem:[%s371 + $0xc0] sm:$0xf] %v468
                  %v470 = vld [vmem:[%s370 + $0x128] sm:$0xf]
                  %471 = vst [vmem:[%s371 + $0xc4] sm:$0xf] %v470
                  %v472 = vld [vmem:[%s370 + $0x190] sm:$0xf]
                  %473 = vst [vmem:[%s371 + $0xc8] sm:$0xf] %v472
                  %v474 = vld [vmem:[%s370 + $0x194] sm:$0xf]
                  %475 = vst [vmem:[%s371 + $0xcc] sm:$0xf] %v474
                  %v476 = vld [vmem:[%s370 + $0x198] sm:$0xf]
                  %477 = vst [vmem:[%s371 + $0xd0] sm:$0xf] %v476
                  %v478 = vld [vmem:[%s370 + $0x19c] sm:$0xf]
                  %479 = vst [vmem:[%s371 + $0xd4] sm:$0xf] %v478
                  %v480 = vld [vmem:[%s370 + $0x1a0] sm:$0xf]
                  %481 = vst [vmem:[%s371 + $0xd8] sm:$0xf] %v480
                  %v482 = vld [vmem:[%s370 + $0x1a4] sm:$0xf]
                  %483 = vst [vmem:[%s371 + $0xdc] sm:$0xf] %v482
                  %v484 = vld [vmem:[%s370 + $0x1a8] sm:$0xf]
                  %485 = vst [vmem:[%s371 + $0xe0] sm:$0xf] %v484
                  %v486 = vld [vmem:[%s370 + $0x1ac] sm:$0xf]
                  %487 = vst [vmem:[%s371 + $0xe4] sm:$0xf] %v486
                  %v488 = vld [vmem:[%s370 + $0x1b0] sm:$0xf]
                  %489 = vst [vmem:[%s371 + $0xe8] sm:$0xf] %v488
                  %v490 = vld [vmem:[%s370 + $0x1b4] sm:$0xf]
                  %491 = vst [vmem:[%s371 + $0xec] sm:$0xf] %v490
                  %v492 = vld [vmem:[%s370 + $0x1b8] sm:$0xf]
                  %493 = vst [vmem:[%s371 + $0xf0] sm:$0xf] %v492
                  %v494 = vld [vmem:[%s370 + $0x1bc] sm:$0xf]
                  %495 = vst [vmem:[%s371 + $0xf4] sm:$0xf] %v494
                  %v496 = vld [vmem:[%s370 + $0x1c0] sm:$0xf]
                  %497 = vst [vmem:[%s371 + $0xf8] sm:$0xf] %v496
                  %v498 = vld [vmem:[%s370 + $0x1c4] sm:$0xf]
                  %499 = vst [vmem:[%s371 + $0xfc] sm:$0xf] %v498
                  %v500 = vld [vmem:[%s370 + $0x1c8] sm:$0xf]
                  %501 = vst [vmem:[%s371 + $0x100] sm:$0xf] %v500
                  %v502 = vld [vmem:[%s370 + $0x1cc] sm:$0xf]
                  %503 = vst [vmem:[%s371 + $0x104] sm:$0xf] %v502
                  %v504 = vld [vmem:[%s370 + $0x1d0] sm:$0xf]
                  %505 = vst [vmem:[%s371 + $0x108] sm:$0xf] %v504
                  %v506 = vld [vmem:[%s370 + $0x1d4] sm:$0xf]
                  %507 = vst [vmem:[%s371 + $0x10c] sm:$0xf] %v506
                  %v508 = vld [vmem:[%s370 + $0x1d8] sm:$0xf]
                  %509 = vst [vmem:[%s371 + $0x110] sm:$0xf] %v508
                  %v510 = vld [vmem:[%s370 + $0x1dc] sm:$0xf]
                  %511 = vst [vmem:[%s371 + $0x114] sm:$0xf] %v510
                  %v512 = vld [vmem:[%s370 + $0x1e0] sm:$0xf]
                  %513 = vst [vmem:[%s371 + $0x118] sm:$0xf] %v512
                  %v514 = vld [vmem:[%s370 + $0x1e4] sm:$0xf]
                  %515 = vst [vmem:[%s371 + $0x11c] sm:$0xf] %v514
                  %v516 = vld [vmem:[%s370 + $0x1e8] sm:$0xf]
                  %517 = vst [vmem:[%s371 + $0x120] sm:$0xf] %v516
                  %v518 = vld [vmem:[%s370 + $0x1ec] sm:$0xf]
                  %519 = vst [vmem:[%s371 + $0x124] sm:$0xf] %v518
                  %v520 = vld [vmem:[%s370 + $0x1f0] sm:$0xf]
                  %521 = vst [vmem:[%s371 + $0x128] sm:$0xf] %v520
                  %v522 = vld [vmem:[%s370 + $0x258] sm:$0xf]
                  %523 = vst [vmem:[%s371 + $0x12c] sm:$0xf] %v522
                  %v524 = vld [vmem:[%s370 + $0x25c] sm:$0xf]
                  %525 = vst [vmem:[%s371 + $0x130] sm:$0xf] %v524
                  %v526 = vld [vmem:[%s370 + $0x260] sm:$0xf]
                  %527 = vst [vmem:[%s371 + $0x134] sm:$0xf] %v526
                  %v528 = vld [vmem:[%s370 + $0x264] sm:$0xf]
                  %529 = vst [vmem:[%s371 + $0x138] sm:$0xf] %v528
                  %v530 = vld [vmem:[%s370 + $0x268] sm:$0xf]
                  %531 = vst [vmem:[%s371 + $0x13c] sm:$0xf] %v530
                  %v532 = vld [vmem:[%s370 + $0x26c] sm:$0xf]
                  %533 = vst [vmem:[%s371 + $0x140] sm:$0xf] %v532
                  %v534 = vld [vmem:[%s370 + $0x270] sm:$0xf]
                  %535 = vst [vmem:[%s371 + $0x144] sm:$0xf] %v534
                  %v536 = vld [vmem:[%s370 + $0x274] sm:$0xf]
                  %537 = vst [vmem:[%s371 + $0x148] sm:$0xf] %v536
                  %v538 = vld [vmem:[%s370 + $0x278] sm:$0xf]
                  %539 = vst [vmem:[%s371 + $0x14c] sm:$0xf] %v538
                  %v540 = vld [vmem:[%s370 + $0x27c] sm:$0xf]
                  %541 = vst [vmem:[%s371 + $0x150] sm:$0xf] %v540
                  %v542 = vld [vmem:[%s370 + $0x280] sm:$0xf]
                  %543 = vst [vmem:[%s371 + $0x154] sm:$0xf] %v542
                  %v544 = vld [vmem:[%s370 + $0x284] sm:$0xf]
                  %545 = vst [vmem:[%s371 + $0x158] sm:$0xf] %v544
                  %v546 = vld [vmem:[%s370 + $0x288] sm:$0xf]
                  %547 = vst [vmem:[%s371 + $0x15c] sm:$0xf] %v546
                  %v548 = vld [vmem:[%s370 + $0x28c] sm:$0xf]
                  %549 = vst [vmem:[%s371 + $0x160] sm:$0xf] %v548
                  %v550 = vld [vmem:[%s370 + $0x290] sm:$0xf]
                  %551 = vst [vmem:[%s371 + $0x164] sm:$0xf] %v550
                  %v552 = vld [vmem:[%s370 + $0x294] sm:$0xf]
                  %553 = vst [vmem:[%s371 + $0x168] sm:$0xf] %v552
                  %v554 = vld [vmem:[%s370 + $0x298] sm:$0xf]
                  %555 = vst [vmem:[%s371 + $0x16c] sm:$0xf] %v554
                  %v556 = vld [vmem:[%s370 + $0x29c] sm:$0xf]
                  %557 = vst [vmem:[%s371 + $0x170] sm:$0xf] %v556
                  %v558 = vld [vmem:[%s370 + $0x2a0] sm:$0xf]
                  %559 = vst [vmem:[%s371 + $0x174] sm:$0xf] %v558
                  %v560 = vld [vmem:[%s370 + $0x2a4] sm:$0xf]
                  %561 = vst [vmem:[%s371 + $0x178] sm:$0xf] %v560
                  %v562 = vld [vmem:[%s370 + $0x2a8] sm:$0xf]
                  %563 = vst [vmem:[%s371 + $0x17c] sm:$0xf] %v562
                  %v564 = vld [vmem:[%s370 + $0x2ac] sm:$0xf]
                  %565 = vst [vmem:[%s371 + $0x180] sm:$0xf] %v564
                  %v566 = vld [vmem:[%s370 + $0x2b0] sm:$0xf]
                  %567 = vst [vmem:[%s371 + $0x184] sm:$0xf] %v566
                  %v568 = vld [vmem:[%s370 + $0x2b4] sm:$0xf]
                  %569 = vst [vmem:[%s371 + $0x188] sm:$0xf] %v568
                  %v570 = vld [vmem:[%s370 + $0x2b8] sm:$0xf]
                  %571 = vst [vmem:[%s371 + $0x18c] sm:$0xf] %v570
                $region63: #{lenet_forward.3} parent=50 // loop_footer
                  %s369 = sadd.s32 1, %s365
                $region64: #{lenet_forward.3} parent=50 // loop_footer_branch
                  %364 = sbr.rel target = $region60
                $region65: #{lenet_forward.3} parent=50 // loop_exit
                  _
              $region51: #{lenet_forward.3} parent=35 // pred_fallthru
                _
            $region36: #{lenet_forward.3} parent=31 // pred_fallthru
              _
            // Predicated region
            $region37: #{lenet_forward.3} parent=31 // pred_check
              _
            $region38: #{lenet_forward.3} parent=31 // pred_check_branch
              %143 = sbr.rel (0) target = $region40
            $region39: #{lenet_forward.3} parent=31 // pred_region
              loop: start=0, step=1, limit=1
              $region41: #{lenet_forward.3} parent=39 // loop_pre_header
                _
              $region42: #{lenet_forward.3} parent=39 // loop_header
                %s146 = sphi 0, %s150
                %p147 = scmp.ge.s32.totalorder %s146, 1
                %s151 = sphi %s137, %s137
                %s152 = sphi %s134, %s134
              $region43: #{lenet_forward.3} parent=39 // loop_header_branch
                %149 = sbr.rel (%p147) target = $region47
              $region44: #{lenet_forward.3} parent=39 // loop_body
                %v153 = vld [vmem:[%s151] sm:$0xf]
                %154 = vst [vmem:[%s152] sm:$0xf] %v153
                %v155 = vld [vmem:[%s151 + $0x4] sm:$0xf]
                %156 = vst [vmem:[%s152 + $0x4] sm:$0xf] %v155
                %v157 = vld [vmem:[%s151 + $0x8] sm:$0xf]
                %158 = vst [vmem:[%s152 + $0x8] sm:$0xf] %v157
                %v159 = vld [vmem:[%s151 + $0xc] sm:$0xf]
                %160 = vst [vmem:[%s152 + $0xc] sm:$0xf] %v159
                %v161 = vld [vmem:[%s151 + $0x10] sm:$0xf]
                %162 = vst [vmem:[%s152 + $0x10] sm:$0xf] %v161
                %v163 = vld [vmem:[%s151 + $0x14] sm:$0xf]
                %164 = vst [vmem:[%s152 + $0x14] sm:$0xf] %v163
                %v165 = vld [vmem:[%s151 + $0x18] sm:$0xf]
                %166 = vst [vmem:[%s152 + $0x18] sm:$0xf] %v165
                %v167 = vld [vmem:[%s151 + $0x1c] sm:$0xf]
                %168 = vst [vmem:[%s152 + $0x1c] sm:$0xf] %v167
                %v169 = vld [vmem:[%s151 + $0x20] sm:$0xf]
                %170 = vst [vmem:[%s152 + $0x20] sm:$0xf] %v169
                %v171 = vld [vmem:[%s151 + $0x24] sm:$0xf]
                %172 = vst [vmem:[%s152 + $0x24] sm:$0xf] %v171
                %v173 = vld [vmem:[%s151 + $0x28] sm:$0xf]
                %174 = vst [vmem:[%s152 + $0x28] sm:$0xf] %v173
                %v175 = vld [vmem:[%s151 + $0x2c] sm:$0xf]
                %176 = vst [vmem:[%s152 + $0x2c] sm:$0xf] %v175
                %v177 = vld [vmem:[%s151 + $0x30] sm:$0xf]
                %178 = vst [vmem:[%s152 + $0x30] sm:$0xf] %v177
                %v179 = vld [vmem:[%s151 + $0x34] sm:$0xf]
                %180 = vst [vmem:[%s152 + $0x34] sm:$0xf] %v179
                %v181 = vld [vmem:[%s151 + $0x38] sm:$0xf]
                %182 = vst [vmem:[%s152 + $0x38] sm:$0xf] %v181
                %v183 = vld [vmem:[%s151 + $0x3c] sm:$0xf]
                %184 = vst [vmem:[%s152 + $0x3c] sm:$0xf] %v183
                %v185 = vld [vmem:[%s151 + $0x40] sm:$0xf]
                %186 = vst [vmem:[%s152 + $0x40] sm:$0xf] %v185
                %v187 = vld [vmem:[%s151 + $0x44] sm:$0xf]
                %188 = vst [vmem:[%s152 + $0x44] sm:$0xf] %v187
                %v189 = vld [vmem:[%s151 + $0x48] sm:$0xf]
                %190 = vst [vmem:[%s152 + $0x48] sm:$0xf] %v189
                %v191 = vld [vmem:[%s151 + $0x4c] sm:$0xf]
                %192 = vst [vmem:[%s152 + $0x4c] sm:$0xf] %v191
                %v193 = vld [vmem:[%s151 + $0x50] sm:$0xf]
                %194 = vst [vmem:[%s152 + $0x50] sm:$0xf] %v193
                %v195 = vld [vmem:[%s151 + $0x54] sm:$0xf]
                %196 = vst [vmem:[%s152 + $0x54] sm:$0xf] %v195
                %v197 = vld [vmem:[%s151 + $0x58] sm:$0xf]
                %198 = vst [vmem:[%s152 + $0x58] sm:$0xf] %v197
                %v199 = vld [vmem:[%s151 + $0x5c] sm:$0xf]
                %200 = vst [vmem:[%s152 + $0x5c] sm:$0xf] %v199
                %v201 = vld [vmem:[%s151 + $0x60] sm:$0xf]
                %202 = vst [vmem:[%s152 + $0x60] sm:$0xf] %v201
                %v203 = vld [vmem:[%s151 + $0xc8] sm:$0xf]
                %204 = vst [vmem:[%s152 + $0x64] sm:$0xf] %v203
                %v205 = vld [vmem:[%s151 + $0xcc] sm:$0xf]
                %206 = vst [vmem:[%s152 + $0x68] sm:$0xf] %v205
                %v207 = vld [vmem:[%s151 + $0xd0] sm:$0xf]
                %208 = vst [vmem:[%s152 + $0x6c] sm:$0xf] %v207
                %v209 = vld [vmem:[%s151 + $0xd4] sm:$0xf]
                %210 = vst [vmem:[%s152 + $0x70] sm:$0xf] %v209
                %v211 = vld [vmem:[%s151 + $0xd8] sm:$0xf]
                %212 = vst [vmem:[%s152 + $0x74] sm:$0xf] %v211
                %v213 = vld [vmem:[%s151 + $0xdc] sm:$0xf]
                %214 = vst [vmem:[%s152 + $0x78] sm:$0xf] %v213
                %v215 = vld [vmem:[%s151 + $0xe0] sm:$0xf]
                %216 = vst [vmem:[%s152 + $0x7c] sm:$0xf] %v215
                %v217 = vld [vmem:[%s151 + $0xe4] sm:$0xf]
                %218 = vst [vmem:[%s152 + $0x80] sm:$0xf] %v217
                %v219 = vld [vmem:[%s151 + $0xe8] sm:$0xf]
                %220 = vst [vmem:[%s152 + $0x84] sm:$0xf] %v219
                %v221 = vld [vmem:[%s151 + $0xec] sm:$0xf]
                %222 = vst [vmem:[%s152 + $0x88] sm:$0xf] %v221
                %v223 = vld [vmem:[%s151 + $0xf0] sm:$0xf]
                %224 = vst [vmem:[%s152 + $0x8c] sm:$0xf] %v223
                %v225 = vld [vmem:[%s151 + $0xf4] sm:$0xf]
                %226 = vst [vmem:[%s152 + $0x90] sm:$0xf] %v225
                %v227 = vld [vmem:[%s151 + $0xf8] sm:$0xf]
                %228 = vst [vmem:[%s152 + $0x94] sm:$0xf] %v227
                %v229 = vld [vmem:[%s151 + $0xfc] sm:$0xf]
                %230 = vst [vmem:[%s152 + $0x98] sm:$0xf] %v229
                %v231 = vld [vmem:[%s151 + $0x100] sm:$0xf]
                %232 = vst [vmem:[%s152 + $0x9c] sm:$0xf] %v231
                %v233 = vld [vmem:[%s151 + $0x104] sm:$0xf]
                %234 = vst [vmem:[%s152 + $0xa0] sm:$0xf] %v233
                %v235 = vld [vmem:[%s151 + $0x108] sm:$0xf]
                %236 = vst [vmem:[%s152 + $0xa4] sm:$0xf] %v235
                %v237 = vld [vmem:[%s151 + $0x10c] sm:$0xf]
                %238 = vst [vmem:[%s152 + $0xa8] sm:$0xf] %v237
                %v239 = vld [vmem:[%s151 + $0x110] sm:$0xf]
                %240 = vst [vmem:[%s152 + $0xac] sm:$0xf] %v239
                %v241 = vld [vmem:[%s151 + $0x114] sm:$0xf]
                %242 = vst [vmem:[%s152 + $0xb0] sm:$0xf] %v241
                %v243 = vld [vmem:[%s151 + $0x118] sm:$0xf]
                %244 = vst [vmem:[%s152 + $0xb4] sm:$0xf] %v243
                %v245 = vld [vmem:[%s151 + $0x11c] sm:$0xf]
                %246 = vst [vmem:[%s152 + $0xb8] sm:$0xf] %v245
                %v247 = vld [vmem:[%s151 + $0x120] sm:$0xf]
                %248 = vst [vmem:[%s152 + $0xbc] sm:$0xf] %v247
                %v249 = vld [vmem:[%s151 + $0x124] sm:$0xf]
                %250 = vst [vmem:[%s152 + $0xc0] sm:$0xf] %v249
                %v251 = vld [vmem:[%s151 + $0x128] sm:$0xf]
                %252 = vst [vmem:[%s152 + $0xc4] sm:$0xf] %v251
                %v253 = vld [vmem:[%s151 + $0x190] sm:$0xf]
                %254 = vst [vmem:[%s152 + $0xc8] sm:$0xf] %v253
                %v255 = vld [vmem:[%s151 + $0x194] sm:$0xf]
                %256 = vst [vmem:[%s152 + $0xcc] sm:$0xf] %v255
                %v257 = vld [vmem:[%s151 + $0x198] sm:$0xf]
                %258 = vst [vmem:[%s152 + $0xd0] sm:$0xf] %v257
                %v259 = vld [vmem:[%s151 + $0x19c] sm:$0xf]
                %260 = vst [vmem:[%s152 + $0xd4] sm:$0xf] %v259
                %v261 = vld [vmem:[%s151 + $0x1a0] sm:$0xf]
                %262 = vst [vmem:[%s152 + $0xd8] sm:$0xf] %v261
                %v263 = vld [vmem:[%s151 + $0x1a4] sm:$0xf]
                %264 = vst [vmem:[%s152 + $0xdc] sm:$0xf] %v263
                %v265 = vld [vmem:[%s151 + $0x1a8] sm:$0xf]
                %266 = vst [vmem:[%s152 + $0xe0] sm:$0xf] %v265
                %v267 = vld [vmem:[%s151 + $0x1ac] sm:$0xf]
                %268 = vst [vmem:[%s152 + $0xe4] sm:$0xf] %v267
                %v269 = vld [vmem:[%s151 + $0x1b0] sm:$0xf]
                %270 = vst [vmem:[%s152 + $0xe8] sm:$0xf] %v269
                %v271 = vld [vmem:[%s151 + $0x1b4] sm:$0xf]
                %272 = vst [vmem:[%s152 + $0xec] sm:$0xf] %v271
                %v273 = vld [vmem:[%s151 + $0x1b8] sm:$0xf]
                %274 = vst [vmem:[%s152 + $0xf0] sm:$0xf] %v273
                %v275 = vld [vmem:[%s151 + $0x1bc] sm:$0xf]
                %276 = vst [vmem:[%s152 + $0xf4] sm:$0xf] %v275
                %v277 = vld [vmem:[%s151 + $0x1c0] sm:$0xf]
                %278 = vst [vmem:[%s152 + $0xf8] sm:$0xf] %v277
                %v279 = vld [vmem:[%s151 + $0x1c4] sm:$0xf]
                %280 = vst [vmem:[%s152 + $0xfc] sm:$0xf] %v279
                %v281 = vld [vmem:[%s151 + $0x1c8] sm:$0xf]
                %282 = vst [vmem:[%s152 + $0x100] sm:$0xf] %v281
                %v283 = vld [vmem:[%s151 + $0x1cc] sm:$0xf]
                %284 = vst [vmem:[%s152 + $0x104] sm:$0xf] %v283
                %v285 = vld [vmem:[%s151 + $0x1d0] sm:$0xf]
                %286 = vst [vmem:[%s152 + $0x108] sm:$0xf] %v285
                %v287 = vld [vmem:[%s151 + $0x1d4] sm:$0xf]
                %288 = vst [vmem:[%s152 + $0x10c] sm:$0xf] %v287
                %v289 = vld [vmem:[%s151 + $0x1d8] sm:$0xf]
                %290 = vst [vmem:[%s152 + $0x110] sm:$0xf] %v289
                %v291 = vld [vmem:[%s151 + $0x1dc] sm:$0xf]
                %292 = vst [vmem:[%s152 + $0x114] sm:$0xf] %v291
                %v293 = vld [vmem:[%s151 + $0x1e0] sm:$0xf]
                %294 = vst [vmem:[%s152 + $0x118] sm:$0xf] %v293
                %v295 = vld [vmem:[%s151 + $0x1e4] sm:$0xf]
                %296 = vst [vmem:[%s152 + $0x11c] sm:$0xf] %v295
                %v297 = vld [vmem:[%s151 + $0x1e8] sm:$0xf]
                %298 = vst [vmem:[%s152 + $0x120] sm:$0xf] %v297
                %v299 = vld [vmem:[%s151 + $0x1ec] sm:$0xf]
                %300 = vst [vmem:[%s152 + $0x124] sm:$0xf] %v299
                %v301 = vld [vmem:[%s151 + $0x1f0] sm:$0xf]
                %302 = vst [vmem:[%s152 + $0x128] sm:$0xf] %v301
                %v303 = vld [vmem:[%s151 + $0x258] sm:$0xf]
                %304 = vst [vmem:[%s152 + $0x12c] sm:$0xf] %v303
                %v305 = vld [vmem:[%s151 + $0x25c] sm:$0xf]
                %306 = vst [vmem:[%s152 + $0x130] sm:$0xf] %v305
                %v307 = vld [vmem:[%s151 + $0x260] sm:$0xf]
                %308 = vst [vmem:[%s152 + $0x134] sm:$0xf] %v307
                %v309 = vld [vmem:[%s151 + $0x264] sm:$0xf]
                %310 = vst [vmem:[%s152 + $0x138] sm:$0xf] %v309
                %v311 = vld [vmem:[%s151 + $0x268] sm:$0xf]
                %312 = vst [vmem:[%s152 + $0x13c] sm:$0xf] %v311
                %v313 = vld [vmem:[%s151 + $0x26c] sm:$0xf]
                %314 = vst [vmem:[%s152 + $0x140] sm:$0xf] %v313
                %v315 = vld [vmem:[%s151 + $0x270] sm:$0xf]
                %316 = vst [vmem:[%s152 + $0x144] sm:$0xf] %v315
                %v317 = vld [vmem:[%s151 + $0x274] sm:$0xf]
                %318 = vst [vmem:[%s152 + $0x148] sm:$0xf] %v317
                %v319 = vld [vmem:[%s151 + $0x278] sm:$0xf]
                %320 = vst [vmem:[%s152 + $0x14c] sm:$0xf] %v319
                %v321 = vld [vmem:[%s151 + $0x27c] sm:$0xf]
                %322 = vst [vmem:[%s152 + $0x150] sm:$0xf] %v321
                %v323 = vld [vmem:[%s151 + $0x280] sm:$0xf]
                %324 = vst [vmem:[%s152 + $0x154] sm:$0xf] %v323
                %v325 = vld [vmem:[%s151 + $0x284] sm:$0xf]
                %326 = vst [vmem:[%s152 + $0x158] sm:$0xf] %v325
                %v327 = vld [vmem:[%s151 + $0x288] sm:$0xf]
                %328 = vst [vmem:[%s152 + $0x15c] sm:$0xf] %v327
                %v329 = vld [vmem:[%s151 + $0x28c] sm:$0xf]
                %330 = vst [vmem:[%s152 + $0x160] sm:$0xf] %v329
                %v331 = vld [vmem:[%s151 + $0x290] sm:$0xf]
                %332 = vst [vmem:[%s152 + $0x164] sm:$0xf] %v331
                %v333 = vld [vmem:[%s151 + $0x294] sm:$0xf]
                %334 = vst [vmem:[%s152 + $0x168] sm:$0xf] %v333
                %v335 = vld [vmem:[%s151 + $0x298] sm:$0xf]
                %336 = vst [vmem:[%s152 + $0x16c] sm:$0xf] %v335
                %v337 = vld [vmem:[%s151 + $0x29c] sm:$0xf]
                %338 = vst [vmem:[%s152 + $0x170] sm:$0xf] %v337
                %v339 = vld [vmem:[%s151 + $0x2a0] sm:$0xf]
                %340 = vst [vmem:[%s152 + $0x174] sm:$0xf] %v339
                %v341 = vld [vmem:[%s151 + $0x2a4] sm:$0xf]
                %342 = vst [vmem:[%s152 + $0x178] sm:$0xf] %v341
                %v343 = vld [vmem:[%s151 + $0x2a8] sm:$0xf]
                %344 = vst [vmem:[%s152 + $0x17c] sm:$0xf] %v343
                %v345 = vld [vmem:[%s151 + $0x2ac] sm:$0xf]
                %346 = vst [vmem:[%s152 + $0x180] sm:$0xf] %v345
                %v347 = vld [vmem:[%s151 + $0x2b0] sm:$0xf]
                %348 = vst [vmem:[%s152 + $0x184] sm:$0xf] %v347
                %v349 = vld [vmem:[%s151 + $0x2b4] sm:$0xf]
                %350 = vst [vmem:[%s152 + $0x188] sm:$0xf] %v349
                %v351 = vld [vmem:[%s151 + $0x2b8] sm:$0xf]
                %352 = vst [vmem:[%s152 + $0x18c] sm:$0xf] %v351
              $region45: #{lenet_forward.3} parent=39 // loop_footer
                %s150 = sadd.s32 1, %s146
              $region46: #{lenet_forward.3} parent=39 // loop_footer_branch
                %145 = sbr.rel target = $region42
              $region47: #{lenet_forward.3} parent=39 // loop_exit
                _
            $region40: #{lenet_forward.3} parent=31 // pred_fallthru
              _
          $region32: #{lenet_forward.3} parent=27 // pred_fallthru
            _
          %572 = vnop
        $region28: #{lenet_forward.3} parent=23 // pred_fallthru
          _
      $region24: #{lenet_forward.3} parent=5 // pred_fallthru
        _
      %p573 = scmp.le.s32.totalorder 1, %s9
      %p574 = scmp.lt.s32.totalorder %s9, 3
      %p575 = pnand %p573, %p574
      %p576 = pneg %p575
      // Predicated region
      $region66: #{lenet_forward.3} parent=5 // pred_check
        _
      $region67: #{lenet_forward.3} parent=5 // pred_check_branch
        %578 = sbr.rel (%p575) target = $region69
      $region68: #{lenet_forward.3} parent=5 // pred_region
        %s579 = ssub.s32 %s9, 1
        %s580 = sand.u32 %s22, 1
        %s581 = sand.u32 %s22, 1
        %s582 = smul.addr %s581, 400
        %s583 = scalar_lea.vmem [#allocation2], %s582
        // Predicated region
        $region70: #{lenet_forward.3} parent=68 // pred_check
          %p584 = pneg %p35
        $region71: #{lenet_forward.3} parent=68 // pred_check_branch
          %586 = sbr.rel (%p584) target = $region73
        $region72: #{lenet_forward.3} parent=68 // pred_region
          _
        $region73: #{lenet_forward.3} parent=68 // pred_fallthru
          _
        %s587 = sand.u32 %s22, 1
        %s588 = sand.u32 %s22, 1
        %s589 = smul.addr %s588, 400
        %s590 = scalar_lea.vmem [#allocation2], %s589
        %p591 = pneg %p35
        %p592 = pneg %p32
        %p593 = pneg %p56
        %p594 = pneg %p53
        %p595 = pneg %p77
        %p596 = pneg %p74
        %p597 = pneg %p103
        %p598 = pneg %p100
        %s599 = smul.u32 25, %s14
        %p600 = scmp.lt.s32.totalorder %s599, 49
        %s601 = scalar_select %p600, %s599, 49
        %s602 = smul.addr %s601, 4
        %s603 = scalar_lea.vmem %s3, %s602
        %s604 = smul.u32 25, %s14
        %s605 = smul.u32 25, %s14
        %p606 = scmp.lt.s32.totalorder %s605, 49
        %s607 = scalar_select %p606, %s605, 49
        %s608 = smul.addr %s607, 4
        %s609 = scalar_lea.vmem %s3, %s608
        %s610 = smul.u32 25, %s14
        %v612 = vld [vmem:[%s1] sm:$0xf]
        %v613 = vld [vmem:[%s1 + $0x4] sm:$0xf]
        %v614 = vld [vmem:[%s1 + $0x8] sm:$0xf]
        %v615 = vld [vmem:[%s1 + $0xc] sm:$0xf]
        %v616 = vld [vmem:[%s1 + $0x10] sm:$0xf]
        %v617 = vld [vmem:[%s1 + $0x14] sm:$0xf]
        %v618 = vld [vmem:[%s1 + $0x18] sm:$0xf]
        %v619 = vld [vmem:[%s1 + $0x1c] sm:$0xf]
        %v620 = vld [vmem:[%s1 + $0x20] sm:$0xf]
        %v621 = vld [vmem:[%s1 + $0x24] sm:$0xf]
        %v622 = vld [vmem:[%s1 + $0x28] sm:$0xf]
        %v623 = vld [vmem:[%s1 + $0x2c] sm:$0xf]
        %v624 = vld [vmem:[%s1 + $0x30] sm:$0xf]
        %v625 = vld [vmem:[%s1 + $0x34] sm:$0xf]
        %v626 = vld [vmem:[%s1 + $0x38] sm:$0xf]
        %v627 = vld [vmem:[%s1 + $0x3c] sm:$0xf]
        %v628 = vld [vmem:[%s583] sm:$0xf]
        %v629 = vld [vmem:[%s583 + $0x4] sm:$0xf]
        %v630 = vld [vmem:[%s583 + $0x8] sm:$0xf]
        %v631 = vld [vmem:[%s583 + $0xc] sm:$0xf]
        %v632 = vld [vmem:[%s583 + $0x10] sm:$0xf]
        %v633 = vld [vmem:[%s583 + $0x14] sm:$0xf]
        %v634 = vld [vmem:[%s583 + $0x18] sm:$0xf]
        %v635 = vld [vmem:[%s583 + $0x1c] sm:$0xf]
        %v636 = vld [vmem:[%s583 + $0x20] sm:$0xf]
        %v637 = vld [vmem:[%s583 + $0x24] sm:$0xf]
        %v638 = vld [vmem:[%s583 + $0x28] sm:$0xf]
        %v639 = vld [vmem:[%s583 + $0x2c] sm:$0xf]
        %v640 = vld [vmem:[%s583 + $0x30] sm:$0xf]
        %v641 = vld [vmem:[%s583 + $0x34] sm:$0xf]
        %v642 = vld [vmem:[%s583 + $0x38] sm:$0xf]
        %v643 = vld [vmem:[%s583 + $0x3c] sm:$0xf]
        %v644 = vld [vmem:[%s583 + $0x40] sm:$0xf]
        %v645 = vld [vmem:[%s583 + $0x44] sm:$0xf]
        %v646 = vld [vmem:[%s583 + $0x48] sm:$0xf]
        %v647 = vld [vmem:[%s583 + $0x4c] sm:$0xf]
        %v648 = vld [vmem:[%s583 + $0x50] sm:$0xf]
        %v649 = vld [vmem:[%s583 + $0x54] sm:$0xf]
        %v650 = vld [vmem:[%s583 + $0x58] sm:$0xf]
        %v651 = vld [vmem:[%s583 + $0x5c] sm:$0xf]
        %v652 = vld [vmem:[%s583 + $0x60] sm:$0xf]
        %v678 = vunpack.c.l.b16 %v628
        %v679 = vunpack.c.l.b16 %v629
        %v680 = vunpack.c.l.b16 %v630
        %v681 = vunpack.c.l.b16 %v631
        %v682 = vunpack.c.l.b16 %v632
        %v683 = vunpack.c.l.b16 %v633
        %v684 = vunpack.c.l.b16 %v634
        %v685 = vunpack.c.l.b16 %v635
        %v686 = vunpack.c.l.b16 %v636
        %v687 = vunpack.c.l.b16 %v637
        %v688 = vunpack.c.l.b16 %v638
        %v689 = vunpack.c.l.b16 %v639
        %v690 = vunpack.c.l.b16 %v640
        %v691 = vunpack.c.l.b16 %v641
        %v692 = vunpack.c.l.b16 %v642
        %v693 = vunpack.c.l.b16 %v643
        %v694 = vunpack.c.l.b16 %v644
        %v695 = vunpack.c.l.b16 %v645
        %v696 = vunpack.c.l.b16 %v646
        %v697 = vunpack.c.l.b16 %v647
        %v698 = vunpack.c.l.b16 %v648
        %v699 = vunpack.c.l.b16 %v649
        %v700 = vunpack.c.l.b16 %v650
        %v701 = vunpack.c.l.b16 %v651
        %v702 = vunpack.c.l.b16 %v652
        %v703 = vpack.c.b16 %v679, %v678
        %v704 = vpack.c.b16 %v681, %v680
        %v705 = vpack.c.b16 %v683, %v682
        %v706 = vpack.c.b16 %v685, %v684
        %v707 = vpack.c.b16 %v687, %v686
        %v708 = vpack.c.b16 %v689, %v688
        %v709 = vpack.c.b16 %v691, %v690
        %v710 = vpack.c.b16 %v693, %v692
        %v711 = vpack.c.b16 %v695, %v694
        %v712 = vpack.c.b16 %v697, %v696
        %v713 = vpack.c.b16 %v699, %v698
        %v714 = vpack.c.b16 %v701, %v700
        %v715 = vpack.c.b16 %v702, %v702
        %v745 = vunpack.c.l.b16 %v612
        %v746 = vunpack.c.l.b16 %v613
        %v747 = vunpack.c.l.b16 %v614
        %v748 = vunpack.c.l.b16 %v615
        %v749 = vunpack.c.l.b16 %v616
        %v750 = vunpack.c.l.b16 %v617
        %v751 = vunpack.c.l.b16 %v618
        %v752 = vunpack.c.l.b16 %v619
        %v753 = vunpack.c.l.b16 %v620
        %v754 = vunpack.c.l.b16 %v621
        %v755 = vunpack.c.l.b16 %v622
        %v756 = vunpack.c.l.b16 %v623
        %v757 = vunpack.c.l.b16 %v624
        %v758 = vunpack.c.l.b16 %v625
        %v759 = vunpack.c.l.b16 %v626
        %v760 = vunpack.c.l.b16 %v627
        %v761 = vpack.c.b16 %v746, %v745
        %v762 = vpack.c.b16 %v748, %v747
        %v763 = vpack.c.b16 %v750, %v749
        %v764 = vpack.c.b16 %v752, %v751
        %v765 = vpack.c.b16 %v754, %v753
        %v766 = vpack.c.b16 %v756, %v755
        %v767 = vpack.c.b16 %v758, %v757
        %v768 = vpack.c.b16 %v760, %v759
        %777 = vmatprep.subr.bf16.mxu0 0
        %778 = vmatpush1.bf16.msra.mxu0 %v761
        %779 = vmatprep.subr.bf16.mxu0 0
        %780 = vmatpush1.bf16.msra.mxu0 %v762
        %781 = vmatprep.subr.bf16.mxu0 0
        %782 = vmatpush1.bf16.msra.mxu0 %v763
        %783 = vmatprep.subr.bf16.mxu0 0
        %784 = vmatpush1.bf16.msra.mxu0 %v764
        %785 = vmatprep.subr.bf16.mxu0 0
        %786 = vmatpush1.bf16.msra.mxu0 %v765
        %787 = vmatprep.subr.bf16.mxu0 0
        %788 = vmatpush1.bf16.msra.mxu0 %v766
        %789 = vmatprep.subr.bf16.mxu0 0
        %790 = vmatpush1.bf16.msra.mxu0 %v767
        %791 = vmatprep.subr.bf16.mxu0 0
        %792 = vmatpush1.bf16.msra.mxu0 %v768
        %793 = vmatprep.subr.bf16.mxu0 0
        %794 = vmatpush1.bf16.msra.mxu0 0
        %795 = vmatprep.subr.bf16.mxu0 0
        %796 = vmatpush1.bf16.msra.mxu0 0
        %797 = vmatprep.subr.bf16.mxu0 0
        %798 = vmatpush1.bf16.msra.mxu0 0
        %799 = vmatprep.subr.bf16.mxu0 0
        %800 = vmatpush1.bf16.msra.mxu0 0
        %801 = vmatprep.subr.bf16.mxu0 0
        %802 = vmatpush1.bf16.msra.mxu0 0
        %803 = vmatprep.subr.bf16.mxu0 0
        %804 = vmatpush1.bf16.msra.mxu0 0
        %805 = vmatprep.subr.bf16.mxu0 0
        %806 = vmatpush1.bf16.msra.mxu0 0
        %807 = vmatprep.subr.bf16.mxu0 0
        %808 = vmatpush1.bf16.msra.mxu0 0
        %809 = vmatprep.mubr.bf16.mxu0 0
        %810 = vmatmul.mubr.bf16.gmra.mrb[0].mxu0 %v703
        %v811 = vpop.f32.mrb[0].mxu0
        %v812 = vadd.f32 0.0, %v811
        %v813 = vpop.f32.mrb[0].mxu0
        %v814 = vpop.f32.mrb[0].mxu0
        %v815 = vadd.f32 0.0, %v814
        %v816 = vpop.f32.mrb[0].mxu0
        %817 = vmatprep.mubr.bf16.mxu0 0
        %818 = vmatmul.mubr.bf16.gmra.mrb[0].mxu0 %v704
        %v819 = vpop.f32.mrb[0].mxu0
        %v820 = vadd.f32 0.0, %v819
        %v821 = vpop.f32.mrb[0].mxu0
        %v822 = vpop.f32.mrb[0].mxu0
        %v823 = vadd.f32 0.0, %v822
        %v824 = vpop.f32.mrb[0].mxu0
        %825 = vmatprep.mubr.bf16.mxu0 0
        %826 = vmatmul.mubr.bf16.gmra.mrb[0].mxu0 %v705
        %v827 = vpop.f32.mrb[0].mxu0
        %v828 = vadd.f32 0.0, %v827
        %v829 = vpop.f32.mrb[0].mxu0
        %v830 = vpop.f32.mrb[0].mxu0
        %v831 = vadd.f32 0.0, %v830
        %v832 = vpop.f32.mrb[0].mxu0
        %833 = vmatprep.mubr.bf16.mxu0 0
        %834 = vmatmul.mubr.bf16.gmra.mrb[0].mxu0 %v706
        %v835 = vpop.f32.mrb[0].mxu0
        %v836 = vadd.f32 0.0, %v835
        %v837 = vpop.f32.mrb[0].mxu0
        %v838 = vpop.f32.mrb[0].mxu0
        %v839 = vadd.f32 0.0, %v838
        %v840 = vpop.f32.mrb[0].mxu0
        %841 = vmatprep.mubr.bf16.mxu0 0
        %842 = vmatmul.mubr.bf16.gmra.mrb[0].mxu0 %v707
        %v843 = vpop.f32.mrb[0].mxu0
        %v844 = vadd.f32 0.0, %v843
        %v845 = vpop.f32.mrb[0].mxu0
        %v846 = vpop.f32.mrb[0].mxu0
        %v847 = vadd.f32 0.0, %v846
        %v848 = vpop.f32.mrb[0].mxu0
        %849 = vmatprep.mubr.bf16.mxu0 0
        %850 = vmatmul.mubr.bf16.gmra.mrb[0].mxu0 %v708
        %v851 = vpop.f32.mrb[0].mxu0
        %v852 = vadd.f32 0.0, %v851
        %v853 = vpop.f32.mrb[0].mxu0
        %v854 = vpop.f32.mrb[0].mxu0
        %v855 = vadd.f32 0.0, %v854
        %v856 = vpop.f32.mrb[0].mxu0
        %857 = vmatprep.mubr.bf16.mxu0 0
        %858 = vmatmul.mubr.bf16.gmra.mrb[0].mxu0 %v709
        %v859 = vpop.f32.mrb[0].mxu0
        %v860 = vadd.f32 0.0, %v859
        %v861 = vpop.f32.mrb[0].mxu0
        %v862 = vpop.f32.mrb[0].mxu0
        %v863 = vadd.f32 0.0, %v862
        %v864 = vpop.f32.mrb[0].mxu0
        %865 = vmatprep.mubr.bf16.mxu0 0
        %866 = vmatmul.mubr.bf16.gmra.mrb[0].mxu0 %v710
        %v867 = vpop.f32.mrb[0].mxu0
        %v868 = vadd.f32 0.0, %v867
        %v869 = vpop.f32.mrb[0].mxu0
        %v870 = vpop.f32.mrb[0].mxu0
        %v871 = vadd.f32 0.0, %v870
        %v872 = vpop.f32.mrb[0].mxu0
        %873 = vmatprep.mubr.bf16.mxu0 0
        %874 = vmatmul.mubr.bf16.gmra.mrb[0].mxu0 %v711
        %v875 = vpop.f32.mrb[0].mxu0
        %v876 = vadd.f32 0.0, %v875
        %v877 = vpop.f32.mrb[0].mxu0
        %v878 = vpop.f32.mrb[0].mxu0
        %v879 = vadd.f32 0.0, %v878
        %v880 = vpop.f32.mrb[0].mxu0
        %881 = vmatprep.mubr.bf16.mxu0 0
        %882 = vmatmul.mubr.bf16.gmra.mrb[0].mxu0 %v712
        %v883 = vpop.f32.mrb[0].mxu0
        %v884 = vadd.f32 0.0, %v883
        %v885 = vpop.f32.mrb[0].mxu0
        %v886 = vpop.f32.mrb[0].mxu0
        %v887 = vadd.f32 0.0, %v886
        %v888 = vpop.f32.mrb[0].mxu0
        %889 = vmatprep.mubr.bf16.mxu0 0
        %890 = vmatmul.mubr.bf16.gmra.mrb[0].mxu0 %v713
        %v891 = vpop.f32.mrb[0].mxu0
        %v892 = vadd.f32 0.0, %v891
        %v893 = vpop.f32.mrb[0].mxu0
        %v894 = vpop.f32.mrb[0].mxu0
        %v895 = vadd.f32 0.0, %v894
        %v896 = vpop.f32.mrb[0].mxu0
        %897 = vmatprep.mubr.bf16.mxu0 0
        %898 = vmatmul.mubr.bf16.gmra.mrb[0].mxu0 %v714
        %v899 = vpop.f32.mrb[0].mxu0
        %v900 = vadd.f32 0.0, %v899
        %v901 = vpop.f32.mrb[0].mxu0
        %v902 = vpop.f32.mrb[0].mxu0
        %v903 = vadd.f32 0.0, %v902
        %v904 = vpop.f32.mrb[0].mxu0
        %905 = vmatprep.mubr.bf16.mxu0 0
        %906 = vmatmul.mubr.bf16.gmra.mrb[0].mxu0 %v715
        %v907 = vpop.f32.mrb[0].mxu0
        %v908 = vadd.f32 0.0, %v907
        %v909 = vpop.f32.mrb[0].mxu0
        %v910 = vpop.f32.mrb[0].mxu0
        %v911 = vpop.f32.mrb[0].mxu0
        %912 = vdwg.mxu0
        %s913 = scalar_lea.vmem %s583, 100 [#allocation2]
        %v914 = vld [vmem:[%s913] sm:$0xf]
        %v915 = vld [vmem:[%s913 + $0x4] sm:$0xf]
        %v916 = vld [vmem:[%s913 + $0x8] sm:$0xf]
        %v917 = vld [vmem:[%s913 + $0xc] sm:$0xf]
        %v918 = vld [vmem:[%s913 + $0x10] sm:$0xf]
        %v919 = vld [vmem:[%s913 + $0x14] sm:$0xf]
        %v920 = vld [vmem:[%s913 + $0x18] sm:$0xf]
        %v921 = vld [vmem:[%s913 + $0x1c] sm:$0xf]
        %v922 = vld [vmem:[%s913 + $0x20] sm:$0xf]
        %v923 = vld [vmem:[%s913 + $0x24] sm:$0xf]
        %v924 = vld [vmem:[%s913 + $0x28] sm:$0xf]
        %v925 = vld [vmem:[%s913 + $0x2c] sm:$0xf]
        %v926 = vld [vmem:[%s913 + $0x30] sm:$0xf]
        %v927 = vld [vmem:[%s913 + $0x34] sm:$0xf]
        %v928 = vld [vmem:[%s913 + $0x38] sm:$0xf]
        %v929 = vld [vmem:[%s913 + $0x3c] sm:$0xf]
        %v930 = vld [vmem:[%s913 + $0x40] sm:$0xf]
        %v931 = vld [vmem:[%s913 + $0x44] sm:$0xf]
        %v932 = vld [vmem:[%s913 + $0x48] sm:$0xf]
        %v933 = vld [vmem:[%s913 + $0x4c] sm:$0xf]
        %v934 = vld [vmem:[%s913 + $0x50] sm:$0xf]
        %v935 = vld [vmem:[%s913 + $0x54] sm:$0xf]
        %v936 = vld [vmem:[%s913 + $0x58] sm:$0xf]
        %v937 = vld [vmem:[%s913 + $0x5c] sm:$0xf]
        %v938 = vld [vmem:[%s913 + $0x60] sm:$0xf]
        %v964 = vunpack.c.l.b16 %v914
        %v965 = vunpack.c.l.b16 %v915
        %v966 = vunpack.c.l.b16 %v916
        %v967 = vunpack.c.l.b16 %v917
        %v968 = vunpack.c.l.b16 %v918
        %v969 = vunpack.c.l.b16 %v919
        %v970 = vunpack.c.l.b16 %v920
        %v971 = vunpack.c.l.b16 %v921
        %v972 = vunpack.c.l.b16 %v922
        %v973 = vunpack.c.l.b16 %v923
        %v974 = vunpack.c.l.b16 %v924
        %v975 = vunpack.c.l.b16 %v925
        %v976 = vunpack.c.l.b16 %v926
        %v977 = vunpack.c.l.b16 %v927
        %v978 = vunpack.c.l.b16 %v928
        %v979 = vunpack.c.l.b16 %v929
        %v980 = vunpack.c.l.b16 %v930
        %v981 = vunpack.c.l.b16 %v931
        %v982 = vunpack.c.l.b16 %v932
        %v983 = vunpack.c.l.b16 %v933
        %v984 = vunpack.c.l.b16 %v934
        %v985 = vunpack.c.l.b16 %v935
        %v986 = vunpack.c.l.b16 %v936
        %v987 = vunpack.c.l.b16 %v937
        %v988 = vunpack.c.l.b16 %v938
        %v989 = vpack.c.b16 %v965, %v964
        %v990 = vpack.c.b16 %v967, %v966
        %v991 = vpack.c.b16 %v969, %v968
        %v992 = vpack.c.b16 %v971, %v970
        %v993 = vpack.c.b16 %v973, %v972
        %v994 = vpack.c.b16 %v975, %v974
        %v995 = vpack.c.b16 %v977, %v976
        %v996 = vpack.c.b16 %v979, %v978
        %v997 = vpack.c.b16 %v981, %v980
        %v998 = vpack.c.b16 %v983, %v982
        %v999 = vpack.c.b16 %v985, %v984
        %v1000 = vpack.c.b16 %v987, %v986
        %v1001 = vpack.c.b16 %v988, %v988
        %1015 = vmatprep.subr.bf16.mxu0 0
        %1016 = vmatpush1.bf16.msra.mxu0 %v761
        %1017 = vmatprep.subr.bf16.mxu0 0
        %1018 = vmatpush1.bf16.msra.mxu0 %v762
        %1019 = vmatprep.subr.bf16.mxu0 0
        %1020 = vmatpush1.bf16.msra.mxu0 %v763
        %1021 = vmatprep.subr.bf16.mxu0 0
        %1022 = vmatpush1.bf16.msra.mxu0 %v764
        %1023 = vmatprep.subr.bf16.mxu0 0
        %1024 = vmatpush1.bf16.msra.mxu0 %v765
        %1025 = vmatprep.subr.bf16.mxu0 0
        %1026 = vmatpush1.bf16.msra.mxu0 %v766
        %1027 = vmatprep.subr.bf16.mxu0 0
        %1028 = vmatpush1.bf16.msra.mxu0 %v767
        %1029 = vmatprep.subr.bf16.mxu0 0
        %1030 = vmatpush1.bf16.msra.mxu0 %v768
        %1031 = vmatprep.subr.bf16.mxu0 0
        %1032 = vmatpush1.bf16.msra.mxu0 0
        %1033 = vmatprep.subr.bf16.mxu0 0
        %1034 = vmatpush1.bf16.msra.mxu0 0
        %1035 = vmatprep.subr.bf16.mxu0 0
        %1036 = vmatpush1.bf16.msra.mxu0 0
        %1037 = vmatprep.subr.bf16.mxu0 0
        %1038 = vmatpush1.bf16.msra.mxu0 0
        %1039 = vmatprep.subr.bf16.mxu0 0
        %1040 = vmatpush1.bf16.msra.mxu0 0
        %1041 = vmatprep.subr.bf16.mxu0 0
        %1042 = vmatpush1.bf16.msra.mxu0 0
        %1043 = vmatprep.subr.bf16.mxu0 0
        %1044 = vmatpush1.bf16.msra.mxu0 0
        %1045 = vmatprep.subr.bf16.mxu0 0
        %1046 = vmatpush1.bf16.msra.mxu0 0
        %1047 = vmatprep.mubr.bf16.mxu0 0
        %1048 = vmatmul.mubr.bf16.gmra.mrb[0].mxu0 %v989
        %v1049 = vpop.f32.mrb[0].mxu0
        %v1050 = vadd.f32 0.0, %v1049
        %v1051 = vpop.f32.mrb[0].mxu0
        %v1052 = vpop.f32.mrb[0].mxu0
        %v1053 = vadd.f32 0.0, %v1052
        %v1054 = vpop.f32.mrb[0].mxu0
        %1055 = vmatprep.mubr.bf16.mxu0 0
        %1056 = vmatmul.mubr.bf16.gmra.mrb[0].mxu0 %v990
        %v1057 = vpop.f32.mrb[0].mxu0
        %v1058 = vadd.f32 0.0, %v1057
        %v1059 = vpop.f32.mrb[0].mxu0
        %v1060 = vpop.f32.mrb[0].mxu0
        %v1061 = vadd.f32 0.0, %v1060
        %v1062 = vpop.f32.mrb[0].mxu0
        %1063 = vmatprep.mubr.bf16.mxu0 0
        %1064 = vmatmul.mubr.bf16.gmra.mrb[0].mxu0 %v991
        %v1065 = vpop.f32.mrb[0].mxu0
        %v1066 = vadd.f32 0.0, %v1065
        %v1067 = vpop.f32.mrb[0].mxu0
        %v1068 = vpop.f32.mrb[0].mxu0
        %v1069 = vadd.f32 0.0, %v1068
        %v1070 = vpop.f32.mrb[0].mxu0
        %1071 = vmatprep.mubr.bf16.mxu0 0
        %1072 = vmatmul.mubr.bf16.gmra.mrb[0].mxu0 %v992
        %v1073 = vpop.f32.mrb[0].mxu0
        %v1074 = vadd.f32 0.0, %v1073
        %v1075 = vpop.f32.mrb[0].mxu0
        %v1076 = vpop.f32.mrb[0].mxu0
        %v1077 = vadd.f32 0.0, %v1076
        %v1078 = vpop.f32.mrb[0].mxu0
        %1079 = vmatprep.mubr.bf16.mxu0 0
        %1080 = vmatmul.mubr.bf16.gmra.mrb[0].mxu0 %v993
        %v1081 = vpop.f32.mrb[0].mxu0
        %v1082 = vadd.f32 0.0, %v1081
        %v1083 = vpop.f32.mrb[0].mxu0
        %v1084 = vpop.f32.mrb[0].mxu0
        %v1085 = vadd.f32 0.0, %v1084
        %v1086 = vpop.f32.mrb[0].mxu0
        %1087 = vmatprep.mubr.bf16.mxu0 0
        %1088 = vmatmul.mubr.bf16.gmra.mrb[0].mxu0 %v994
        %v1089 = vpop.f32.mrb[0].mxu0
        %v1090 = vadd.f32 0.0, %v1089
        %v1091 = vpop.f32.mrb[0].mxu0
        %v1092 = vpop.f32.mrb[0].mxu0
        %v1093 = vadd.f32 0.0, %v1092
        %v1094 = vpop.f32.mrb[0].mxu0
        %1095 = vmatprep.mubr.bf16.mxu0 0
        %1096 = vmatmul.mubr.bf16.gmra.mrb[0].mxu0 %v995
        %v1097 = vpop.f32.mrb[0].mxu0
        %v1098 = vadd.f32 0.0, %v1097
        %v1099 = vpop.f32.mrb[0].mxu0
        %v1100 = vpop.f32.mrb[0].mxu0
        %v1101 = vadd.f32 0.0, %v1100
        %v1102 = vpop.f32.mrb[0].mxu0
        %1103 = vmatprep.mubr.bf16.mxu0 0
        %1104 = vmatmul.mubr.bf16.gmra.mrb[0].mxu0 %v996
        %v1105 = vpop.f32.mrb[0].mxu0
        %v1106 = vadd.f32 0.0, %v1105
        %v1107 = vpop.f32.mrb[0].mxu0
        %v1108 = vpop.f32.mrb[0].mxu0
        %v1109 = vadd.f32 0.0, %v1108
        %v1110 = vpop.f32.mrb[0].mxu0
        %1111 = vmatprep.mubr.bf16.mxu0 0
        %1112 = vmatmul.mubr.bf16.gmra.mrb[0].mxu0 %v997
        %v1113 = vpop.f32.mrb[0].mxu0
        %v1114 = vadd.f32 0.0, %v1113
        %v1115 = vpop.f32.mrb[0].mxu0
        %v1116 = vpop.f32.mrb[0].mxu0
        %v1117 = vadd.f32 0.0, %v1116
        %v1118 = vpop.f32.mrb[0].mxu0
        %1119 = vmatprep.mubr.bf16.mxu0 0
        %1120 = vmatmul.mubr.bf16.gmra.mrb[0].mxu0 %v998
        %v1121 = vpop.f32.mrb[0].mxu0
        %v1122 = vadd.f32 0.0, %v1121
        %v1123 = vpop.f32.mrb[0].mxu0
        %v1124 = vpop.f32.mrb[0].mxu0
        %v1125 = vadd.f32 0.0, %v1124
        %v1126 = vpop.f32.mrb[0].mxu0
        %1127 = vmatprep.mubr.bf16.mxu0 0
        %1128 = vmatmul.mubr.bf16.gmra.mrb[0].mxu0 %v999
        %v1129 = vpop.f32.mrb[0].mxu0
        %v1130 = vadd.f32 0.0, %v1129
        %v1131 = vpop.f32.mrb[0].mxu0
        %v1132 = vpop.f32.mrb[0].mxu0
        %v1133 = vadd.f32 0.0, %v1132
        %v1134 = vpop.f32.mrb[0].mxu0
        %1135 = vmatprep.mubr.bf16.mxu0 0
        %1136 = vmatmul.mubr.bf16.gmra.mrb[0].mxu0 %v1000
        %v1137 = vpop.f32.mrb[0].mxu0
        %v1138 = vadd.f32 0.0, %v1137
        %v1139 = vpop.f32.mrb[0].mxu0
        %v1140 = vpop.f32.mrb[0].mxu0
        %v1141 = vadd.f32 0.0, %v1140
        %v1142 = vpop.f32.mrb[0].mxu0
        %1143 = vmatprep.mubr.bf16.mxu0 0
        %1144 = vmatmul.mubr.bf16.gmra.mrb[0].mxu0 %v1001
        %v1145 = vpop.f32.mrb[0].mxu0
        %v1146 = vadd.f32 0.0, %v1145
        %v1147 = vpop.f32.mrb[0].mxu0
        %v1148 = vpop.f32.mrb[0].mxu0
        %v1149 = vpop.f32.mrb[0].mxu0
        %1150 = vdwg.mxu0
        %v1151 = vmax.f32 %v812, %v1050
        %v1152 = vmax.f32 %v815, %v1053
        %v1153 = vmax.f32 %v820, %v1058
        %v1154 = vmax.f32 %v823, %v1061
        %v1155 = vmax.f32 %v828, %v1066
        %v1156 = vmax.f32 %v831, %v1069
        %v1157 = vmax.f32 %v836, %v1074
        %v1158 = vmax.f32 %v839, %v1077
        %v1159 = vmax.f32 %v844, %v1082
        %v1160 = vmax.f32 %v847, %v1085
        %v1161 = vmax.f32 %v852, %v1090
        %v1162 = vmax.f32 %v855, %v1093
        %v1163 = vmax.f32 %v860, %v1098
        %v1164 = vmax.f32 %v863, %v1101
        %v1165 = vmax.f32 %v868, %v1106
        %v1166 = vmax.f32 %v871, %v1109
        %v1167 = vmax.f32 %v876, %v1114
        %v1168 = vmax.f32 %v879, %v1117
        %v1169 = vmax.f32 %v884, %v1122
        %v1170 = vmax.f32 %v887, %v1125
        %v1171 = vmax.f32 %v892, %v1130
        %v1172 = vmax.f32 %v895, %v1133
        %v1173 = vmax.f32 %v900, %v1138
        %v1174 = vmax.f32 %v903, %v1141
        %v1175 = vmax.f32 %v908, %v1146
        %s1176 = scalar_lea.vmem %s583, 200 [#allocation2]
        %v1177 = vld [vmem:[%s1176] sm:$0xf]
        %v1178 = vld [vmem:[%s1176 + $0x4] sm:$0xf]
        %v1179 = vld [vmem:[%s1176 + $0x8] sm:$0xf]
        %v1180 = vld [vmem:[%s1176 + $0xc] sm:$0xf]
        %v1181 = vld [vmem:[%s1176 + $0x10] sm:$0xf]
        %v1182 = vld [vmem:[%s1176 + $0x14] sm:$0xf]
        %v1183 = vld [vmem:[%s1176 + $0x18] sm:$0xf]
        %v1184 = vld [vmem:[%s1176 + $0x1c] sm:$0xf]
        %v1185 = vld [vmem:[%s1176 + $0x20] sm:$0xf]
        %v1186 = vld [vmem:[%s1176 + $0x24] sm:$0xf]
        %v1187 = vld [vmem:[%s1176 + $0x28] sm:$0xf]
        %v1188 = vld [vmem:[%s1176 + $0x2c] sm:$0xf]
        %v1189 = vld [vmem:[%s1176 + $0x30] sm:$0xf]
        %v1190 = vld [vmem:[%s1176 + $0x34] sm:$0xf]
        %v1191 = vld [vmem:[%s1176 + $0x38] sm:$0xf]
        %v1192 = vld [vmem:[%s1176 + $0x3c] sm:$0xf]
        %v1193 = vld [vmem:[%s1176 + $0x40] sm:$0xf]
        %v1194 = vld [vmem:[%s1176 + $0x44] sm:$0xf]
        %v1195 = vld [vmem:[%s1176 + $0x48] sm:$0xf]
        %v1196 = vld [vmem:[%s1176 + $0x4c] sm:$0xf]
        %v1197 = vld [vmem:[%s1176 + $0x50] sm:$0xf]
        %v1198 = vld [vmem:[%s1176 + $0x54] sm:$0xf]
        %v1199 = vld [vmem:[%s1176 + $0x58] sm:$0xf]
        %v1200 = vld [vmem:[%s1176 + $0x5c] sm:$0xf]
        %v1201 = vld [vmem:[%s1176 + $0x60] sm:$0xf]
        %v1227 = vunpack.c.l.b16 %v1177
        %v1228 = vunpack.c.l.b16 %v1178
        %v1229 = vunpack.c.l.b16 %v1179
        %v1230 = vunpack.c.l.b16 %v1180
        %v1231 = vunpack.c.l.b16 %v1181
        %v1232 = vunpack.c.l.b16 %v1182
        %v1233 = vunpack.c.l.b16 %v1183
        %v1234 = vunpack.c.l.b16 %v1184
        %v1235 = vunpack.c.l.b16 %v1185
        %v1236 = vunpack.c.l.b16 %v1186
        %v1237 = vunpack.c.l.b16 %v1187
        %v1238 = vunpack.c.l.b16 %v1188
        %v1239 = vunpack.c.l.b16 %v1189
        %v1240 = vunpack.c.l.b16 %v1190
        %v1241 = vunpack.c.l.b16 %v1191
        %v1242 = vunpack.c.l.b16 %v1192
        %v1243 = vunpack.c.l.b16 %v1193
        %v1244 = vunpack.c.l.b16 %v1194
        %v1245 = vunpack.c.l.b16 %v1195
        %v1246 = vunpack.c.l.b16 %v1196
        %v1247 = vunpack.c.l.b16 %v1197
        %v1248 = vunpack.c.l.b16 %v1198
        %v1249 = vunpack.c.l.b16 %v1199
        %v1250 = vunpack.c.l.b16 %v1200
        %v1251 = vunpack.c.l.b16 %v1201
        %v1252 = vpack.c.b16 %v1228, %v1227
        %v1253 = vpack.c.b16 %v1230, %v1229
        %v1254 = vpack.c.b16 %v1232, %v1231
        %v1255 = vpack.c.b16 %v1234, %v1233
        %v1256 = vpack.c.b16 %v1236, %v1235
        %v1257 = vpack.c.b16 %v1238, %v1237
        %v1258 = vpack.c.b16 %v1240, %v1239
        %v1259 = vpack.c.b16 %v1242, %v1241
        %v1260 = vpack.c.b16 %v1244, %v1243
        %v1261 = vpack.c.b16 %v1246, %v1245
        %v1262 = vpack.c.b16 %v1248, %v1247
        %v1263 = vpack.c.b16 %v1250, %v1249
        %v1264 = vpack.c.b16 %v1251, %v1251
        %1278 = vmatprep.subr.bf16.mxu0 0
        %1279 = vmatpush1.bf16.msra.mxu0 %v761
        %1280 = vmatprep.subr.bf16.mxu0 0
        %1281 = vmatpush1.bf16.msra.mxu0 %v762
        %1282 = vmatprep.subr.bf16.mxu0 0
        %1283 = vmatpush1.bf16.msra.mxu0 %v763
        %1284 = vmatprep.subr.bf16.mxu0 0
        %1285 = vmatpush1.bf16.msra.mxu0 %v764
        %1286 = vmatprep.subr.bf16.mxu0 0
        %1287 = vmatpush1.bf16.msra.mxu0 %v765
        %1288 = vmatprep.subr.bf16.mxu0 0
        %1289 = vmatpush1.bf16.msra.mxu0 %v766
        %1290 = vmatprep.subr.bf16.mxu0 0
        %1291 = vmatpush1.bf16.msra.mxu0 %v767
        %1292 = vmatprep.subr.bf16.mxu0 0
        %1293 = vmatpush1.bf16.msra.mxu0 %v768
        %1294 = vmatprep.subr.bf16.mxu0 0
        %1295 = vmatpush1.bf16.msra.mxu0 0
        %1296 = vmatprep.subr.bf16.mxu0 0
        %1297 = vmatpush1.bf16.msra.mxu0 0
        %1298 = vmatprep.subr.bf16.mxu0 0
        %1299 = vmatpush1.bf16.msra.mxu0 0
        %1300 = vmatprep.subr.bf16.mxu0 0
        %1301 = vmatpush1.bf16.msra.mxu0 0
        %1302 = vmatprep.subr.bf16.mxu0 0
        %1303 = vmatpush1.bf16.msra.mxu0 0
        %1304 = vmatprep.subr.bf16.mxu0 0
        %1305 = vmatpush1.bf16.msra.mxu0 0
        %1306 = vmatprep.subr.bf16.mxu0 0
        %1307 = vmatpush1.bf16.msra.mxu0 0
        %1308 = vmatprep.subr.bf16.mxu0 0
        %1309 = vmatpush1.bf16.msra.mxu0 0
        %1310 = vmatprep.mubr.bf16.mxu0 0
        %1311 = vmatmul.mubr.bf16.gmra.mrb[0].mxu0 %v1252
        %v1312 = vpop.f32.mrb[0].mxu0
        %v1313 = vadd.f32 0.0, %v1312
        %v1314 = vpop.f32.mrb[0].mxu0
        %v1315 = vpop.f32.mrb[0].mxu0
        %v1316 = vadd.f32 0.0, %v1315
        %v1317 = vpop.f32.mrb[0].mxu0
        %1318 = vmatprep.mubr.bf16.mxu0 0
        %1319 = vmatmul.mubr.bf16.gmra.mrb[0].mxu0 %v1253
        %v1320 = vpop.f32.mrb[0].mxu0
        %v1321 = vadd.f32 0.0, %v1320
        %v1322 = vpop.f32.mrb[0].mxu0
        %v1323 = vpop.f32.mrb[0].mxu0
        %v1324 = vadd.f32 0.0, %v1323
        %v1325 = vpop.f32.mrb[0].mxu0
        %1326 = vmatprep.mubr.bf16.mxu0 0
        %1327 = vmatmul.mubr.bf16.gmra.mrb[0].mxu0 %v1254
        %v1328 = vpop.f32.mrb[0].mxu0
        %v1329 = vadd.f32 0.0, %v1328
        %v1330 = vpop.f32.mrb[0].mxu0
        %v1331 = vpop.f32.mrb[0].mxu0
        %v1332 = vadd.f32 0.0, %v1331
        %v1333 = vpop.f32.mrb[0].mxu0
        %1334 = vmatprep.mubr.bf16.mxu0 0
        %1335 = vmatmul.mubr.bf16.gmra.mrb[0].mxu0 %v1255
        %v1336 = vpop.f32.mrb[0].mxu0
        %v1337 = vadd.f32 0.0, %v1336
        %v1338 = vpop.f32.mrb[0].mxu0
        %v1339 = vpop.f32.mrb[0].mxu0
        %v1340 = vadd.f32 0.0, %v1339
        %v1341 = vpop.f32.mrb[0].mxu0
        %1342 = vmatprep.mubr.bf16.mxu0 0
        %1343 = vmatmul.mubr.bf16.gmra.mrb[0].mxu0 %v1256
        %v1344 = vpop.f32.mrb[0].mxu0
        %v1345 = vadd.f32 0.0, %v1344
        %v1346 = vpop.f32.mrb[0].mxu0
        %v1347 = vpop.f32.mrb[0].mxu0
        %v1348 = vadd.f32 0.0, %v1347
        %v1349 = vpop.f32.mrb[0].mxu0
        %1350 = vmatprep.mubr.bf16.mxu0 0
        %1351 = vmatmul.mubr.bf16.gmra.mrb[0].mxu0 %v1257
        %v1352 = vpop.f32.mrb[0].mxu0
        %v1353 = vadd.f32 0.0, %v1352
        %v1354 = vpop.f32.mrb[0].mxu0
        %v1355 = vpop.f32.mrb[0].mxu0
        %v1356 = vadd.f32 0.0, %v1355
        %v1357 = vpop.f32.mrb[0].mxu0
        %1358 = vmatprep.mubr.bf16.mxu0 0
        %1359 = vmatmul.mubr.bf16.gmra.mrb[0].mxu0 %v1258
        %v1360 = vpop.f32.mrb[0].mxu0
        %v1361 = vadd.f32 0.0, %v1360
        %v1362 = vpop.f32.mrb[0].mxu0
        %v1363 = vpop.f32.mrb[0].mxu0
        %v1364 = vadd.f32 0.0, %v1363
        %v1365 = vpop.f32.mrb[0].mxu0
        %1366 = vmatprep.mubr.bf16.mxu0 0
        %1367 = vmatmul.mubr.bf16.gmra.mrb[0].mxu0 %v1259
        %v1368 = vpop.f32.mrb[0].mxu0
        %v1369 = vadd.f32 0.0, %v1368
        %v1370 = vpop.f32.mrb[0].mxu0
        %v1371 = vpop.f32.mrb[0].mxu0
        %v1372 = vadd.f32 0.0, %v1371
        %v1373 = vpop.f32.mrb[0].mxu0
        %1374 = vmatprep.mubr.bf16.mxu0 0
        %1375 = vmatmul.mubr.bf16.gmra.mrb[0].mxu0 %v1260
        %v1376 = vpop.f32.mrb[0].mxu0
        %v1377 = vadd.f32 0.0, %v1376
        %v1378 = vpop.f32.mrb[0].mxu0
        %v1379 = vpop.f32.mrb[0].mxu0
        %v1380 = vadd.f32 0.0, %v1379
        %v1381 = vpop.f32.mrb[0].mxu0
        %1382 = vmatprep.mubr.bf16.mxu0 0
        %1383 = vmatmul.mubr.bf16.gmra.mrb[0].mxu0 %v1261
        %v1384 = vpop.f32.mrb[0].mxu0
        %v1385 = vadd.f32 0.0, %v1384
        %v1386 = vpop.f32.mrb[0].mxu0
        %v1387 = vpop.f32.mrb[0].mxu0
        %v1388 = vadd.f32 0.0, %v1387
        %v1389 = vpop.f32.mrb[0].mxu0
        %1390 = vmatprep.mubr.bf16.mxu0 0
        %1391 = vmatmul.mubr.bf16.gmra.mrb[0].mxu0 %v1262
        %v1392 = vpop.f32.mrb[0].mxu0
        %v1393 = vadd.f32 0.0, %v1392
        %v1394 = vpop.f32.mrb[0].mxu0
        %v1395 = vpop.f32.mrb[0].mxu0
        %v1396 = vadd.f32 0.0, %v1395
        %v1397 = vpop.f32.mrb[0].mxu0
        %1398 = vmatprep.mubr.bf16.mxu0 0
        %1399 = vmatmul.mubr.bf16.gmra.mrb[0].mxu0 %v1263
        %v1400 = vpop.f32.mrb[0].mxu0
        %v1401 = vadd.f32 0.0, %v1400
        %v1402 = vpop.f32.mrb[0].mxu0
        %v1403 = vpop.f32.mrb[0].mxu0
        %v1404 = vadd.f32 0.0, %v1403
        %v1405 = vpop.f32.mrb[0].mxu0
        %1406 = vmatprep.mubr.bf16.mxu0 0
        %1407 = vmatmul.mubr.bf16.gmra.mrb[0].mxu0 %v1264
        %v1408 = vpop.f32.mrb[0].mxu0
        %v1409 = vadd.f32 0.0, %v1408
        %v1410 = vpop.f32.mrb[0].mxu0
        %v1411 = vpop.f32.mrb[0].mxu0
        %v1412 = vpop.f32.mrb[0].mxu0
        %1413 = vdwg.mxu0
        %v1414 = vmax.f32 %v1151, %v1313
        %v1415 = vmax.f32 %v1152, %v1316
        %v1416 = vmax.f32 %v1153, %v1321
        %v1417 = vmax.f32 %v1154, %v1324
        %v1418 = vmax.f32 %v1155, %v1329
        %v1419 = vmax.f32 %v1156, %v1332
        %v1420 = vmax.f32 %v1157, %v1337
        %v1421 = vmax.f32 %v1158, %v1340
        %v1422 = vmax.f32 %v1159, %v1345
        %v1423 = vmax.f32 %v1160, %v1348
        %v1424 = vmax.f32 %v1161, %v1353
        %v1425 = vmax.f32 %v1162, %v1356
        %v1426 = vmax.f32 %v1163, %v1361
        %v1427 = vmax.f32 %v1164, %v1364
        %v1428 = vmax.f32 %v1165, %v1369
        %v1429 = vmax.f32 %v1166, %v1372
        %v1430 = vmax.f32 %v1167, %v1377
        %v1431 = vmax.f32 %v1168, %v1380
        %v1432 = vmax.f32 %v1169, %v1385
        %v1433 = vmax.f32 %v1170, %v1388
        %v1434 = vmax.f32 %v1171, %v1393
        %v1435 = vmax.f32 %v1172, %v1396
        %v1436 = vmax.f32 %v1173, %v1401
        %v1437 = vmax.f32 %v1174, %v1404
        %v1438 = vmax.f32 %v1175, %v1409
        %s1439 = scalar_lea.vmem %s583, 300 [#allocation2]
        %v1440 = vld [vmem:[%s1439] sm:$0xf]
        %v1441 = vld [vmem:[%s1439 + $0x4] sm:$0xf]
        %v1442 = vld [vmem:[%s1439 + $0x8] sm:$0xf]
        %v1443 = vld [vmem:[%s1439 + $0xc] sm:$0xf]
        %v1444 = vld [vmem:[%s1439 + $0x10] sm:$0xf]
        %v1445 = vld [vmem:[%s1439 + $0x14] sm:$0xf]
        %v1446 = vld [vmem:[%s1439 + $0x18] sm:$0xf]
        %v1447 = vld [vmem:[%s1439 + $0x1c] sm:$0xf]
        %v1448 = vld [vmem:[%s1439 + $0x20] sm:$0xf]
        %v1449 = vld [vmem:[%s1439 + $0x24] sm:$0xf]
        %v1450 = vld [vmem:[%s1439 + $0x28] sm:$0xf]
        %v1451 = vld [vmem:[%s1439 + $0x2c] sm:$0xf]
        %v1452 = vld [vmem:[%s1439 + $0x30] sm:$0xf]
        %v1453 = vld [vmem:[%s1439 + $0x34] sm:$0xf]
        %v1454 = vld [vmem:[%s1439 + $0x38] sm:$0xf]
        %v1455 = vld [vmem:[%s1439 + $0x3c] sm:$0xf]
        %v1456 = vld [vmem:[%s1439 + $0x40] sm:$0xf]
        %v1457 = vld [vmem:[%s1439 + $0x44] sm:$0xf]
        %v1458 = vld [vmem:[%s1439 + $0x48] sm:$0xf]
        %v1459 = vld [vmem:[%s1439 + $0x4c] sm:$0xf]
        %v1460 = vld [vmem:[%s1439 + $0x50] sm:$0xf]
        %v1461 = vld [vmem:[%s1439 + $0x54] sm:$0xf]
        %v1462 = vld [vmem:[%s1439 + $0x58] sm:$0xf]
        %v1463 = vld [vmem:[%s1439 + $0x5c] sm:$0xf]
        %v1464 = vld [vmem:[%s1439 + $0x60] sm:$0xf]
        %v1490 = vunpack.c.l.b16 %v1440
        %v1491 = vunpack.c.l.b16 %v1441
        %v1492 = vunpack.c.l.b16 %v1442
        %v1493 = vunpack.c.l.b16 %v1443
        %v1494 = vunpack.c.l.b16 %v1444
        %v1495 = vunpack.c.l.b16 %v1445
        %v1496 = vunpack.c.l.b16 %v1446
        %v1497 = vunpack.c.l.b16 %v1447
        %v1498 = vunpack.c.l.b16 %v1448
        %v1499 = vunpack.c.l.b16 %v1449
        %v1500 = vunpack.c.l.b16 %v1450
        %v1501 = vunpack.c.l.b16 %v1451
        %v1502 = vunpack.c.l.b16 %v1452
        %v1503 = vunpack.c.l.b16 %v1453
        %v1504 = vunpack.c.l.b16 %v1454
        %v1505 = vunpack.c.l.b16 %v1455
        %v1506 = vunpack.c.l.b16 %v1456
        %v1507 = vunpack.c.l.b16 %v1457
        %v1508 = vunpack.c.l.b16 %v1458
        %v1509 = vunpack.c.l.b16 %v1459
        %v1510 = vunpack.c.l.b16 %v1460
        %v1511 = vunpack.c.l.b16 %v1461
        %v1512 = vunpack.c.l.b16 %v1462
        %v1513 = vunpack.c.l.b16 %v1463
        %v1514 = vunpack.c.l.b16 %v1464
        %v1515 = vpack.c.b16 %v1491, %v1490
        %v1516 = vpack.c.b16 %v1493, %v1492
        %v1517 = vpack.c.b16 %v1495, %v1494
        %v1518 = vpack.c.b16 %v1497, %v1496
        %v1519 = vpack.c.b16 %v1499, %v1498
        %v1520 = vpack.c.b16 %v1501, %v1500
        %v1521 = vpack.c.b16 %v1503, %v1502
        %v1522 = vpack.c.b16 %v1505, %v1504
        %v1523 = vpack.c.b16 %v1507, %v1506
        %v1524 = vpack.c.b16 %v1509, %v1508
        %v1525 = vpack.c.b16 %v1511, %v1510
        %v1526 = vpack.c.b16 %v1513, %v1512
        %v1527 = vpack.c.b16 %v1514, %v1514
        %1541 = vmatprep.subr.bf16.mxu0 0
        %1542 = vmatpush1.bf16.msra.mxu0 %v761
        %1543 = vmatprep.subr.bf16.mxu0 0
        %1544 = vmatpush1.bf16.msra.mxu0 %v762
        %1545 = vmatprep.subr.bf16.mxu0 0
        %1546 = vmatpush1.bf16.msra.mxu0 %v763
        %1547 = vmatprep.subr.bf16.mxu0 0
        %1548 = vmatpush1.bf16.msra.mxu0 %v764
        %1549 = vmatprep.subr.bf16.mxu0 0
        %1550 = vmatpush1.bf16.msra.mxu0 %v765
        %1551 = vmatprep.subr.bf16.mxu0 0
        %1552 = vmatpush1.bf16.msra.mxu0 %v766
        %1553 = vmatprep.subr.bf16.mxu0 0
        %1554 = vmatpush1.bf16.msra.mxu0 %v767
        %1555 = vmatprep.subr.bf16.mxu0 0
        %1556 = vmatpush1.bf16.msra.mxu0 %v768
        %1557 = vmatprep.subr.bf16.mxu0 0
        %1558 = vmatpush1.bf16.msra.mxu0 0
        %1559 = vmatprep.subr.bf16.mxu0 0
        %1560 = vmatpush1.bf16.msra.mxu0 0
        %1561 = vmatprep.subr.bf16.mxu0 0
        %1562 = vmatpush1.bf16.msra.mxu0 0
        %1563 = vmatprep.subr.bf16.mxu0 0
        %1564 = vmatpush1.bf16.msra.mxu0 0
        %1565 = vmatprep.subr.bf16.mxu0 0
        %1566 = vmatpush1.bf16.msra.mxu0 0
        %1567 = vmatprep.subr.bf16.mxu0 0
        %1568 = vmatpush1.bf16.msra.mxu0 0
        %1569 = vmatprep.subr.bf16.mxu0 0
        %1570 = vmatpush1.bf16.msra.mxu0 0
        %1571 = vmatprep.subr.bf16.mxu0 0
        %1572 = vmatpush1.bf16.msra.mxu0 0
        %1573 = vmatprep.mubr.bf16.mxu0 0
        %1574 = vmatmul.mubr.bf16.gmra.mrb[0].mxu0 %v1515
        %v1575 = vpop.f32.mrb[0].mxu0
        %v1576 = vadd.f32 0.0, %v1575
        %v1577 = vpop.f32.mrb[0].mxu0
        %v1578 = vpop.f32.mrb[0].mxu0
        %v1579 = vadd.f32 0.0, %v1578
        %v1580 = vpop.f32.mrb[0].mxu0
        %1581 = vmatprep.mubr.bf16.mxu0 0
        %1582 = vmatmul.mubr.bf16.gmra.mrb[0].mxu0 %v1516
        %v1583 = vpop.f32.mrb[0].mxu0
        %v1584 = vadd.f32 0.0, %v1583
        %v1585 = vpop.f32.mrb[0].mxu0
        %v1586 = vpop.f32.mrb[0].mxu0
        %v1587 = vadd.f32 0.0, %v1586
        %v1588 = vpop.f32.mrb[0].mxu0
        %1589 = vmatprep.mubr.bf16.mxu0 0
        %1590 = vmatmul.mubr.bf16.gmra.mrb[0].mxu0 %v1517
        %v1591 = vpop.f32.mrb[0].mxu0
        %v1592 = vadd.f32 0.0, %v1591
        %v1593 = vpop.f32.mrb[0].mxu0
        %v1594 = vpop.f32.mrb[0].mxu0
        %v1595 = vadd.f32 0.0, %v1594
        %v1596 = vpop.f32.mrb[0].mxu0
        %1597 = vmatprep.mubr.bf16.mxu0 0
        %1598 = vmatmul.mubr.bf16.gmra.mrb[0].mxu0 %v1518
        %v1599 = vpop.f32.mrb[0].mxu0
        %v1600 = vadd.f32 0.0, %v1599
        %v1601 = vpop.f32.mrb[0].mxu0
        %v1602 = vpop.f32.mrb[0].mxu0
        %v1603 = vadd.f32 0.0, %v1602
        %v1604 = vpop.f32.mrb[0].mxu0
        %1605 = vmatprep.mubr.bf16.mxu0 0
        %1606 = vmatmul.mubr.bf16.gmra.mrb[0].mxu0 %v1519
        %v1607 = vpop.f32.mrb[0].mxu0
        %v1608 = vadd.f32 0.0, %v1607
        %v1609 = vpop.f32.mrb[0].mxu0
        %v1610 = vpop.f32.mrb[0].mxu0
        %v1611 = vadd.f32 0.0, %v1610
        %v1612 = vpop.f32.mrb[0].mxu0
        %1613 = vmatprep.mubr.bf16.mxu0 0
        %1614 = vmatmul.mubr.bf16.gmra.mrb[0].mxu0 %v1520
        %v1615 = vpop.f32.mrb[0].mxu0
        %v1616 = vadd.f32 0.0, %v1615
        %v1617 = vpop.f32.mrb[0].mxu0
        %v1618 = vpop.f32.mrb[0].mxu0
        %v1619 = vadd.f32 0.0, %v1618
        %v1620 = vpop.f32.mrb[0].mxu0
        %1621 = vmatprep.mubr.bf16.mxu0 0
        %1622 = vmatmul.mubr.bf16.gmra.mrb[0].mxu0 %v1521
        %v1623 = vpop.f32.mrb[0].mxu0
        %v1624 = vadd.f32 0.0, %v1623
        %v1625 = vpop.f32.mrb[0].mxu0
        %v1626 = vpop.f32.mrb[0].mxu0
        %v1627 = vadd.f32 0.0, %v1626
        %v1628 = vpop.f32.mrb[0].mxu0
        %1629 = vmatprep.mubr.bf16.mxu0 0
        %1630 = vmatmul.mubr.bf16.gmra.mrb[0].mxu0 %v1522
        %v1631 = vpop.f32.mrb[0].mxu0
        %v1632 = vadd.f32 0.0, %v1631
        %v1633 = vpop.f32.mrb[0].mxu0
        %v1634 = vpop.f32.mrb[0].mxu0
        %v1635 = vadd.f32 0.0, %v1634
        %v1636 = vpop.f32.mrb[0].mxu0
        %1637 = vmatprep.mubr.bf16.mxu0 0
        %1638 = vmatmul.mubr.bf16.gmra.mrb[0].mxu0 %v1523
        %v1639 = vpop.f32.mrb[0].mxu0
        %v1640 = vadd.f32 0.0, %v1639
        %v1641 = vpop.f32.mrb[0].mxu0
        %v1642 = vpop.f32.mrb[0].mxu0
        %v1643 = vadd.f32 0.0, %v1642
        %v1644 = vpop.f32.mrb[0].mxu0
        %1645 = vmatprep.mubr.bf16.mxu0 0
        %1646 = vmatmul.mubr.bf16.gmra.mrb[0].mxu0 %v1524
        %v1647 = vpop.f32.mrb[0].mxu0
        %v1648 = vadd.f32 0.0, %v1647
        %v1649 = vpop.f32.mrb[0].mxu0
        %v1650 = vpop.f32.mrb[0].mxu0
        %v1651 = vadd.f32 0.0, %v1650
        %v1652 = vpop.f32.mrb[0].mxu0
        %1653 = vmatprep.mubr.bf16.mxu0 0
        %1654 = vmatmul.mubr.bf16.gmra.mrb[0].mxu0 %v1525
        %v1655 = vpop.f32.mrb[0].mxu0
        %v1656 = vadd.f32 0.0, %v1655
        %v1657 = vpop.f32.mrb[0].mxu0
        %v1658 = vpop.f32.mrb[0].mxu0
        %v1659 = vadd.f32 0.0, %v1658
        %v1660 = vpop.f32.mrb[0].mxu0
        %1661 = vmatprep.mubr.bf16.mxu0 0
        %1662 = vmatmul.mubr.bf16.gmra.mrb[0].mxu0 %v1526
        %v1663 = vpop.f32.mrb[0].mxu0
        %v1664 = vadd.f32 0.0, %v1663
        %v1665 = vpop.f32.mrb[0].mxu0
        %v1666 = vpop.f32.mrb[0].mxu0
        %v1667 = vadd.f32 0.0, %v1666
        %v1668 = vpop.f32.mrb[0].mxu0
        %1669 = vmatprep.mubr.bf16.mxu0 0
        %1670 = vmatmul.mubr.bf16.gmra.mrb[0].mxu0 %v1527
        %v1671 = vpop.f32.mrb[0].mxu0
        %v1672 = vadd.f32 0.0, %v1671
        %v1673 = vpop.f32.mrb[0].mxu0
        %v1674 = vpop.f32.mrb[0].mxu0
        %v1675 = vpop.f32.mrb[0].mxu0
        %1676 = vdwg.mxu0
        %v1677 = vmax.f32 %v1414, %v1576
        %v1678 = vmax.f32 %v1415, %v1579
        %v1679 = vmax.f32 %v1416, %v1584
        %v1680 = vmax.f32 %v1417, %v1587
        %v1681 = vmax.f32 %v1418, %v1592
        %v1682 = vmax.f32 %v1419, %v1595
        %v1683 = vmax.f32 %v1420, %v1600
        %v1684 = vmax.f32 %v1421, %v1603
        %v1685 = vmax.f32 %v1422, %v1608
        %v1686 = vmax.f32 %v1423, %v1611
        %v1687 = vmax.f32 %v1424, %v1616
        %v1688 = vmax.f32 %v1425, %v1619
        %v1689 = vmax.f32 %v1426, %v1624
        %v1690 = vmax.f32 %v1427, %v1627
        %v1691 = vmax.f32 %v1428, %v1632
        %v1692 = vmax.f32 %v1429, %v1635
        %v1693 = vmax.f32 %v1430, %v1640
        %v1694 = vmax.f32 %v1431, %v1643
        %v1695 = vmax.f32 %v1432, %v1648
        %v1696 = vmax.f32 %v1433, %v1651
        %v1697 = vmax.f32 %v1434, %v1656
        %v1698 = vmax.f32 %v1435, %v1659
        %v1699 = vmax.f32 %v1436, %v1664
        %v1700 = vmax.f32 %v1437, %v1667
        %v1701 = vmax.f32 %v1438, %v1672
        %v1702 = vld [vmem:[%s2] sm:$0x1]
        %v1704 = vlaneseq
        %v1705 = vshrl.u32 %v1704, 7
        %v1706 = vsub.s32 0, %v1705
        %v1707 = vrot.slane %v1702, %v1706
        %v1709 = vadd.f32 %v1677, %v1707
        %v1710 = vadd.f32 %v1678, %v1707
        %v1711 = vadd.f32 %v1679, %v1707
        %v1712 = vadd.f32 %v1680, %v1707
        %v1713 = vadd.f32 %v1681, %v1707
        %v1714 = vadd.f32 %v1682, %v1707
        %v1715 = vadd.f32 %v1683, %v1707
        %v1716 = vadd.f32 %v1684, %v1707
        %v1717 = vadd.f32 %v1685, %v1707
        %v1718 = vadd.f32 %v1686, %v1707
        %v1719 = vadd.f32 %v1687, %v1707
        %v1720 = vadd.f32 %v1688, %v1707
        %v1721 = vadd.f32 %v1689, %v1707
        %v1722 = vadd.f32 %v1690, %v1707
        %v1723 = vadd.f32 %v1691, %v1707
        %v1724 = vadd.f32 %v1692, %v1707
        %v1725 = vadd.f32 %v1693, %v1707
        %v1726 = vadd.f32 %v1694, %v1707
        %v1727 = vadd.f32 %v1695, %v1707
        %v1728 = vadd.f32 %v1696, %v1707
        %v1729 = vadd.f32 %v1697, %v1707
        %v1730 = vadd.f32 %v1698, %v1707
        %v1731 = vadd.f32 %v1699, %v1707
        %v1732 = vadd.f32 %v1700, %v1707
        %v1733 = vadd.f32 %v1701, %v1707
        %v1734 = vpack.c.bf16 %v1710, %v1709
        %v1735 = vpack.c.bf16 %v1712, %v1711
        %v1736 = vpack.c.bf16 %v1714, %v1713
        %v1737 = vpack.c.bf16 %v1716, %v1715
        %v1738 = vpack.c.bf16 %v1718, %v1717
        %v1739 = vpack.c.bf16 %v1720, %v1719
        %v1740 = vpack.c.bf16 %v1722, %v1721
        %v1741 = vpack.c.bf16 %v1724, %v1723
        %v1742 = vpack.c.bf16 %v1726, %v1725
        %v1743 = vpack.c.bf16 %v1728, %v1727
        %v1744 = vpack.c.bf16 %v1730, %v1729
        %v1745 = vpack.c.bf16 %v1732, %v1731
        %v1746 = vpack.c.bf16 %v1733, %v1733
        %v1760 = vunpack.c.l.b16 %v1734
        %v1761 = vunpack.c.h.b16 %v1734
        %v1762 = vunpack.c.l.b16 %v1735
        %v1763 = vunpack.c.h.b16 %v1735
        %v1764 = vunpack.c.l.b16 %v1736
        %v1765 = vunpack.c.h.b16 %v1736
        %v1766 = vunpack.c.l.b16 %v1737
        %v1767 = vunpack.c.h.b16 %v1737
        %v1768 = vunpack.c.l.b16 %v1738
        %v1769 = vunpack.c.h.b16 %v1738
        %v1770 = vunpack.c.l.b16 %v1739
        %v1771 = vunpack.c.h.b16 %v1739
        %v1772 = vunpack.c.l.b16 %v1740
        %v1773 = vunpack.c.h.b16 %v1740
        %v1774 = vunpack.c.l.b16 %v1741
        %v1775 = vunpack.c.h.b16 %v1741
        %v1776 = vunpack.c.l.b16 %v1742
        %v1777 = vunpack.c.h.b16 %v1742
        %v1778 = vunpack.c.l.b16 %v1743
        %v1779 = vunpack.c.h.b16 %v1743
        %v1780 = vunpack.c.l.b16 %v1744
        %v1781 = vunpack.c.h.b16 %v1744
        %v1782 = vunpack.c.l.b16 %v1745
        %v1783 = vunpack.c.h.b16 %v1745
        %v1784 = vunpack.c.l.b16 %v1746
        %v1785 = vpack.c.b16 %v1760, %v1760
        %v1786 = vpack.c.b16 %v1761, %v1761
        %v1787 = vpack.c.b16 %v1762, %v1762
        %v1788 = vpack.c.b16 %v1763, %v1763
        %v1789 = vpack.c.b16 %v1764, %v1764
        %v1790 = vpack.c.b16 %v1765, %v1765
        %v1791 = vpack.c.b16 %v1766, %v1766
        %v1792 = vpack.c.b16 %v1767, %v1767
        %v1793 = vpack.c.b16 %v1768, %v1768
        %v1794 = vpack.c.b16 %v1769, %v1769
        %v1795 = vpack.c.b16 %v1770, %v1770
        %v1796 = vpack.c.b16 %v1771, %v1771
        %v1797 = vpack.c.b16 %v1772, %v1772
        %v1798 = vpack.c.b16 %v1773, %v1773
        %v1799 = vpack.c.b16 %v1774, %v1774
        %v1800 = vpack.c.b16 %v1775, %v1775
        %v1801 = vpack.c.b16 %v1776, %v1776
        %v1802 = vpack.c.b16 %v1777, %v1777
        %v1803 = vpack.c.b16 %v1778, %v1778
        %v1804 = vpack.c.b16 %v1779, %v1779
        %v1805 = vpack.c.b16 %v1780, %v1780
        %v1806 = vpack.c.b16 %v1781, %v1781
        %v1807 = vpack.c.b16 %v1782, %v1782
        %v1808 = vpack.c.b16 %v1783, %v1783
        %v1809 = vpack.c.b16 %v1784, %v1784
        %1835 = vst [vmem:[%s609] sm:$0xf] %v1785
        %1836 = vst [vmem:[%s609 + $0x4] sm:$0xf] %v1786
        %1837 = vst [vmem:[%s609 + $0x8] sm:$0xf] %v1787
        %1838 = vst [vmem:[%s609 + $0xc] sm:$0xf] %v1788
        %1839 = vst [vmem:[%s609 + $0x10] sm:$0xf] %v1789
        %1840 = vst [vmem:[%s609 + $0x14] sm:$0xf] %v1790
        %1841 = vst [vmem:[%s609 + $0x18] sm:$0xf] %v1791
        %1842 = vst [vmem:[%s609 + $0x1c] sm:$0xf] %v1792
        %1843 = vst [vmem:[%s609 + $0x20] sm:$0xf] %v1793
        %1844 = vst [vmem:[%s609 + $0x24] sm:$0xf] %v1794
        %1845 = vst [vmem:[%s609 + $0x28] sm:$0xf] %v1795
        %1846 = vst [vmem:[%s609 + $0x2c] sm:$0xf] %v1796
        %1847 = vst [vmem:[%s609 + $0x30] sm:$0xf] %v1797
        %1848 = vst [vmem:[%s609 + $0x34] sm:$0xf] %v1798
        %1849 = vst [vmem:[%s609 + $0x38] sm:$0xf] %v1799
        %1850 = vst [vmem:[%s609 + $0x3c] sm:$0xf] %v1800
        %1851 = vst [vmem:[%s609 + $0x40] sm:$0xf] %v1801
        %1852 = vst [vmem:[%s609 + $0x44] sm:$0xf] %v1802
        %1853 = vst [vmem:[%s609 + $0x48] sm:$0xf] %v1803
        %1854 = vst [vmem:[%s609 + $0x4c] sm:$0xf] %v1804
        %1855 = vst [vmem:[%s609 + $0x50] sm:$0xf] %v1805
        %1856 = vst [vmem:[%s609 + $0x54] sm:$0xf] %v1806
        %1857 = vst [vmem:[%s609 + $0x58] sm:$0xf] %v1807
        %1858 = vst [vmem:[%s609 + $0x5c] sm:$0xf] %v1808
        %1859 = vst [vmem:[%s609 + $0x60] sm:$0xf] %v1809
        %s1860 = smul.u32 25, %s14
        %p1861 = scmp.lt.s32.totalorder %s1860, 49
        %s1862 = scalar_select %p1861, %s1860, 49
        %s1863 = smul.addr %s1862, 4
        %s1864 = scalar_lea.vmem %s3, %s1863
        // Predicated region
        $region74: #{lenet_forward.3} parent=68 // pred_check
          %p1865 = pneg %p100
        $region75: #{lenet_forward.3} parent=68 // pred_check_branch
          %1867 = sbr.rel (%p1865) target = $region77
        $region76: #{lenet_forward.3} parent=68 // pred_region
          %s1868 = smul.u32 25, %s14
        $region77: #{lenet_forward.3} parent=68 // pred_fallthru
          _
      $region69: #{lenet_forward.3} parent=5 // pred_fallthru
        _
      %p1869 = scmp.le.s32.totalorder 2, %s9
      // Predicated region
      $region78: #{lenet_forward.3} parent=5 // pred_check
        %p1870 = pneg %p1869
      $region79: #{lenet_forward.3} parent=5 // pred_check_branch
        %1872 = sbr.rel (%p1870) target = $region81
      $region80: #{lenet_forward.3} parent=5 // pred_region
        %s1873 = ssub.s32 %s9, 2
        // Predicated region
        $region82: #{lenet_forward.3} parent=80 // pred_check
          %p1874 = pneg %p106
        $region83: #{lenet_forward.3} parent=80 // pred_check_branch
          %1876 = sbr.rel (%p1874) target = $region85
        $region84: #{lenet_forward.3} parent=80 // pred_region
          %s1877 = smul.u32 25, %s15
          %p1878 = scmp.lt.s32.totalorder %s1877, 49
          %s1879 = scalar_select %p1878, %s1877, 49
          %s1880 = smul.addr %s1879, 4
          %s1881 = scalar_lea.vmem %s3, %s1880
        $region85: #{lenet_forward.3} parent=80 // pred_fallthru
          _
      $region81: #{lenet_forward.3} parent=5 // pred_fallthru
        _
    $region6: #{lenet_forward.3} parent=1 // loop_footer
      %s13 = sadd.s32 1, %s9
    $region7: #{lenet_forward.3} parent=1 // loop_footer_branch
      %8 = sbr.rel target = $region3
    $region8: #{lenet_forward.3} parent=1 // loop_exit
      _

// kernel: lenet_forward.4
$region0: #{lenet_forward.4}
  #allocation0 [shape = 'u32[]', space=smem, size = 0x4, offset = 0x4, fixed_abs, tag = 'smem constant byte address 0x4 - core index']
  #allocation1 [shape = 'u32[144,128]{1,0:T(1,128)}', space=vmem, size = 0x12000, scoped, tag = 'internal scratch']
  %s0 = inlined_call_operand.vmem [shape: bf16[4,64,512], index: 0, kind: input, shape index: {}]
  %s1 = inlined_call_operand.vmem [shape: bf16[512,128], index: 1, kind: input, shape index: {}]
  %s2 = inlined_call_operand.vmem [shape: f32[1,128], index: 2, kind: input, shape index: {}]
  %s3 = inlined_call_operand.vmem [shape: bf16[64,128], index: 3, kind: output, shape index: {}]
  %s4 = sld [smem:[#allocation0]]
  $region68: #{lenet_forward.4} parent=0
    _
  %s6 = ssub.s32 1, %s4
  %s7 = scalar_select 0, %s6, %s4
  $region1: #{lenet_forward.4} parent=0
    #allocation2 [shape = 'u8[262144]{0}', space=vmem, size = 0x40000, scoped, tag = 'input window, operand 0']
    loop: start=0, step=1, limit=4
    $region2: #{lenet_forward.4} parent=1 // loop_pre_header
      _
    $region3: #{lenet_forward.4} parent=1 // loop_header
      %s9 = sphi 0, %s13
      %p10 = scmp.ge.s32.totalorder %s9, 4
      %s19 = sphi 0, %s21
      %s22 = sphi 0, %s19
      %s23 = sphi 0, %s22
      %s39 = sphi 0, %s23
      %s43 = sphi 0, %s43
      %s45 = sphi 0, %s43
      %s46 = sphi 0, %s45
      %s60 = sphi 0, %s46
      %s64 = sphi 0, %s64
      %s66 = sphi 0, %s64
      %s67 = sphi 0, %s66
      %s81 = sphi 0, %s67
      %s87 = sphi 0, %s89
      %s90 = sphi 0, %s87
      %s91 = sphi 0, %s90
      %s107 = sphi 0, %s91
    $region4: #{lenet_forward.4} parent=1 // loop_header_branch
      %12 = sbr.rel (%p10) target = $region8
    $region5: #{lenet_forward.4} parent=1 // loop_body
      %s14 = ssub.s32 %s9, 1
      %s15 = ssub.s32 %s9, 2
      %s16 = sadd.s32 %s9, 1
      %s17 = ssub.s32 %s9, %s16
      %p18 = scmp.eq.s32.totalorder %s17, 0
      %s20 = sadd.s32 %s19, 1
      %s21 = scalar_select %p18, %s19, %s20
      %p24 = pneg %p18
      %p25 = scmp.eq.s32.totalorder %s9, 1
      %p26 = por %p24, %p25
      %p27 = scmp.ne.s32.totalorder %s19, %s22
      %p28 = scmp.eq.s32.totalorder %s9, 0
      %p29 = por %p27, %p28
      %p30 = scmp.ne.s32.totalorder %s19, %s22
      %p31 = scmp.eq.s32.totalorder %s14, 1
      %p32 = por %p30, %p31
      %p33 = scmp.ne.s32.totalorder %s22, %s23
      %p34 = scmp.eq.s32.totalorder %s14, 0
      %p35 = por %p33, %p34
      %p36 = scmp.ne.s32.totalorder %s22, %s23
      %p37 = scmp.eq.s32.totalorder %s15, 1
      %p38 = por %p36, %p37
      %p40 = scmp.ne.s32.totalorder %s23, %s39
      %p41 = scmp.eq.s32.totalorder %s15, 0
      %p42 = por %p40, %p41
      %s44 = sadd.s32 %s43, 1
      %p47 = scmp.eq.s32.totalorder %s9, 1
      %p48 = scmp.ne.s32.totalorder %s43, %s45
      %p49 = scmp.eq.s32.totalorder %s9, 0
      %p50 = por %p48, %p49
      %p51 = scmp.ne.s32.totalorder %s43, %s45
      %p52 = scmp.eq.s32.totalorder %s14, 1
      %p53 = por %p51, %p52
      %p54 = scmp.ne.s32.totalorder %s45, %s46
      %p55 = scmp.eq.s32.totalorder %s14, 0
      %p56 = por %p54, %p55
      %p57 = scmp.ne.s32.totalorder %s45, %s46
      %p58 = scmp.eq.s32.totalorder %s15, 1
      %p59 = por %p57, %p58
      %p61 = scmp.ne.s32.totalorder %s46, %s60
      %p62 = scmp.eq.s32.totalorder %s15, 0
      %p63 = por %p61, %p62
      %s65 = sadd.s32 %s64, 1
      %p68 = scmp.eq.s32.totalorder %s9, 1
      %p69 = scmp.ne.s32.totalorder %s64, %s66
      %p70 = scmp.eq.s32.totalorder %s9, 0
      %p71 = por %p69, %p70
      %p72 = scmp.ne.s32.totalorder %s64, %s66
      %p73 = scmp.eq.s32.totalorder %s14, 1
      %p74 = por %p72, %p73
      %p75 = scmp.ne.s32.totalorder %s66, %s67
      %p76 = scmp.eq.s32.totalorder %s14, 0
      %p77 = por %p75, %p76
      %p78 = scmp.ne.s32.totalorder %s66, %s67
      %p79 = scmp.eq.s32.totalorder %s15, 1
      %p80 = por %p78, %p79
      %p82 = scmp.ne.s32.totalorder %s67, %s81
      %p83 = scmp.eq.s32.totalorder %s15, 0
      %p84 = por %p82, %p83
      %s85 = ssub.s32 %s9, %s16
      %p86 = scmp.eq.s32.totalorder %s85, 0
      %s88 = sadd.s32 %s87, 1
      %s89 = scalar_select %p86, %s87, %s88
      %p92 = pneg %p86
      %p93 = scmp.eq.s32.totalorder %s9, 1
      %p94 = por %p92, %p93
      %p95 = scmp.ne.s32.totalorder %s87, %s90
      %p96 = scmp.eq.s32.totalorder %s9, 0
      %p97 = por %p95, %p96
      %p98 = scmp.ne.s32.totalorder %s87, %s90
      %p99 = scmp.eq.s32.totalorder %s14, 1
      %p100 = por %p98, %p99
      %p101 = scmp.ne.s32.totalorder %s90, %s91
      %p102 = scmp.eq.s32.totalorder %s14, 0
      %p103 = por %p101, %p102
      %p104 = scmp.ne.s32.totalorder %s90, %s91
      %p105 = scmp.eq.s32.totalorder %s15, 1
      %p106 = por %p104, %p105
      %p108 = scmp.ne.s32.totalorder %s91, %s107
      %p109 = scmp.eq.s32.totalorder %s15, 0
      %p110 = por %p108, %p109
      %p111 = scmp.le.s32.totalorder 1, %s9
      %p112 = scmp.lt.s32.totalorder %s9, 3
      %p113 = pnand %p111, %p112
      %p114 = pneg %p113
      // Predicated region
      $region9: #{lenet_forward.4} parent=5 // pred_check
        _
      $region10: #{lenet_forward.4} parent=5 // pred_check_branch
        %116 = sbr.rel (%p113) target = $region12
      $region11: #{lenet_forward.4} parent=5 // pred_region
        %s117 = ssub.s32 %s9, 1
        // Predicated region
        $region13: #{lenet_forward.4} parent=11 // pred_check
          %p118 = pneg %p56
        $region14: #{lenet_forward.4} parent=11 // pred_check_branch
          %120 = sbr.rel (%p118) target = $region16
        $region15: #{lenet_forward.4} parent=11 // pred_region
          _
        $region16: #{lenet_forward.4} parent=11 // pred_fallthru
          _
        // Predicated region
        $region17: #{lenet_forward.4} parent=11 // pred_check
          %p121 = pneg %p77
        $region18: #{lenet_forward.4} parent=11 // pred_check_branch
          %123 = sbr.rel (%p121) target = $region20
        $region19: #{lenet_forward.4} parent=11 // pred_region
          _
        $region20: #{lenet_forward.4} parent=11 // pred_fallthru
          _
      $region12: #{lenet_forward.4} parent=5 // pred_fallthru
        _
      %p124 = scmp.lt.s32.totalorder %s9, 2
      // Predicated region
      $region21: #{lenet_forward.4} parent=5 // pred_check
        %p125 = pneg %p124
      $region22: #{lenet_forward.4} parent=5 // pred_check_branch
        %127 = sbr.rel (%p125) target = $region24
      $region23: #{lenet_forward.4} parent=5 // pred_region
        // Predicated region
        $region25: #{lenet_forward.4} parent=23 // pred_check
          %p128 = pneg %p29
        $region26: #{lenet_forward.4} parent=23 // pred_check_branch
          %130 = sbr.rel (%p128) target = $region28
        $region27: #{lenet_forward.4} parent=23 // pred_region
          %s131 = sand.u32 %s19, 1
          %s132 = sand.u32 %s19, 1
          %s133 = smul.addr %s132, 256
          %s134 = scalar_lea.vmem [#allocation2], %s133
          %s135 = smul.u32 4, %s9
          %s136 = smul.addr %s135, 4
          %s137 = smul.addr %s136, 4
          %s138 = scalar_lea.vmem %s0, %s137
          // Predicated region
          $region29: #{lenet_forward.4} parent=27 // pred_check
            _
          $region30: #{lenet_forward.4} parent=27 // pred_check_branch
            %140 = sbr.rel (0) target = $region32
          $region31: #{lenet_forward.4} parent=27 // pred_region
            // Predicated region
            $region33: #{lenet_forward.4} parent=31 // pred_check
              _
            $region34: #{lenet_forward.4} parent=31 // pred_check_branch
              %142 = sbr.rel (0) target = $region36
            $region35: #{lenet_forward.4} parent=31 // pred_region
              loop: start=0, step=1, limit=1
              $region37: #{lenet_forward.4} parent=35 // loop_pre_header
                _
              $region38: #{lenet_forward.4} parent=35 // loop_header
                %s144 = sphi 0, %s148
                %p145 = scmp.ge.s32.totalorder %s144, 1
                %s149 = sphi %s138, %s138
                %s150 = sphi %s134, %s134
              $region39: #{lenet_forward.4} parent=35 // loop_header_branch
                %147 = sbr.rel (%p145) target = $region43
              $region40: #{lenet_forward.4} parent=35 // loop_body
                %v151 = vld [vmem:[%s149] sm:$0xff]
                %152 = vst [vmem:[%s150] sm:$0xff] %v151
                %v153 = vld [vmem:[%s149 + $0x8] sm:$0xff]
                %154 = vst [vmem:[%s150 + $0x8] sm:$0xff] %v153
                %v155 = vld [vmem:[%s149 + $0x10] sm:$0xff]
                %156 = vst [vmem:[%s150 + $0x10] sm:$0xff] %v155
                %v157 = vld [vmem:[%s149 + $0x18] sm:$0xff]
                %158 = vst [vmem:[%s150 + $0x18] sm:$0xff] %v157
                %v159 = vld [vmem:[%s149 + $0x20] sm:$0xff]
                %160 = vst [vmem:[%s150 + $0x20] sm:$0xff] %v159
                %v161 = vld [vmem:[%s149 + $0x28] sm:$0xff]
                %162 = vst [vmem:[%s150 + $0x28] sm:$0xff] %v161
                %v163 = vld [vmem:[%s149 + $0x30] sm:$0xff]
                %164 = vst [vmem:[%s150 + $0x30] sm:$0xff] %v163
                %v165 = vld [vmem:[%s149 + $0x38] sm:$0xff]
                %166 = vst [vmem:[%s150 + $0x38] sm:$0xff] %v165
                %v167 = vld [vmem:[%s149 + $0x80] sm:$0xff]
                %168 = vst [vmem:[%s150 + $0x40] sm:$0xff] %v167
                %v169 = vld [vmem:[%s149 + $0x88] sm:$0xff]
                %170 = vst [vmem:[%s150 + $0x48] sm:$0xff] %v169
                %v171 = vld [vmem:[%s149 + $0x90] sm:$0xff]
                %172 = vst [vmem:[%s150 + $0x50] sm:$0xff] %v171
                %v173 = vld [vmem:[%s149 + $0x98] sm:$0xff]
                %174 = vst [vmem:[%s150 + $0x58] sm:$0xff] %v173
                %v175 = vld [vmem:[%s149 + $0xa0] sm:$0xff]
                %176 = vst [vmem:[%s150 + $0x60] sm:$0xff] %v175
                %v177 = vld [vmem:[%s149 + $0xa8] sm:$0xff]
                %178 = vst [vmem:[%s150 + $0x68] sm:$0xff] %v177
                %v179 = vld [vmem:[%s149 + $0xb0] sm:$0xff]
                %180 = vst [vmem:[%s150 + $0x70] sm:$0xff] %v179
                %v181 = vld [vmem:[%s149 + $0xb8] sm:$0xff]
                %182 = vst [vmem:[%s150 + $0x78] sm:$0xff] %v181
                %v183 = vld [vmem:[%s149 + $0x100] sm:$0xff]
                %184 = vst [vmem:[%s150 + $0x80] sm:$0xff] %v183
                %v185 = vld [vmem:[%s149 + $0x108] sm:$0xff]
                %186 = vst [vmem:[%s150 + $0x88] sm:$0xff] %v185
                %v187 = vld [vmem:[%s149 + $0x110] sm:$0xff]
                %188 = vst [vmem:[%s150 + $0x90] sm:$0xff] %v187
                %v189 = vld [vmem:[%s149 + $0x118] sm:$0xff]
                %190 = vst [vmem:[%s150 + $0x98] sm:$0xff] %v189
                %v191 = vld [vmem:[%s149 + $0x120] sm:$0xff]
                %192 = vst [vmem:[%s150 + $0xa0] sm:$0xff] %v191
                %v193 = vld [vmem:[%s149 + $0x128] sm:$0xff]
                %194 = vst [vmem:[%s150 + $0xa8] sm:$0xff] %v193
                %v195 = vld [vmem:[%s149 + $0x130] sm:$0xff]
                %196 = vst [vmem:[%s150 + $0xb0] sm:$0xff] %v195
                %v197 = vld [vmem:[%s149 + $0x138] sm:$0xff]
                %198 = vst [vmem:[%s150 + $0xb8] sm:$0xff] %v197
                %v199 = vld [vmem:[%s149 + $0x180] sm:$0xff]
                %200 = vst [vmem:[%s150 + $0xc0] sm:$0xff] %v199
                %v201 = vld [vmem:[%s149 + $0x188] sm:$0xff]
                %202 = vst [vmem:[%s150 + $0xc8] sm:$0xff] %v201
                %v203 = vld [vmem:[%s149 + $0x190] sm:$0xff]
                %204 = vst [vmem:[%s150 + $0xd0] sm:$0xff] %v203
                %v205 = vld [vmem:[%s149 + $0x198] sm:$0xff]
                %206 = vst [vmem:[%s150 + $0xd8] sm:$0xff] %v205
                %v207 = vld [vmem:[%s149 + $0x1a0] sm:$0xff]
                %208 = vst [vmem:[%s150 + $0xe0] sm:$0xff] %v207
                %v209 = vld [vmem:[%s149 + $0x1a8] sm:$0xff]
                %210 = vst [vmem:[%s150 + $0xe8] sm:$0xff] %v209
                %v211 = vld [vmem:[%s149 + $0x1b0] sm:$0xff]
                %212 = vst [vmem:[%s150 + $0xf0] sm:$0xff] %v211
                %v213 = vld [vmem:[%s149 + $0x1b8] sm:$0xff]
                %214 = vst [vmem:[%s150 + $0xf8] sm:$0xff] %v213
              $region41: #{lenet_forward.4} parent=35 // loop_footer
                %s148 = sadd.s32 1, %s144
              $region42: #{lenet_forward.4} parent=35 // loop_footer_branch
                %143 = sbr.rel target = $region38
              $region43: #{lenet_forward.4} parent=35 // loop_exit
                _
            $region36: #{lenet_forward.4} parent=31 // pred_fallthru
              _
            // Predicated region
            $region44: #{lenet_forward.4} parent=31 // pred_check
              _
            $region45: #{lenet_forward.4} parent=31 // pred_check_branch
              %216 = sbr.rel target = $region47
            $region46: #{lenet_forward.4} parent=31 // pred_region
              _
            $region47: #{lenet_forward.4} parent=31 // pred_fallthru
              _
          $region32: #{lenet_forward.4} parent=27 // pred_fallthru
            _
          %217 = vnop
        $region28: #{lenet_forward.4} parent=23 // pred_fallthru
          _
      $region24: #{lenet_forward.4} parent=5 // pred_fallthru
        _
      %p218 = scmp.le.s32.totalorder 1, %s9
      %p219 = scmp.lt.s32.totalorder %s9, 3
      %p220 = pnand %p218, %p219
      %p221 = pneg %p220
      // Predicated region
      $region48: #{lenet_forward.4} parent=5 // pred_check
        _
      $region49: #{lenet_forward.4} parent=5 // pred_check_branch
        %223 = sbr.rel (%p220) target = $region51
      $region50: #{lenet_forward.4} parent=5 // pred_region
        %s224 = ssub.s32 %s9, 1
        %s225 = sand.u32 %s22, 1
        %s226 = sand.u32 %s22, 1
        %s227 = smul.addr %s226, 256
        %s228 = scalar_lea.vmem [#allocation2], %s227
        // Predicated region
        $region52: #{lenet_forward.4} parent=50 // pred_check
          %p229 = pneg %p35
        $region53: #{lenet_forward.4} parent=50 // pred_check_branch
          %231 = sbr.rel (%p229) target = $region55
        $region54: #{lenet_forward.4} parent=50 // pred_region
          _
        $region55: #{lenet_forward.4} parent=50 // pred_fallthru
          _
        %s232 = sand.u32 %s22, 1
        %s233 = sand.u32 %s22, 1
        %s234 = smul.addr %s233, 256
        %s235 = scalar_lea.vmem [#allocation2], %s234
        %p236 = pneg %p35
        %p237 = pneg %p32
        %p238 = pneg %p56
        %p239 = pneg %p53
        %p240 = pneg %p77
        %p241 = pneg %p74
        %p242 = pneg %p103
        %p243 = pneg %p100
        %s244 = smul.u32 4, %s14
        %p245 = scmp.lt.s32.totalorder %s244, 7
        %s246 = scalar_select %p245, %s244, 7
        %s247 = smul.addr %s246, 4
        %s248 = scalar_lea.vmem %s3, %s247
        %s249 = smul.u32 4, %s14
        %s250 = smul.u32 4, %s14
        %p251 = scmp.lt.s32.totalorder %s250, 7
        %s252 = scalar_select %p251, %s250, 7
        %s253 = smul.addr %s252, 4
        %s254 = scalar_lea.vmem %s3, %s253
        %s255 = smul.u32 4, %s14
        %v257 = vld [vmem:[%s1] sm:$0xf]
        %v258 = vld [vmem:[%s1 + $0x4] sm:$0xf]
        %v259 = vld [vmem:[%s1 + $0x8] sm:$0xf]
        %v260 = vld [vmem:[%s1 + $0xc] sm:$0xf]
        %v261 = vld [vmem:[%s1 + $0x10] sm:$0xf]
        %v262 = vld [vmem:[%s1 + $0x14] sm:$0xf]
        %v263 = vld [vmem:[%s1 + $0x18] sm:$0xf]
        %v264 = vld [vmem:[%s1 + $0x1c] sm:$0xf]
        %v265 = vld [vmem:[%s1 + $0x20] sm:$0xf]
        %v266 = vld [vmem:[%s1 + $0x24] sm:$0xf]
        %v267 = vld [vmem:[%s1 + $0x28] sm:$0xf]
        %v268 = vld [vmem:[%s1 + $0x2c] sm:$0xf]
        %v269 = vld [vmem:[%s1 + $0x30] sm:$0xf]
        %v270 = vld [vmem:[%s1 + $0x34] sm:$0xf]
        %v271 = vld [vmem:[%s1 + $0x38] sm:$0xf]
        %v272 = vld [vmem:[%s1 + $0x3c] sm:$0xf]
        %v273 = vld [vmem:[%s1 + $0x40] sm:$0xf]
        %v274 = vld [vmem:[%s1 + $0x44] sm:$0xf]
        %v275 = vld [vmem:[%s1 + $0x48] sm:$0xf]
        %v276 = vld [vmem:[%s1 + $0x4c] sm:$0xf]
        %v277 = vld [vmem:[%s1 + $0x50] sm:$0xf]
        %v278 = vld [vmem:[%s1 + $0x54] sm:$0xf]
        %v279 = vld [vmem:[%s1 + $0x58] sm:$0xf]
        %v280 = vld [vmem:[%s1 + $0x5c] sm:$0xf]
        %v281 = vld [vmem:[%s1 + $0x60] sm:$0xf]
        %v282 = vld [vmem:[%s1 + $0x64] sm:$0xf]
        %v283 = vld [vmem:[%s1 + $0x68] sm:$0xf]
        %v284 = vld [vmem:[%s1 + $0x6c] sm:$0xf]
        %v285 = vld [vmem:[%s1 + $0x70] sm:$0xf]
        %v286 = vld [vmem:[%s1 + $0x74] sm:$0xf]
        %v287 = vld [vmem:[%s1 + $0x78] sm:$0xf]
        %v288 = vld [vmem:[%s1 + $0x7c] sm:$0xf]
        %v289 = vld [vmem:[%s1 + $0x80] sm:$0xf]
        %v290 = vld [vmem:[%s1 + $0x84] sm:$0xf]
        %v291 = vld [vmem:[%s1 + $0x88] sm:$0xf]
        %v292 = vld [vmem:[%s1 + $0x8c] sm:$0xf]
        %v293 = vld [vmem:[%s1 + $0x90] sm:$0xf]
        %v294 = vld [vmem:[%s1 + $0x94] sm:$0xf]
        %v295 = vld [vmem:[%s1 + $0x98] sm:$0xf]
        %v296 = vld [vmem:[%s1 + $0x9c] sm:$0xf]
        %v297 = vld [vmem:[%s1 + $0xa0] sm:$0xf]
        %v298 = vld [vmem:[%s1 + $0xa4] sm:$0xf]
        %v299 = vld [vmem:[%s1 + $0xa8] sm:$0xf]
        %v300 = vld [vmem:[%s1 + $0xac] sm:$0xf]
        %v301 = vld [vmem:[%s1 + $0xb0] sm:$0xf]
        %v302 = vld [vmem:[%s1 + $0xb4] sm:$0xf]
        %v303 = vld [vmem:[%s1 + $0xb8] sm:$0xf]
        %v304 = vld [vmem:[%s1 + $0xbc] sm:$0xf]
        %v305 = vld [vmem:[%s1 + $0xc0] sm:$0xf]
        %v306 = vld [vmem:[%s1 + $0xc4] sm:$0xf]
        %v307 = vld [vmem:[%s1 + $0xc8] sm:$0xf]
        %v308 = vld [vmem:[%s1 + $0xcc] sm:$0xf]
        %v309 = vld [vmem:[%s1 + $0xd0] sm:$0xf]
        %v310 = vld [vmem:[%s1 + $0xd4] sm:$0xf]
        %v311 = vld [vmem:[%s1 + $0xd8] sm:$0xf]
        %v312 = vld [vmem:[%s1 + $0xdc] sm:$0xf]
        %v313 = vld [vmem:[%s1 + $0xe0] sm:$0xf]
        %v314 = vld [vmem:[%s1 + $0xe4] sm:$0xf]
        %v315 = vld [vmem:[%s1 + $0xe8] sm:$0xf]
        %v316 = vld [vmem:[%s1 + $0xec] sm:$0xf]
        %v317 = vld [vmem:[%s1 + $0xf0] sm:$0xf]
        %v318 = vld [vmem:[%s1 + $0xf4] sm:$0xf]
        %v319 = vld [vmem:[%s1 + $0xf8] sm:$0xf]
        %v320 = vld [vmem:[%s1 + $0xfc] sm:$0xf]
        %v321 = vld [vmem:[%s228] sm:$0xff]
        %v322 = vld [vmem:[%s228 + $0x8] sm:$0xff]
        %v323 = vld [vmem:[%s228 + $0x10] sm:$0xff]
        %v324 = vld [vmem:[%s228 + $0x18] sm:$0xff]
        %v325 = vld [vmem:[%s228 + $0x20] sm:$0xff]
        %v326 = vld [vmem:[%s228 + $0x28] sm:$0xff]
        %v327 = vld [vmem:[%s228 + $0x30] sm:$0xff]
        %v328 = vld [vmem:[%s228 + $0x38] sm:$0xff]
        %v337 = vunpack.c.l.b16 %v321
        %v338 = vunpack.c.h.b16 %v321
        %v339 = vunpack.c.l.b16 %v322
        %v340 = vunpack.c.h.b16 %v322
        %v341 = vunpack.c.l.b16 %v323
        %v342 = vunpack.c.h.b16 %v323
        %v343 = vunpack.c.l.b16 %v324
        %v344 = vunpack.c.h.b16 %v324
        %v345 = vunpack.c.l.b16 %v325
        %v346 = vunpack.c.h.b16 %v325
        %v347 = vunpack.c.l.b16 %v326
        %v348 = vunpack.c.h.b16 %v326
        %v349 = vunpack.c.l.b16 %v327
        %v350 = vunpack.c.h.b16 %v327
        %v351 = vunpack.c.l.b16 %v328
        %v352 = vunpack.c.h.b16 %v328
        %v353 = vpack.c.b16 %v341, %v337
        %v354 = vpack.c.b16 %v342, %v338
        %v355 = vpack.c.b16 %v343, %v339
        %v356 = vpack.c.b16 %v344, %v340
        %v357 = vpack.c.b16 %v349, %v345
        %v358 = vpack.c.b16 %v350, %v346
        %v359 = vpack.c.b16 %v351, %v347
        %v360 = vpack.c.b16 %v352, %v348
        %v433 = vunpack.c.l.b16 %v257
        %v434 = vunpack.c.l.b16 %v258
        %v435 = vunpack.c.l.b16 %v259
        %v436 = vunpack.c.l.b16 %v260
        %v437 = vunpack.c.l.b16 %v261
        %v438 = vunpack.c.l.b16 %v262
        %v439 = vunpack.c.l.b16 %v263
        %v440 = vunpack.c.l.b16 %v264
        %v441 = vunpack.c.l.b16 %v265
        %v442 = vunpack.c.l.b16 %v266
        %v443 = vunpack.c.l.b16 %v267
        %v444 = vunpack.c.l.b16 %v268
        %v445 = vunpack.c.l.b16 %v269
        %v446 = vunpack.c.l.b16 %v270
        %v447 = vunpack.c.l.b16 %v271
        %v448 = vunpack.c.l.b16 %v272
        %v449 = vunpack.c.l.b16 %v273
        %v450 = vunpack.c.l.b16 %v274
        %v451 = vunpack.c.l.b16 %v275
        %v452 = vunpack.c.l.b16 %v276
        %v453 = vunpack.c.l.b16 %v277
        %v454 = vunpack.c.l.b16 %v278
        %v455 = vunpack.c.l.b16 %v279
        %v456 = vunpack.c.l.b16 %v280
        %v457 = vunpack.c.l.b16 %v281
        %v458 = vunpack.c.l.b16 %v282
        %v459 = vunpack.c.l.b16 %v283
        %v460 = vunpack.c.l.b16 %v284
        %v461 = vunpack.c.l.b16 %v285
        %v462 = vunpack.c.l.b16 %v286
        %v463 = vunpack.c.l.b16 %v287
        %v464 = vunpack.c.l.b16 %v288
        %v465 = vunpack.c.l.b16 %v289
        %v466 = vunpack.c.l.b16 %v290
        %v467 = vunpack.c.l.b16 %v291
        %v468 = vunpack.c.l.b16 %v292
        %v469 = vunpack.c.l.b16 %v293
        %v470 = vunpack.c.l.b16 %v294
        %v471 = vunpack.c.l.b16 %v295
        %v472 = vunpack.c.l.b16 %v296
        %v473 = vunpack.c.l.b16 %v297
        %v474 = vunpack.c.l.b16 %v298
        %v475 = vunpack.c.l.b16 %v299
        %v476 = vunpack.c.l.b16 %v300
        %v477 = vunpack.c.l.b16 %v301
        %v478 = vunpack.c.l.b16 %v302
        %v479 = vunpack.c.l.b16 %v303
        %v480 = vunpack.c.l.b16 %v304
        %v481 = vunpack.c.l.b16 %v305
        %v482 = vunpack.c.l.b16 %v306
        %v483 = vunpack.c.l.b16 %v307
        %v484 = vunpack.c.l.b16 %v308
        %v485 = vunpack.c.l.b16 %v309
        %v486 = vunpack.c.l.b16 %v310
        %v487 = vunpack.c.l.b16 %v311
        %v488 = vunpack.c.l.b16 %v312
        %v489 = vunpack.c.l.b16 %v313
        %v490 = vunpack.c.l.b16 %v314
        %v491 = vunpack.c.l.b16 %v315
        %v492 = vunpack.c.l.b16 %v316
        %v493 = vunpack.c.l.b16 %v317
        %v494 = vunpack.c.l.b16 %v318
        %v495 = vunpack.c.l.b16 %v319
        %v496 = vunpack.c.l.b16 %v320
        %v497 = vpack.c.b16 %v434, %v433
        %v498 = vpack.c.b16 %v436, %v435
        %v499 = vpack.c.b16 %v438, %v437
        %v500 = vpack.c.b16 %v440, %v439
        %v501 = vpack.c.b16 %v442, %v441
        %v502 = vpack.c.b16 %v444, %v443
        %v503 = vpack.c.b16 %v446, %v445
        %v504 = vpack.c.b16 %v448, %v447
        %v505 = vpack.c.b16 %v450, %v449
        %v506 = vpack.c.b16 %v452, %v451
        %v507 = vpack.c.b16 %v454, %v453
        %v508 = vpack.c.b16 %v456, %v455
        %v509 = vpack.c.b16 %v458, %v457
        %v510 = vpack.c.b16 %v460, %v459
        %v511 = vpack.c.b16 %v462, %v461
        %v512 = vpack.c.b16 %v464, %v463
        %v513 = vpack.c.b16 %v466, %v465
        %v514 = vpack.c.b16 %v468, %v467
        %v515 = vpack.c.b16 %v470, %v469
        %v516 = vpack.c.b16 %v472, %v471
        %v517 = vpack.c.b16 %v474, %v473
        %v518 = vpack.c.b16 %v476, %v475
        %v519 = vpack.c.b16 %v478, %v477
        %v520 = vpack.c.b16 %v480, %v479
        %v521 = vpack.c.b16 %v482, %v481
        %v522 = vpack.c.b16 %v484, %v483
        %v523 = vpack.c.b16 %v486, %v485
        %v524 = vpack.c.b16 %v488, %v487
        %v525 = vpack.c.b16 %v490, %v489
        %v526 = vpack.c.b16 %v492, %v491
        %v527 = vpack.c.b16 %v494, %v493
        %v528 = vpack.c.b16 %v496, %v495
        %561 = vmatprep.subr.bf16.mxu0 0
        %562 = vmatpush1.bf16.msra.mxu0 %v497
        %563 = vmatprep.subr.bf16.mxu0 0
        %564 = vmatpush1.bf16.msra.mxu0 %v498
        %565 = vmatprep.subr.bf16.mxu0 0
        %566 = vmatpush1.bf16.msra.mxu0 %v499
        %567 = vmatprep.subr.bf16.mxu0 0
        %568 = vmatpush1.bf16.msra.mxu0 %v500
        %569 = vmatprep.subr.bf16.mxu0 0
        %570 = vmatpush1.bf16.msra.mxu0 %v501
        %571 = vmatprep.subr.bf16.mxu0 0
        %572 = vmatpush1.bf16.msra.mxu0 %v502
        %573 = vmatprep.subr.bf16.mxu0 0
        %574 = vmatpush1.bf16.msra.mxu0 %v503
        %575 = vmatprep.subr.bf16.mxu0 0
        %576 = vmatpush1.bf16.msra.mxu0 %v504
        %577 = vmatprep.subr.bf16.mxu0 0
        %578 = vmatpush1.bf16.msra.mxu0 %v505
        %579 = vmatprep.subr.bf16.mxu0 0
        %580 = vmatpush1.bf16.msra.mxu0 %v506
        %581 = vmatprep.subr.bf16.mxu0 0
        %582 = vmatpush1.bf16.msra.mxu0 %v507
        %583 = vmatprep.subr.bf16.mxu0 0
        %584 = vmatpush1.bf16.msra.mxu0 %v508
        %585 = vmatprep.subr.bf16.mxu0 0
        %586 = vmatpush1.bf16.msra.mxu0 %v509
        %587 = vmatprep.subr.bf16.mxu0 0
        %588 = vmatpush1.bf16.msra.mxu0 %v510
        %589 = vmatprep.subr.bf16.mxu0 0
        %590 = vmatpush1.bf16.msra.mxu0 %v511
        %591 = vmatprep.subr.bf16.mxu0 0
        %592 = vmatpush1.bf16.msra.mxu0 %v512
        %593 = vmatprep.mubr.bf16.mxu0 %v354
        %594 = vmatmul.mubr.bf16.gmra.mrb[0].mxu0 %v353
        %v595 = vpop.f32.mrb[0].mxu0
        %v596 = vadd.f32 0.0, %v595
        %v597 = vpop.f32.mrb[0].mxu0
        %v598 = vpop.f32.mrb[0].mxu0
        %v599 = vadd.f32 0.0, %v598
        %v600 = vpop.f32.mrb[0].mxu0
        %601 = vmatprep.mubr.bf16.mxu0 %v358
        %602 = vmatmul.mubr.bf16.gmra.mrb[0].mxu0 %v357
        %v603 = vpop.f32.mrb[0].mxu0
        %v604 = vadd.f32 0.0, %v603
        %v605 = vpop.f32.mrb[0].mxu0
        %v606 = vpop.f32.mrb[0].mxu0
        %v607 = vadd.f32 0.0, %v606
        %v608 = vpop.f32.mrb[0].mxu0
        %609 = vdwg.mxu0
        %610 = vmatprep.subr.bf16.mxu0 0
        %611 = vmatpush1.bf16.msra.mxu0 %v513
        %612 = vmatprep.subr.bf16.mxu0 0
        %613 = vmatpush1.bf16.msra.mxu0 %v514
        %614 = vmatprep.subr.bf16.mxu0 0
        %615 = vmatpush1.bf16.msra.mxu0 %v515
        %616 = vmatprep.subr.bf16.mxu0 0
        %617 = vmatpush1.bf16.msra.mxu0 %v516
        %618 = vmatprep.subr.bf16.mxu0 0
        %619 = vmatpush1.bf16.msra.mxu0 %v517
        %620 = vmatprep.subr.bf16.mxu0 0
        %621 = vmatpush1.bf16.msra.mxu0 %v518
        %622 = vmatprep.subr.bf16.mxu0 0
        %623 = vmatpush1.bf16.msra.mxu0 %v519
        %624 = vmatprep.subr.bf16.mxu0 0
        %625 = vmatpush1.bf16.msra.mxu0 %v520
        %626 = vmatprep.subr.bf16.mxu0 0
        %627 = vmatpush1.bf16.msra.mxu0 %v521
        %628 = vmatprep.subr.bf16.mxu0 0
        %629 = vmatpush1.bf16.msra.mxu0 %v522
        %630 = vmatprep.subr.bf16.mxu0 0
        %631 = vmatpush1.bf16.msra.mxu0 %v523
        %632 = vmatprep.subr.bf16.mxu0 0
        %633 = vmatpush1.bf16.msra.mxu0 %v524
        %634 = vmatprep.subr.bf16.mxu0 0
        %635 = vmatpush1.bf16.msra.mxu0 %v525
        %636 = vmatprep.subr.bf16.mxu0 0
        %637 = vmatpush1.bf16.msra.mxu0 %v526
        %638 = vmatprep.subr.bf16.mxu0 0
        %639 = vmatpush1.bf16.msra.mxu0 %v527
        %640 = vmatprep.subr.bf16.mxu0 0
        %641 = vmatpush1.bf16.msra.mxu0 %v528
        %642 = vmatprep.mubr.bf16.mxu0 %v356
        %643 = vmatmul.mubr.bf16.gmra.mrb[0].mxu0 %v355
        %v644 = vpop.f32.mrb[0].mxu0
        %v645 = vadd.f32 %v596, %v644
        %v646 = vpop.f32.mrb[0].mxu0
        %v647 = vpop.f32.mrb[0].mxu0
        %v648 = vadd.f32 %v599, %v647
        %v649 = vpop.f32.mrb[0].mxu0
        %650 = vmatprep.mubr.bf16.mxu0 %v360
        %651 = vmatmul.mubr.bf16.gmra.mrb[0].mxu0 %v359
        %v652 = vpop.f32.mrb[0].mxu0
        %v653 = vadd.f32 %v604, %v652
        %v654 = vpop.f32.mrb[0].mxu0
        %v655 = vpop.f32.mrb[0].mxu0
        %v656 = vadd.f32 %v607, %v655
        %v657 = vpop.f32.mrb[0].mxu0
        %658 = vdwg.mxu0
        %s659 = scalar_lea.vmem %s228, 64 [#allocation2]
        %v660 = vld [vmem:[%s659] sm:$0xff]
        %v661 = vld [vmem:[%s659 + $0x8] sm:$0xff]
        %v662 = vld [vmem:[%s659 + $0x10] sm:$0xff]
        %v663 = vld [vmem:[%s659 + $0x18] sm:$0xff]
        %v664 = vld [vmem:[%s659 + $0x20] sm:$0xff]
        %v665 = vld [vmem:[%s659 + $0x28] sm:$0xff]
        %v666 = vld [vmem:[%s659 + $0x30] sm:$0xff]
        %v667 = vld [vmem:[%s659 + $0x38] sm:$0xff]
        %v676 = vunpack.c.l.b16 %v660
        %v677 = vunpack.c.h.b16 %v660
        %v678 = vunpack.c.l.b16 %v661
        %v679 = vunpack.c.h.b16 %v661
        %v680 = vunpack.c.l.b16 %v662
        %v681 = vunpack.c.h.b16 %v662
        %v682 = vunpack.c.l.b16 %v663
        %v683 = vunpack.c.h.b16 %v663
        %v684 = vunpack.c.l.b16 %v664
        %v685 = vunpack.c.h.b16 %v664
        %v686 = vunpack.c.l.b16 %v665
        %v687 = vunpack.c.h.b16 %v665
        %v688 = vunpack.c.l.b16 %v666
        %v689 = vunpack.c.h.b16 %v666
        %v690 = vunpack.c.l.b16 %v667
        %v691 = vunpack.c.h.b16 %v667
        %v692 = vpack.c.b16 %v680, %v676
        %v693 = vpack.c.b16 %v681, %v677
        %v694 = vpack.c.b16 %v682, %v678
        %v695 = vpack.c.b16 %v683, %v679
        %v696 = vpack.c.b16 %v688, %v684
        %v697 = vpack.c.b16 %v689, %v685
        %v698 = vpack.c.b16 %v690, %v686
        %v699 = vpack.c.b16 %v691, %v687
        %708 = vmatprep.subr.bf16.mxu0 0
        %709 = vmatpush1.bf16.msra.mxu0 %v497
        %710 = vmatprep.subr.bf16.mxu0 0
        %711 = vmatpush1.bf16.msra.mxu0 %v498
        %712 = vmatprep.subr.bf16.mxu0 0
        %713 = vmatpush1.bf16.msra.mxu0 %v499
        %714 = vmatprep.subr.bf16.mxu0 0
        %715 = vmatpush1.bf16.msra.mxu0 %v500
        %716 = vmatprep.subr.bf16.mxu0 0
        %717 = vmatpush1.bf16.msra.mxu0 %v501
        %718 = vmatprep.subr.bf16.mxu0 0
        %719 = vmatpush1.bf16.msra.mxu0 %v502
        %720 = vmatprep.subr.bf16.mxu0 0
        %721 = vmatpush1.bf16.msra.mxu0 %v503
        %722 = vmatprep.subr.bf16.mxu0 0
        %723 = vmatpush1.bf16.msra.mxu0 %v504
        %724 = vmatprep.subr.bf16.mxu0 0
        %725 = vmatpush1.bf16.msra.mxu0 %v505
        %726 = vmatprep.subr.bf16.mxu0 0
        %727 = vmatpush1.bf16.msra.mxu0 %v506
        %728 = vmatprep.subr.bf16.mxu0 0
        %729 = vmatpush1.bf16.msra.mxu0 %v507
        %730 = vmatprep.subr.bf16.mxu0 0
        %731 = vmatpush1.bf16.msra.mxu0 %v508
        %732 = vmatprep.subr.bf16.mxu0 0
        %733 = vmatpush1.bf16.msra.mxu0 %v509
        %734 = vmatprep.subr.bf16.mxu0 0
        %735 = vmatpush1.bf16.msra.mxu0 %v510
        %736 = vmatprep.subr.bf16.mxu0 0
        %737 = vmatpush1.bf16.msra.mxu0 %v511
        %738 = vmatprep.subr.bf16.mxu0 0
        %739 = vmatpush1.bf16.msra.mxu0 %v512
        %740 = vmatprep.mubr.bf16.mxu0 %v693
        %741 = vmatmul.mubr.bf16.gmra.mrb[0].mxu0 %v692
        %v742 = vpop.f32.mrb[0].mxu0
        %v743 = vadd.f32 0.0, %v742
        %v744 = vpop.f32.mrb[0].mxu0
        %v745 = vpop.f32.mrb[0].mxu0
        %v746 = vadd.f32 0.0, %v745
        %v747 = vpop.f32.mrb[0].mxu0
        %748 = vmatprep.mubr.bf16.mxu0 %v697
        %749 = vmatmul.mubr.bf16.gmra.mrb[0].mxu0 %v696
        %v750 = vpop.f32.mrb[0].mxu0
        %v751 = vadd.f32 0.0, %v750
        %v752 = vpop.f32.mrb[0].mxu0
        %v753 = vpop.f32.mrb[0].mxu0
        %v754 = vadd.f32 0.0, %v753
        %v755 = vpop.f32.mrb[0].mxu0
        %756 = vdwg.mxu0
        %757 = vmatprep.subr.bf16.mxu0 0
        %758 = vmatpush1.bf16.msra.mxu0 %v513
        %759 = vmatprep.subr.bf16.mxu0 0
        %760 = vmatpush1.bf16.msra.mxu0 %v514
        %761 = vmatprep.subr.bf16.mxu0 0
        %762 = vmatpush1.bf16.msra.mxu0 %v515
        %763 = vmatprep.subr.bf16.mxu0 0
        %764 = vmatpush1.bf16.msra.mxu0 %v516
        %765 = vmatprep.subr.bf16.mxu0 0
        %766 = vmatpush1.bf16.msra.mxu0 %v517
        %767 = vmatprep.subr.bf16.mxu0 0
        %768 = vmatpush1.bf16.msra.mxu0 %v518
        %769 = vmatprep.subr.bf16.mxu0 0
        %770 = vmatpush1.bf16.msra.mxu0 %v519
        %771 = vmatprep.subr.bf16.mxu0 0
        %772 = vmatpush1.bf16.msra.mxu0 %v520
        %773 = vmatprep.subr.bf16.mxu0 0
        %774 = vmatpush1.bf16.msra.mxu0 %v521
        %775 = vmatprep.subr.bf16.mxu0 0
        %776 = vmatpush1.bf16.msra.mxu0 %v522
        %777 = vmatprep.subr.bf16.mxu0 0
        %778 = vmatpush1.bf16.msra.mxu0 %v523
        %779 = vmatprep.subr.bf16.mxu0 0
        %780 = vmatpush1.bf16.msra.mxu0 %v524
        %781 = vmatprep.subr.bf16.mxu0 0
        %782 = vmatpush1.bf16.msra.mxu0 %v525
        %783 = vmatprep.subr.bf16.mxu0 0
        %784 = vmatpush1.bf16.msra.mxu0 %v526
        %785 = vmatprep.subr.bf16.mxu0 0
        %786 = vmatpush1.bf16.msra.mxu0 %v527
        %787 = vmatprep.subr.bf16.mxu0 0
        %788 = vmatpush1.bf16.msra.mxu0 %v528
        %789 = vmatprep.mubr.bf16.mxu0 %v695
        %790 = vmatmul.mubr.bf16.gmra.mrb[0].mxu0 %v694
        %v791 = vpop.f32.mrb[0].mxu0
        %v792 = vadd.f32 %v743, %v791
        %v793 = vpop.f32.mrb[0].mxu0
        %v794 = vpop.f32.mrb[0].mxu0
        %v795 = vadd.f32 %v746, %v794
        %v796 = vpop.f32.mrb[0].mxu0
        %797 = vmatprep.mubr.bf16.mxu0 %v699
        %798 = vmatmul.mubr.bf16.gmra.mrb[0].mxu0 %v698
        %v799 = vpop.f32.mrb[0].mxu0
        %v800 = vadd.f32 %v751, %v799
        %v801 = vpop.f32.mrb[0].mxu0
        %v802 = vpop.f32.mrb[0].mxu0
        %v803 = vadd.f32 %v754, %v802
        %v804 = vpop.f32.mrb[0].mxu0
        %805 = vdwg.mxu0
        %v806 = vmax.f32 %v645, %v792
        %v807 = vmax.f32 %v648, %v795
        %v808 = vmax.f32 %v653, %v800
        %v809 = vmax.f32 %v656, %v803
        %s810 = scalar_lea.vmem %s228, 128 [#allocation2]
        %v811 = vld [vmem:[%s810] sm:$0xff]
        %v812 = vld [vmem:[%s810 + $0x8] sm:$0xff]
        %v813 = vld [vmem:[%s810 + $0x10] sm:$0xff]
        %v814 = vld [vmem:[%s810 + $0x18] sm:$0xff]
        %v815 = vld [vmem:[%s810 + $0x20] sm:$0xff]
        %v816 = vld [vmem:[%s810 + $0x28] sm:$0xff]
        %v817 = vld [vmem:[%s810 + $0x30] sm:$0xff]
        %v818 = vld [vmem:[%s810 + $0x38] sm:$0xff]
        %v827 = vunpack.c.l.b16 %v811
        %v828 = vunpack.c.h.b16 %v811
        %v829 = vunpack.c.l.b16 %v812
        %v830 = vunpack.c.h.b16 %v812
        %v831 = vunpack.c.l.b16 %v813
        %v832 = vunpack.c.h.b16 %v813
        %v833 = vunpack.c.l.b16 %v814
        %v834 = vunpack.c.h.b16 %v814
        %v835 = vunpack.c.l.b16 %v815
        %v836 = vunpack.c.h.b16 %v815
        %v837 = vunpack.c.l.b16 %v816
        %v838 = vunpack.c.h.b16 %v816
        %v839 = vunpack.c.l.b16 %v817
        %v840 = vunpack.c.h.b16 %v817
        %v841 = vunpack.c.l.b16 %v818
        %v842 = vunpack.c.h.b16 %v818
        %v843 = vpack.c.b16 %v831, %v827
        %v844 = vpack.c.b16 %v832, %v828
        %v845 = vpack.c.b16 %v833, %v829
        %v846 = vpack.c.b16 %v834, %v830
        %v847 = vpack.c.b16 %v839, %v835
        %v848 = vpack.c.b16 %v840, %v836
        %v849 = vpack.c.b16 %v841, %v837
        %v850 = vpack.c.b16 %v842, %v838
        %859 = vmatprep.subr.bf16.mxu0 0
        %860 = vmatpush1.bf16.msra.mxu0 %v497
        %861 = vmatprep.subr.bf16.mxu0 0
        %862 = vmatpush1.bf16.msra.mxu0 %v498
        %863 = vmatprep.subr.bf16.mxu0 0
        %864 = vmatpush1.bf16.msra.mxu0 %v499
        %865 = vmatprep.subr.bf16.mxu0 0
        %866 = vmatpush1.bf16.msra.mxu0 %v500
        %867 = vmatprep.subr.bf16.mxu0 0
        %868 = vmatpush1.bf16.msra.mxu0 %v501
        %869 = vmatprep.subr.bf16.mxu0 0
        %870 = vmatpush1.bf16.msra.mxu0 %v502
        %871 = vmatprep.subr.bf16.mxu0 0
        %872 = vmatpush1.bf16.msra.mxu0 %v503
        %873 = vmatprep.subr.bf16.mxu0 0
        %874 = vmatpush1.bf16.msra.mxu0 %v504
        %875 = vmatprep.subr.bf16.mxu0 0
        %876 = vmatpush1.bf16.msra.mxu0 %v505
        %877 = vmatprep.subr.bf16.mxu0 0
        %878 = vmatpush1.bf16.msra.mxu0 %v506
        %879 = vmatprep.subr.bf16.mxu0 0
        %880 = vmatpush1.bf16.msra.mxu0 %v507
        %881 = vmatprep.subr.bf16.mxu0 0
        %882 = vmatpush1.bf16.msra.mxu0 %v508
        %883 = vmatprep.subr.bf16.mxu0 0
        %884 = vmatpush1.bf16.msra.mxu0 %v509
        %885 = vmatprep.subr.bf16.mxu0 0
        %886 = vmatpush1.bf16.msra.mxu0 %v510
        %887 = vmatprep.subr.bf16.mxu0 0
        %888 = vmatpush1.bf16.msra.mxu0 %v511
        %889 = vmatprep.subr.bf16.mxu0 0
        %890 = vmatpush1.bf16.msra.mxu0 %v512
        %891 = vmatprep.mubr.bf16.mxu0 %v844
        %892 = vmatmul.mubr.bf16.gmra.mrb[0].mxu0 %v843
        %v893 = vpop.f32.mrb[0].mxu0
        %v894 = vadd.f32 0.0, %v893
        %v895 = vpop.f32.mrb[0].mxu0
        %v896 = vpop.f32.mrb[0].mxu0
        %v897 = vadd.f32 0.0, %v896
        %v898 = vpop.f32.mrb[0].mxu0
        %899 = vmatprep.mubr.bf16.mxu0 %v848
        %900 = vmatmul.mubr.bf16.gmra.mrb[0].mxu0 %v847
        %v901 = vpop.f32.mrb[0].mxu0
        %v902 = vadd.f32 0.0, %v901
        %v903 = vpop.f32.mrb[0].mxu0
        %v904 = vpop.f32.mrb[0].mxu0
        %v905 = vadd.f32 0.0, %v904
        %v906 = vpop.f32.mrb[0].mxu0
        %907 = vdwg.mxu0
        %908 = vmatprep.subr.bf16.mxu0 0
        %909 = vmatpush1.bf16.msra.mxu0 %v513
        %910 = vmatprep.subr.bf16.mxu0 0
        %911 = vmatpush1.bf16.msra.mxu0 %v514
        %912 = vmatprep.subr.bf16.mxu0 0
        %913 = vmatpush1.bf16.msra.mxu0 %v515
        %914 = vmatprep.subr.bf16.mxu0 0
        %915 = vmatpush1.bf16.msra.mxu0 %v516
        %916 = vmatprep.subr.bf16.mxu0 0
        %917 = vmatpush1.bf16.msra.mxu0 %v517
        %918 = vmatprep.subr.bf16.mxu0 0
        %919 = vmatpush1.bf16.msra.mxu0 %v518
        %920 = vmatprep.subr.bf16.mxu0 0
        %921 = vmatpush1.bf16.msra.mxu0 %v519
        %922 = vmatprep.subr.bf16.mxu0 0
        %923 = vmatpush1.bf16.msra.mxu0 %v520
        %924 = vmatprep.subr.bf16.mxu0 0
        %925 = vmatpush1.bf16.msra.mxu0 %v521
        %926 = vmatprep.subr.bf16.mxu0 0
        %927 = vmatpush1.bf16.msra.mxu0 %v522
        %928 = vmatprep.subr.bf16.mxu0 0
        %929 = vmatpush1.bf16.msra.mxu0 %v523
        %930 = vmatprep.subr.bf16.mxu0 0
        %931 = vmatpush1.bf16.msra.mxu0 %v524
        %932 = vmatprep.subr.bf16.mxu0 0
        %933 = vmatpush1.bf16.msra.mxu0 %v525
        %934 = vmatprep.subr.bf16.mxu0 0
        %935 = vmatpush1.bf16.msra.mxu0 %v526
        %936 = vmatprep.subr.bf16.mxu0 0
        %937 = vmatpush1.bf16.msra.mxu0 %v527
        %938 = vmatprep.subr.bf16.mxu0 0
        %939 = vmatpush1.bf16.msra.mxu0 %v528
        %940 = vmatprep.mubr.bf16.mxu0 %v846
        %941 = vmatmul.mubr.bf16.gmra.mrb[0].mxu0 %v845
        %v942 = vpop.f32.mrb[0].mxu0
        %v943 = vadd.f32 %v894, %v942
        %v944 = vpop.f32.mrb[0].mxu0
        %v945 = vpop.f32.mrb[0].mxu0
        %v946 = vadd.f32 %v897, %v945
        %v947 = vpop.f32.mrb[0].mxu0
        %948 = vmatprep.mubr.bf16.mxu0 %v850
        %949 = vmatmul.mubr.bf16.gmra.mrb[0].mxu0 %v849
        %v950 = vpop.f32.mrb[0].mxu0
        %v951 = vadd.f32 %v902, %v950
        %v952 = vpop.f32.mrb[0].mxu0
        %v953 = vpop.f32.mrb[0].mxu0
        %v954 = vadd.f32 %v905, %v953
        %v955 = vpop.f32.mrb[0].mxu0
        %956 = vdwg.mxu0
        %v957 = vmax.f32 %v806, %v943
        %v958 = vmax.f32 %v807, %v946
        %v959 = vmax.f32 %v808, %v951
        %v960 = vmax.f32 %v809, %v954
        %s961 = scalar_lea.vmem %s228, 192 [#allocation2]
        %v962 = vld [vmem:[%s961] sm:$0xff]
        %v963 = vld [vmem:[%s961 + $0x8] sm:$0xff]
        %v964 = vld [vmem:[%s961 + $0x10] sm:$0xff]
        %v965 = vld [vmem:[%s961 + $0x18] sm:$0xff]
        %v966 = vld [vmem:[%s961 + $0x20] sm:$0xff]
        %v967 = vld [vmem:[%s961 + $0x28] sm:$0xff]
        %v968 = vld [vmem:[%s961 + $0x30] sm:$0xff]
        %v969 = vld [vmem:[%s961 + $0x38] sm:$0xff]
        %v978 = vunpack.c.l.b16 %v962
        %v979 = vunpack.c.h.b16 %v962
        %v980 = vunpack.c.l.b16 %v963
        %v981 = vunpack.c.h.b16 %v963
        %v982 = vunpack.c.l.b16 %v964
        %v983 = vunpack.c.h.b16 %v964
        %v984 = vunpack.c.l.b16 %v965
        %v985 = vunpack.c.h.b16 %v965
        %v986 = vunpack.c.l.b16 %v966
        %v987 = vunpack.c.h.b16 %v966
        %v988 = vunpack.c.l.b16 %v967
        %v989 = vunpack.c.h.b16 %v967
        %v990 = vunpack.c.l.b16 %v968
        %v991 = vunpack.c.h.b16 %v968
        %v992 = vunpack.c.l.b16 %v969
        %v993 = vunpack.c.h.b16 %v969
        %v994 = vpack.c.b16 %v982, %v978
        %v995 = vpack.c.b16 %v983, %v979
        %v996 = vpack.c.b16 %v984, %v980
        %v997 = vpack.c.b16 %v985, %v981
        %v998 = vpack.c.b16 %v990, %v986
        %v999 = vpack.c.b16 %v991, %v987
        %v1000 = vpack.c.b16 %v992, %v988
        %v1001 = vpack.c.b16 %v993, %v989
        %1010 = vmatprep.subr.bf16.mxu0 0
        %1011 = vmatpush1.bf16.msra.mxu0 %v497
        %1012 = vmatprep.subr.bf16.mxu0 0
        %1013 = vmatpush1.bf16.msra.mxu0 %v498
        %1014 = vmatprep.subr.bf16.mxu0 0
        %1015 = vmatpush1.bf16.msra.mxu0 %v499
        %1016 = vmatprep.subr.bf16.mxu0 0
        %1017 = vmatpush1.bf16.msra.mxu0 %v500
        %1018 = vmatprep.subr.bf16.mxu0 0
        %1019 = vmatpush1.bf16.msra.mxu0 %v501
        %1020 = vmatprep.subr.bf16.mxu0 0
        %1021 = vmatpush1.bf16.msra.mxu0 %v502
        %1022 = vmatprep.subr.bf16.mxu0 0
        %1023 = vmatpush1.bf16.msra.mxu0 %v503
        %1024 = vmatprep.subr.bf16.mxu0 0
        %1025 = vmatpush1.bf16.msra.mxu0 %v504
        %1026 = vmatprep.subr.bf16.mxu0 0
        %1027 = vmatpush1.bf16.msra.mxu0 %v505
        %1028 = vmatprep.subr.bf16.mxu0 0
        %1029 = vmatpush1.bf16.msra.mxu0 %v506
        %1030 = vmatprep.subr.bf16.mxu0 0
        %1031 = vmatpush1.bf16.msra.mxu0 %v507
        %1032 = vmatprep.subr.bf16.mxu0 0
        %1033 = vmatpush1.bf16.msra.mxu0 %v508
        %1034 = vmatprep.subr.bf16.mxu0 0
        %1035 = vmatpush1.bf16.msra.mxu0 %v509
        %1036 = vmatprep.subr.bf16.mxu0 0
        %1037 = vmatpush1.bf16.msra.mxu0 %v510
        %1038 = vmatprep.subr.bf16.mxu0 0
        %1039 = vmatpush1.bf16.msra.mxu0 %v511
        %1040 = vmatprep.subr.bf16.mxu0 0
        %1041 = vmatpush1.bf16.msra.mxu0 %v512
        %1042 = vmatprep.mubr.bf16.mxu0 %v995
        %1043 = vmatmul.mubr.bf16.gmra.mrb[0].mxu0 %v994
        %v1044 = vpop.f32.mrb[0].mxu0
        %v1045 = vadd.f32 0.0, %v1044
        %v1046 = vpop.f32.mrb[0].mxu0
        %v1047 = vpop.f32.mrb[0].mxu0
        %v1048 = vadd.f32 0.0, %v1047
        %v1049 = vpop.f32.mrb[0].mxu0
        %1050 = vmatprep.mubr.bf16.mxu0 %v999
        %1051 = vmatmul.mubr.bf16.gmra.mrb[0].mxu0 %v998
        %v1052 = vpop.f32.mrb[0].mxu0
        %v1053 = vadd.f32 0.0, %v1052
        %v1054 = vpop.f32.mrb[0].mxu0
        %v1055 = vpop.f32.mrb[0].mxu0
        %v1056 = vadd.f32 0.0, %v1055
        %v1057 = vpop.f32.mrb[0].mxu0
        %1058 = vdwg.mxu0
        %1059 = vmatprep.subr.bf16.mxu0 0
        %1060 = vmatpush1.bf16.msra.mxu0 %v513
        %1061 = vmatprep.subr.bf16.mxu0 0
        %1062 = vmatpush1.bf16.msra.mxu0 %v514
        %1063 = vmatprep.subr.bf16.mxu0 0
        %1064 = vmatpush1.bf16.msra.mxu0 %v515
        %1065 = vmatprep.subr.bf16.mxu0 0
        %1066 = vmatpush1.bf16.msra.mxu0 %v516
        %1067 = vmatprep.subr.bf16.mxu0 0
        %1068 = vmatpush1.bf16.msra.mxu0 %v517
        %1069 = vmatprep.subr.bf16.mxu0 0
        %1070 = vmatpush1.bf16.msra.mxu0 %v518
        %1071 = vmatprep.subr.bf16.mxu0 0
        %1072 = vmatpush1.bf16.msra.mxu0 %v519
        %1073 = vmatprep.subr.bf16.mxu0 0
        %1074 = vmatpush1.bf16.msra.mxu0 %v520
        %1075 = vmatprep.subr.bf16.mxu0 0
        %1076 = vmatpush1.bf16.msra.mxu0 %v521
        %1077 = vmatprep.subr.bf16.mxu0 0
        %1078 = vmatpush1.bf16.msra.mxu0 %v522
        %1079 = vmatprep.subr.bf16.mxu0 0
        %1080 = vmatpush1.bf16.msra.mxu0 %v523
        %1081 = vmatprep.subr.bf16.mxu0 0
        %1082 = vmatpush1.bf16.msra.mxu0 %v524
        %1083 = vmatprep.subr.bf16.mxu0 0
        %1084 = vmatpush1.bf16.msra.mxu0 %v525
        %1085 = vmatprep.subr.bf16.mxu0 0
        %1086 = vmatpush1.bf16.msra.mxu0 %v526
        %1087 = vmatprep.subr.bf16.mxu0 0
        %1088 = vmatpush1.bf16.msra.mxu0 %v527
        %1089 = vmatprep.subr.bf16.mxu0 0
        %1090 = vmatpush1.bf16.msra.mxu0 %v528
        %1091 = vmatprep.mubr.bf16.mxu0 %v997
        %1092 = vmatmul.mubr.bf16.gmra.mrb[0].mxu0 %v996
        %v1093 = vpop.f32.mrb[0].mxu0
        %v1094 = vadd.f32 %v1045, %v1093
        %v1095 = vpop.f32.mrb[0].mxu0
        %v1096 = vpop.f32.mrb[0].mxu0
        %v1097 = vadd.f32 %v1048, %v1096
        %v1098 = vpop.f32.mrb[0].mxu0
        %1099 = vmatprep.mubr.bf16.mxu0 %v1001
        %1100 = vmatmul.mubr.bf16.gmra.mrb[0].mxu0 %v1000
        %v1101 = vpop.f32.mrb[0].mxu0
        %v1102 = vadd.f32 %v1053, %v1101
        %v1103 = vpop.f32.mrb[0].mxu0
        %v1104 = vpop.f32.mrb[0].mxu0
        %v1105 = vadd.f32 %v1056, %v1104
        %v1106 = vpop.f32.mrb[0].mxu0
        %1107 = vdwg.mxu0
        %v1108 = vmax.f32 %v957, %v1094
        %v1109 = vmax.f32 %v958, %v1097
        %v1110 = vmax.f32 %v959, %v1102
        %v1111 = vmax.f32 %v960, %v1105
        %v1112 = vld [vmem:[%s2] sm:$0x1]
        %v1114 = vlaneseq
        %v1115 = vshrl.u32 %v1114, 7
        %v1116 = vsub.s32 0, %v1115
        %v1117 = vrot.slane %v1112, %v1116
        %v1119 = vadd.f32 %v1108, %v1117
        %v1120 = vadd.f32 %v1109, %v1117
        %v1121 = vadd.f32 %v1110, %v1117
        %v1122 = vadd.f32 %v1111, %v1117
        %v1123 = vpack.c.bf16 %v1120, %v1119
        %v1124 = vpack.c.bf16 %v1122, %v1121
        %v1127 = vunpack.c.l.b16 %v1123
        %v1128 = vunpack.c.h.b16 %v1123
        %v1129 = vunpack.c.l.b16 %v1124
        %v1130 = vunpack.c.h.b16 %v1124
        %v1131 = vpack.c.b16 %v1127, %v1127
        %v1132 = vpack.c.b16 %v1128, %v1128
        %v1133 = vpack.c.b16 %v1129, %v1129
        %v1134 = vpack.c.b16 %v1130, %v1130
        %1139 = vst [vmem:[%s254] sm:$0xf] %v1131
        %1140 = vst [vmem:[%s254 + $0x4] sm:$0xf] %v1132
        %1141 = vst [vmem:[%s254 + $0x8] sm:$0xf] %v1133
        %1142 = vst [vmem:[%s254 + $0xc] sm:$0xf] %v1134
        %s1143 = smul.u32 4, %s14
        %p1144 = scmp.lt.s32.totalorder %s1143, 7
        %s1145 = scalar_select %p1144, %s1143, 7
        %s1146 = smul.addr %s1145, 4
        %s1147 = scalar_lea.vmem %s3, %s1146
        // Predicated region
        $region56: #{lenet_forward.4} parent=50 // pred_check
          %p1148 = pneg %p100
        $region57: #{lenet_forward.4} parent=50 // pred_check_branch
          %1150 = sbr.rel (%p1148) target = $region59
        $region58: #{lenet_forward.4} parent=50 // pred_region
          %s1151 = smul.u32 4, %s14
        $region59: #{lenet_forward.4} parent=50 // pred_fallthru
          _
      $region51: #{lenet_forward.4} parent=5 // pred_fallthru
        _
      %p1152 = scmp.le.s32.totalorder 2, %s9
      // Predicated region
      $region60: #{lenet_forward.4} parent=5 // pred_check
        %p1153 = pneg %p1152
      $region61: #{lenet_forward.4} parent=5 // pred_check_branch
        %1155 = sbr.rel (%p1153) target = $region63
      $region62: #{lenet_forward.4} parent=5 // pred_region
        %s1156 = ssub.s32 %s9, 2
        // Predicated region
        $region64: #{lenet_forward.4} parent=62 // pred_check
          %p1157 = pneg %p106
        $region65: #{lenet_forward.4} parent=62 // pred_check_branch
          %1159 = sbr.rel (%p1157) target = $region67
        $region66: #{lenet_forward.4} parent=62 // pred_region
          %s1160 = smul.u32 4, %s15
          %p1161 = scmp.lt.s32.totalorder %s1160, 7
          %s1162 = scalar_select %p1161, %s1160, 7
          %s1163 = smul.addr %s1162, 4
          %s1164 = scalar_lea.vmem %s3, %s1163
        $region67: #{lenet_forward.4} parent=62 // pred_fallthru
          _
      $region63: #{lenet_forward.4} parent=5 // pred_fallthru
        _
    $region6: #{lenet_forward.4} parent=1 // loop_footer
      %s13 = sadd.s32 1, %s9
    $region7: #{lenet_forward.4} parent=1 // loop_footer_branch
      %8 = sbr.rel target = $region3
    $region8: #{lenet_forward.4} parent=1 // loop_exit
      _

// kernel: lenet_forward.5
$region0: #{lenet_forward.5}
  #allocation0 [shape = 'u32[]', space=smem, size = 0x4, offset = 0x4, fixed_abs, tag = 'smem constant byte address 0x4 - core index']
  #allocation1 [shape = 'u32[144,128]{1,0:T(1,128)}', space=vmem, size = 0x12000, scoped, tag = 'internal scratch']
  %s0 = inlined_call_operand.vmem [shape: bf16[16,3200], index: 0, kind: input, shape index: {}]
  %s1 = inlined_call_operand.vmem [shape: bf16[3200,128], index: 1, kind: input, shape index: {}]
  %s2 = inlined_call_operand.vmem [shape: f32[1,128], index: 2, kind: input, shape index: {}]
  %s3 = inlined_call_operand.vmem [shape: bf16[128,128], index: 3, kind: input, shape index: {}]
  %s4 = inlined_call_operand.vmem [shape: f32[1,128], index: 4, kind: input, shape index: {}]
  %s5 = inlined_call_operand.vmem [shape: bf16[128,128], index: 5, kind: input, shape index: {}]
  %s6 = inlined_call_operand.vmem [shape: f32[1,128], index: 6, kind: input, shape index: {}]
  %s7 = inlined_call_operand.vmem [shape: f32[16,128], index: 7, kind: output, shape index: {}]
  %s8 = sld [smem:[#allocation0]]
  $region61: #{lenet_forward.5} parent=0
    _
  %s10 = ssub.s32 1, %s8
  %s11 = scalar_select 0, %s10, %s8
  loop: start=0, step=1, limit=4
  $region2: #{lenet_forward.5} parent=0 // loop_pre_header
    _
  $region3: #{lenet_forward.5} parent=0 // loop_header
    %s13 = sphi 0, %s17
    %p14 = scmp.ge.s32.totalorder %s13, 4
    %s23 = sphi 0, %s25
    %s26 = sphi 0, %s23
    %s27 = sphi 0, %s26
    %s43 = sphi 0, %s27
    %s47 = sphi 0, %s47
    %s49 = sphi 0, %s47
    %s50 = sphi 0, %s49
    %s64 = sphi 0, %s50
    %s68 = sphi 0, %s68
    %s70 = sphi 0, %s68
    %s71 = sphi 0, %s70
    %s85 = sphi 0, %s71
    %s89 = sphi 0, %s89
    %s91 = sphi 0, %s89
    %s92 = sphi 0, %s91
    %s106 = sphi 0, %s92
    %s110 = sphi 0, %s110
    %s112 = sphi 0, %s110
    %s113 = sphi 0, %s112
    %s127 = sphi 0, %s113
    %s131 = sphi 0, %s131
    %s133 = sphi 0, %s131
    %s134 = sphi 0, %s133
    %s148 = sphi 0, %s134
    %s152 = sphi 0, %s152
    %s154 = sphi 0, %s152
    %s155 = sphi 0, %s154
    %s169 = sphi 0, %s155
    %s175 = sphi 0, %s177
    %s178 = sphi 0, %s175
    %s179 = sphi 0, %s178
    %s195 = sphi 0, %s179
  $region4: #{lenet_forward.5} parent=0 // loop_header_branch
    %16 = sbr.rel (%p14) target = $region8
  $region5: #{lenet_forward.5} parent=0 // loop_body
    %s18 = ssub.s32 %s13, 1
    %s19 = ssub.s32 %s13, 2
    %s20 = sadd.s32 %s13, 1
    %s21 = ssub.s32 %s13, %s20
    %p22 = scmp.eq.s32.totalorder %s21, 0
    %s24 = sadd.s32 %s23, 1
    %s25 = scalar_select %p22, %s23, %s24
    %p28 = pneg %p22
    %p29 = scmp.eq.s32.totalorder %s13, 1
    %p30 = por %p28, %p29
    %p31 = scmp.ne.s32.totalorder %s23, %s26
    %p32 = scmp.eq.s32.totalorder %s13, 0
    %p33 = por %p31, %p32
    %p34 = scmp.ne.s32.totalorder %s23, %s26
    %p35 = scmp.eq.s32.totalorder %s18, 1
    %p36 = por %p34, %p35
    %p37 = scmp.ne.s32.totalorder %s26, %s27
    %p38 = scmp.eq.s32.totalorder %s18, 0
    %p39 = por %p37, %p38
    %p40 = scmp.ne.s32.totalorder %s26, %s27
    %p41 = scmp.eq.s32.totalorder %s19, 1
    %p42 = por %p40, %p41
    %p44 = scmp.ne.s32.totalorder %s27, %s43
    %p45 = scmp.eq.s32.totalorder %s19, 0
    %p46 = por %p44, %p45
    %s48 = sadd.s32 %s47, 1
    %p51 = scmp.eq.s32.totalorder %s13, 1
    %p52 = scmp.ne.s32.totalorder %s47, %s49
    %p53 = scmp.eq.s32.totalorder %s13, 0
    %p54 = por %p52, %p53
    %p55 = scmp.ne.s32.totalorder %s47, %s49
    %p56 = scmp.eq.s32.totalorder %s18, 1
    %p57 = por %p55, %p56
    %p58 = scmp.ne.s32.totalorder %s49, %s50
    %p59 = scmp.eq.s32.totalorder %s18, 0
    %p60 = por %p58, %p59
    %p61 = scmp.ne.s32.totalorder %s49, %s50
    %p62 = scmp.eq.s32.totalorder %s19, 1
    %p63 = por %p61, %p62
    %p65 = scmp.ne.s32.totalorder %s50, %s64
    %p66 = scmp.eq.s32.totalorder %s19, 0
    %p67 = por %p65, %p66
    %s69 = sadd.s32 %s68, 1
    %p72 = scmp.eq.s32.totalorder %s13, 1
    %p73 = scmp.ne.s32.totalorder %s68, %s70
    %p74 = scmp.eq.s32.totalorder %s13, 0
    %p75 = por %p73, %p74
    %p76 = scmp.ne.s32.totalorder %s68, %s70
    %p77 = scmp.eq.s32.totalorder %s18, 1
    %p78 = por %p76, %p77
    %p79 = scmp.ne.s32.totalorder %s70, %s71
    %p80 = scmp.eq.s32.totalorder %s18, 0
    %p81 = por %p79, %p80
    %p82 = scmp.ne.s32.totalorder %s70, %s71
    %p83 = scmp.eq.s32.totalorder %s19, 1
    %p84 = por %p82, %p83
    %p86 = scmp.ne.s32.totalorder %s71, %s85
    %p87 = scmp.eq.s32.totalorder %s19, 0
    %p88 = por %p86, %p87
    %s90 = sadd.s32 %s89, 1
    %p93 = scmp.eq.s32.totalorder %s13, 1
    %p94 = scmp.ne.s32.totalorder %s89, %s91
    %p95 = scmp.eq.s32.totalorder %s13, 0
    %p96 = por %p94, %p95
    %p97 = scmp.ne.s32.totalorder %s89, %s91
    %p98 = scmp.eq.s32.totalorder %s18, 1
    %p99 = por %p97, %p98
    %p100 = scmp.ne.s32.totalorder %s91, %s92
    %p101 = scmp.eq.s32.totalorder %s18, 0
    %p102 = por %p100, %p101
    %p103 = scmp.ne.s32.totalorder %s91, %s92
    %p104 = scmp.eq.s32.totalorder %s19, 1
    %p105 = por %p103, %p104
    %p107 = scmp.ne.s32.totalorder %s92, %s106
    %p108 = scmp.eq.s32.totalorder %s19, 0
    %p109 = por %p107, %p108
    %s111 = sadd.s32 %s110, 1
    %p114 = scmp.eq.s32.totalorder %s13, 1
    %p115 = scmp.ne.s32.totalorder %s110, %s112
    %p116 = scmp.eq.s32.totalorder %s13, 0
    %p117 = por %p115, %p116
    %p118 = scmp.ne.s32.totalorder %s110, %s112
    %p119 = scmp.eq.s32.totalorder %s18, 1
    %p120 = por %p118, %p119
    %p121 = scmp.ne.s32.totalorder %s112, %s113
    %p122 = scmp.eq.s32.totalorder %s18, 0
    %p123 = por %p121, %p122
    %p124 = scmp.ne.s32.totalorder %s112, %s113
    %p125 = scmp.eq.s32.totalorder %s19, 1
    %p126 = por %p124, %p125
    %p128 = scmp.ne.s32.totalorder %s113, %s127
    %p129 = scmp.eq.s32.totalorder %s19, 0
    %p130 = por %p128, %p129
    %s132 = sadd.s32 %s131, 1
    %p135 = scmp.eq.s32.totalorder %s13, 1
    %p136 = scmp.ne.s32.totalorder %s131, %s133
    %p137 = scmp.eq.s32.totalorder %s13, 0
    %p138 = por %p136, %p137
    %p139 = scmp.ne.s32.totalorder %s131, %s133
    %p140 = scmp.eq.s32.totalorder %s18, 1
    %p141 = por %p139, %p140
    %p142 = scmp.ne.s32.totalorder %s133, %s134
    %p143 = scmp.eq.s32.totalorder %s18, 0
    %p144 = por %p142, %p143
    %p145 = scmp.ne.s32.totalorder %s133, %s134
    %p146 = scmp.eq.s32.totalorder %s19, 1
    %p147 = por %p145, %p146
    %p149 = scmp.ne.s32.totalorder %s134, %s148
    %p150 = scmp.eq.s32.totalorder %s19, 0
    %p151 = por %p149, %p150
    %s153 = sadd.s32 %s152, 1
    %p156 = scmp.eq.s32.totalorder %s13, 1
    %p157 = scmp.ne.s32.totalorder %s152, %s154
    %p158 = scmp.eq.s32.totalorder %s13, 0
    %p159 = por %p157, %p158
    %p160 = scmp.ne.s32.totalorder %s152, %s154
    %p161 = scmp.eq.s32.totalorder %s18, 1
    %p162 = por %p160, %p161
    %p163 = scmp.ne.s32.totalorder %s154, %s155
    %p164 = scmp.eq.s32.totalorder %s18, 0
    %p165 = por %p163, %p164
    %p166 = scmp.ne.s32.totalorder %s154, %s155
    %p167 = scmp.eq.s32.totalorder %s19, 1
    %p168 = por %p166, %p167
    %p170 = scmp.ne.s32.totalorder %s155, %s169
    %p171 = scmp.eq.s32.totalorder %s19, 0
    %p172 = por %p170, %p171
    %s173 = ssub.s32 %s13, %s20
    %p174 = scmp.eq.s32.totalorder %s173, 0
    %s176 = sadd.s32 %s175, 1
    %s177 = scalar_select %p174, %s175, %s176
    %p180 = pneg %p174
    %p181 = scmp.eq.s32.totalorder %s13, 1
    %p182 = por %p180, %p181
    %p183 = scmp.ne.s32.totalorder %s175, %s178
    %p184 = scmp.eq.s32.totalorder %s13, 0
    %p185 = por %p183, %p184
    %p186 = scmp.ne.s32.totalorder %s175, %s178
    %p187 = scmp.eq.s32.totalorder %s18, 1
    %p188 = por %p186, %p187
    %p189 = scmp.ne.s32.totalorder %s178, %s179
    %p190 = scmp.eq.s32.totalorder %s18, 0
    %p191 = por %p189, %p190
    %p192 = scmp.ne.s32.totalorder %s178, %s179
    %p193 = scmp.eq.s32.totalorder %s19, 1
    %p194 = por %p192, %p193
    %p196 = scmp.ne.s32.totalorder %s179, %s195
    %p197 = scmp.eq.s32.totalorder %s19, 0
    %p198 = por %p196, %p197
    %p199 = scmp.le.s32.totalorder 1, %s13
    %p200 = scmp.lt.s32.totalorder %s13, 3
    %p201 = pnand %p199, %p200
    %p202 = pneg %p201
    // Predicated region
    $region9: #{lenet_forward.5} parent=5 // pred_check
      _
    $region10: #{lenet_forward.5} parent=5 // pred_check_branch
      %204 = sbr.rel (%p201) target = $region12
    $region11: #{lenet_forward.5} parent=5 // pred_region
      %s205 = ssub.s32 %s13, 1
      // Predicated region
      $region13: #{lenet_forward.5} parent=11 // pred_check
        %p206 = pneg %p60
      $region14: #{lenet_forward.5} parent=11 // pred_check_branch
        %208 = sbr.rel (%p206) target = $region16
      $region15: #{lenet_forward.5} parent=11 // pred_region
        _
      $region16: #{lenet_forward.5} parent=11 // pred_fallthru
        _
      // Predicated region
      $region17: #{lenet_forward.5} parent=11 // pred_check
        %p209 = pneg %p81
      $region18: #{lenet_forward.5} parent=11 // pred_check_branch
        %211 = sbr.rel (%p209) target = $region20
      $region19: #{lenet_forward.5} parent=11 // pred_region
        _
      $region20: #{lenet_forward.5} parent=11 // pred_fallthru
        _
      // Predicated region
      $region21: #{lenet_forward.5} parent=11 // pred_check
        %p212 = pneg %p102
      $region22: #{lenet_forward.5} parent=11 // pred_check_branch
        %214 = sbr.rel (%p212) target = $region24
      $region23: #{lenet_forward.5} parent=11 // pred_region
        _
      $region24: #{lenet_forward.5} parent=11 // pred_fallthru
        _
      // Predicated region
      $region25: #{lenet_forward.5} parent=11 // pred_check
        %p215 = pneg %p123
      $region26: #{lenet_forward.5} parent=11 // pred_check_branch
        %217 = sbr.rel (%p215) target = $region28
      $region27: #{lenet_forward.5} parent=11 // pred_region
        _
      $region28: #{lenet_forward.5} parent=11 // pred_fallthru
        _
      // Predicated region
      $region29: #{lenet_forward.5} parent=11 // pred_check
        %p218 = pneg %p144
      $region30: #{lenet_forward.5} parent=11 // pred_check_branch
        %220 = sbr.rel (%p218) target = $region32
      $region31: #{lenet_forward.5} parent=11 // pred_region
        _
      $region32: #{lenet_forward.5} parent=11 // pred_fallthru
        _
      // Predicated region
      $region33: #{lenet_forward.5} parent=11 // pred_check
        %p221 = pneg %p165
      $region34: #{lenet_forward.5} parent=11 // pred_check_branch
        %223 = sbr.rel (%p221) target = $region36
      $region35: #{lenet_forward.5} parent=11 // pred_region
        _
      $region36: #{lenet_forward.5} parent=11 // pred_fallthru
        _
    $region12: #{lenet_forward.5} parent=5 // pred_fallthru
      _
    %p224 = scmp.lt.s32.totalorder %s13, 2
    // Predicated region
    $region37: #{lenet_forward.5} parent=5 // pred_check
      %p225 = pneg %p224
    $region38: #{lenet_forward.5} parent=5 // pred_check_branch
      %227 = sbr.rel (%p225) target = $region40
    $region39: #{lenet_forward.5} parent=5 // pred_region
      // Predicated region
      $region41: #{lenet_forward.5} parent=39 // pred_check
        %p228 = pneg %p33
      $region42: #{lenet_forward.5} parent=39 // pred_check_branch
        %230 = sbr.rel (%p228) target = $region44
      $region43: #{lenet_forward.5} parent=39 // pred_region
        %p231 = scmp.lt.s32.totalorder %s13, 1
        %s232 = scalar_select %p231, %s13, 1
        %s233 = smul.addr %s232, 25
        %s234 = smul.addr %s233, 4
        %s235 = scalar_lea.vmem %s0, %s234
      $region44: #{lenet_forward.5} parent=39 // pred_fallthru
        _
    $region40: #{lenet_forward.5} parent=5 // pred_fallthru
      _
    %p236 = scmp.le.s32.totalorder 1, %s13
    %p237 = scmp.lt.s32.totalorder %s13, 3
    %p238 = pnand %p236, %p237
    %p239 = pneg %p238
    // Predicated region
    $region45: #{lenet_forward.5} parent=5 // pred_check
      _
    $region46: #{lenet_forward.5} parent=5 // pred_check_branch
      %241 = sbr.rel (%p238) target = $region48
    $region47: #{lenet_forward.5} parent=5 // pred_region
      %s242 = ssub.s32 %s13, 1
      %p243 = scmp.lt.s32.totalorder %s18, 1
      %s244 = scalar_select %p243, %s18, 1
      %s245 = smul.addr %s244, 25
      %s246 = smul.addr %s245, 4
      %s247 = scalar_lea.vmem %s0, %s246
      %p248 = pneg %p39
      %p249 = pneg %p36
      %p250 = pneg %p60
      %p251 = pneg %p57
      %p252 = pneg %p81
      %p253 = pneg %p78
      %p254 = pneg %p102
      %p255 = pneg %p99
      %p256 = pneg %p123
      %p257 = pneg %p120
      %p258 = pneg %p144
      %p259 = pneg %p141
      %p260 = pneg %p165
      %p261 = pneg %p162
      %p262 = pneg %p191
      %p263 = pneg %p188
      %p264 = scmp.lt.s32.totalorder %s18, 1
      %s265 = scalar_select %p264, %s18, 1
      %s266 = smul.addr %s265, 8
      %s267 = scalar_lea.vmem %s7, %s266
      %p268 = scmp.lt.s32.totalorder %s18, 1
      %s269 = scalar_select %p268, %s18, 1
      %s270 = smul.addr %s269, 25
      %s271 = smul.addr %s270, 4
      %s272 = scalar_lea.vmem %s0, %s271
      %p273 = scmp.lt.s32.totalorder %s18, 1
      %s274 = scalar_select %p273, %s18, 1
      %s275 = smul.addr %s274, 8
      %s276 = scalar_lea.vmem %s7, %s275
      %v278 = vld [vmem:[%s272] sm:$0xff]
      %v279 = vld [vmem:[%s272 + $0x8] sm:$0xff]
      %v280 = vld [vmem:[%s272 + $0x10] sm:$0xff]
      %v281 = vld [vmem:[%s272 + $0x18] sm:$0xff]
      %v282 = vld [vmem:[%s272 + $0x20] sm:$0xff]
      %v283 = vld [vmem:[%s272 + $0x28] sm:$0xff]
      %v284 = vld [vmem:[%s272 + $0x30] sm:$0xff]
      %v285 = vld [vmem:[%s272 + $0x38] sm:$0xff]
      %v286 = vld [vmem:[%s272 + $0x40] sm:$0xff]
      %v287 = vld [vmem:[%s272 + $0x48] sm:$0xff]
      %v288 = vld [vmem:[%s272 + $0x50] sm:$0xff]
      %v289 = vld [vmem:[%s272 + $0x58] sm:$0xff]
      %v290 = vld [vmem:[%s272 + $0x60] sm:$0xf]
      %v291 = vld [vmem:[%s1] sm:$0xf]
      %v292 = vld [vmem:[%s1 + $0x4] sm:$0xf]
      %v293 = vld [vmem:[%s1 + $0x8] sm:$0xf]
      %v294 = vld [vmem:[%s1 + $0xc] sm:$0xf]
      %v295 = vld [vmem:[%s1 + $0x10] sm:$0xf]
      %v296 = vld [vmem:[%s1 + $0x14] sm:$0xf]
      %v297 = vld [vmem:[%s1 + $0x18] sm:$0xf]
      %v298 = vld [vmem:[%s1 + $0x1c] sm:$0xf]
      %v299 = vld [vmem:[%s1 + $0x20] sm:$0xf]
      %v300 = vld [vmem:[%s1 + $0x24] sm:$0xf]
      %v301 = vld [vmem:[%s1 + $0x28] sm:$0xf]
      %v302 = vld [vmem:[%s1 + $0x2c] sm:$0xf]
      %v303 = vld [vmem:[%s1 + $0x30] sm:$0xf]
      %v304 = vld [vmem:[%s1 + $0x34] sm:$0xf]
      %v305 = vld [vmem:[%s1 + $0x38] sm:$0xf]
      %v306 = vld [vmem:[%s1 + $0x3c] sm:$0xf]
      %v307 = vld [vmem:[%s1 + $0x40] sm:$0xf]
      %v308 = vld [vmem:[%s1 + $0x44] sm:$0xf]
      %v309 = vld [vmem:[%s1 + $0x48] sm:$0xf]
      %v310 = vld [vmem:[%s1 + $0x4c] sm:$0xf]
      %v311 = vld [vmem:[%s1 + $0x50] sm:$0xf]
      %v312 = vld [vmem:[%s1 + $0x54] sm:$0xf]
      %v313 = vld [vmem:[%s1 + $0x58] sm:$0xf]
      %v314 = vld [vmem:[%s1 + $0x5c] sm:$0xf]
      %v315 = vld [vmem:[%s1 + $0x60] sm:$0xf]
      %v316 = vld [vmem:[%s1 + $0x64] sm:$0xf]
      %v317 = vld [vmem:[%s1 + $0x68] sm:$0xf]
      %v318 = vld [vmem:[%s1 + $0x6c] sm:$0xf]
      %v319 = vld [vmem:[%s1 + $0x70] sm:$0xf]
      %v320 = vld [vmem:[%s1 + $0x74] sm:$0xf]
      %v321 = vld [vmem:[%s1 + $0x78] sm:$0xf]
      %v322 = vld [vmem:[%s1 + $0x7c] sm:$0xf]
      %v323 = vld [vmem:[%s1 + $0x80] sm:$0xf]
      %v324 = vld [vmem:[%s1 + $0x84] sm:$0xf]
      %v325 = vld [vmem:[%s1 + $0x88] sm:$0xf]
      %v326 = vld [vmem:[%s1 + $0x8c] sm:$0xf]
      %v327 = vld [vmem:[%s1 + $0x90] sm:$0xf]
      %v328 = vld [vmem:[%s1 + $0x94] sm:$0xf]
      %v329 = vld [vmem:[%s1 + $0x98] sm:$0xf]
      %v330 = vld [vmem:[%s1 + $0x9c] sm:$0xf]
      %v331 = vld [vmem:[%s1 + $0xa0] sm:$0xf]
      %v332 = vld [vmem:[%s1 + $0xa4] sm:$0xf]
      %v333 = vld [vmem:[%s1 + $0xa8] sm:$0xf]
      %v334 = vld [vmem:[%s1 + $0xac] sm:$0xf]
      %v335 = vld [vmem:[%s1 + $0xb0] sm:$0xf]
      %v336 = vld [vmem:[%s1 + $0xb4] sm:$0xf]
      %v337 = vld [vmem:[%s1 + $0xb8] sm:$0xf]
      %v338 = vld [vmem:[%s1 + $0xbc] sm:$0xf]
      %v339 = vld [vmem:[%s1 + $0xc0] sm:$0xf]
      %v340 = vld [vmem:[%s1 + $0xc4] sm:$0xf]
      %v341 = vld [vmem:[%s1 + $0xc8] sm:$0xf]
      %v342 = vld [vmem:[%s1 + $0xcc] sm:$0xf]
      %v343 = vld [vmem:[%s1 + $0xd0] sm:$0xf]
      %v344 = vld [vmem:[%s1 + $0xd4] sm:$0xf]
      %v345 = vld [vmem:[%s1 + $0xd8] sm:$0xf]
      %v346 = vld [vmem:[%s1 + $0xdc] sm:$0xf]
      %v347 = vld [vmem:[%s1 + $0xe0] sm:$0xf]
      %v348 = vld [vmem:[%s1 + $0xe4] sm:$0xf]
      %v349 = vld [vmem:[%s1 + $0xe8] sm:$0xf]
      %v350 = vld [vmem:[%s1 + $0xec] sm:$0xf]
      %v351 = vld [vmem:[%s1 + $0xf0] sm:$0xf]
      %v352 = vld [vmem:[%s1 + $0xf4] sm:$0xf]
      %v353 = vld [vmem:[%s1 + $0xf8] sm:$0xf]
      %v354 = vld [vmem:[%s1 + $0xfc] sm:$0xf]
      %v355 = vld [vmem:[%s1 + $0x100] sm:$0xf]
      %v356 = vld [vmem:[%s1 + $0x104] sm:$0xf]
      %v357 = vld [vmem:[%s1 + $0x108] sm:$0xf]
      %v358 = vld [vmem:[%s1 + $0x10c] sm:$0xf]
      %v359 = vld [vmem:[%s1 + $0x110] sm:$0xf]
      %v360 = vld [vmem:[%s1 + $0x114] sm:$0xf]
      %v361 = vld [vmem:[%s1 + $0x118] sm:$0xf]
      %v362 = vld [vmem:[%s1 + $0x11c] sm:$0xf]
      %v363 = vld [vmem:[%s1 + $0x120] sm:$0xf]
      %v364 = vld [vmem:[%s1 + $0x124] sm:$0xf]
      %v365 = vld [vmem:[%s1 + $0x128] sm:$0xf]
      %v366 = vld [vmem:[%s1 + $0x12c] sm:$0xf]
      %v367 = vld [vmem:[%s1 + $0x130] sm:$0xf]
      %v368 = vld [vmem:[%s1 + $0x134] sm:$0xf]
      %v369 = vld [vmem:[%s1 + $0x138] sm:$0xf]
      %v370 = vld [vmem:[%s1 + $0x13c] sm:$0xf]
      %v371 = vld [vmem:[%s1 + $0x140] sm:$0xf]
      %v372 = vld [vmem:[%s1 + $0x144] sm:$0xf]
      %v373 = vld [vmem:[%s1 + $0x148] sm:$0xf]
      %v374 = vld [vmem:[%s1 + $0x14c] sm:$0xf]
      %v375 = vld [vmem:[%s1 + $0x150] sm:$0xf]
      %v376 = vld [vmem:[%s1 + $0x154] sm:$0xf]
      %v377 = vld [vmem:[%s1 + $0x158] sm:$0xf]
      %v378 = vld [vmem:[%s1 + $0x15c] sm:$0xf]
      %v379 = vld [vmem:[%s1 + $0x160] sm:$0xf]
      %v380 = vld [vmem:[%s1 + $0x164] sm:$0xf]
      %v381 = vld [vmem:[%s1 + $0x168] sm:$0xf]
      %v382 = vld [vmem:[%s1 + $0x16c] sm:$0xf]
      %v383 = vld [vmem:[%s1 + $0x170] sm:$0xf]
      %v384 = vld [vmem:[%s1 + $0x174] sm:$0xf]
      %v385 = vld [vmem:[%s1 + $0x178] sm:$0xf]
      %v386 = vld [vmem:[%s1 + $0x17c] sm:$0xf]
      %v387 = vld [vmem:[%s1 + $0x180] sm:$0xf]
      %v388 = vld [vmem:[%s1 + $0x184] sm:$0xf]
      %v389 = vld [vmem:[%s1 + $0x188] sm:$0xf]
      %v390 = vld [vmem:[%s1 + $0x18c] sm:$0xf]
      %v391 = vld [vmem:[%s1 + $0x190] sm:$0xf]
      %v392 = vld [vmem:[%s1 + $0x194] sm:$0xf]
      %v393 = vld [vmem:[%s1 + $0x198] sm:$0xf]
      %v394 = vld [vmem:[%s1 + $0x19c] sm:$0xf]
      %v395 = vld [vmem:[%s1 + $0x1a0] sm:$0xf]
      %v396 = vld [vmem:[%s1 + $0x1a4] sm:$0xf]
      %v397 = vld [vmem:[%s1 + $0x1a8] sm:$0xf]
      %v398 = vld [vmem:[%s1 + $0x1ac] sm:$0xf]
      %v399 = vld [vmem:[%s1 + $0x1b0] sm:$0xf]
      %v400 = vld [vmem:[%s1 + $0x1b4] sm:$0xf]
      %v401 = vld [vmem:[%s1 + $0x1b8] sm:$0xf]
      %v402 = vld [vmem:[%s1 + $0x1bc] sm:$0xf]
      %v403 = vld [vmem:[%s1 + $0x1c0] sm:$0xf]
      %v404 = vld [vmem:[%s1 + $0x1c4] sm:$0xf]
      %v405 = vld [vmem:[%s1 + $0x1c8] sm:$0xf]
      %v406 = vld [vmem:[%s1 + $0x1cc] sm:$0xf]
      %v407 = vld [vmem:[%s1 + $0x1d0] sm:$0xf]
      %v408 = vld [vmem:[%s1 + $0x1d4] sm:$0xf]
      %v409 = vld [vmem:[%s1 + $0x1d8] sm:$0xf]
      %v410 = vld [vmem:[%s1 + $0x1dc] sm:$0xf]
      %v411 = vld [vmem:[%s1 + $0x1e0] sm:$0xf]
      %v412 = vld [vmem:[%s1 + $0x1e4] sm:$0xf]
      %v413 = vld [vmem:[%s1 + $0x1e8] sm:$0xf]
      %v414 = vld [vmem:[%s1 + $0x1ec] sm:$0xf]
      %v415 = vld [vmem:[%s1 + $0x1f0] sm:$0xf]
      %v416 = vld [vmem:[%s1 + $0x1f4] sm:$0xf]
      %v417 = vld [vmem:[%s1 + $0x1f8] sm:$0xf]
      %v418 = vld [vmem:[%s1 + $0x1fc] sm:$0xf]
      %v419 = vld [vmem:[%s1 + $0x200] sm:$0xf]
      %v420 = vld [vmem:[%s1 + $0x204] sm:$0xf]
      %v421 = vld [vmem:[%s1 + $0x208] sm:$0xf]
      %v422 = vld [vmem:[%s1 + $0x20c] sm:$0xf]
      %v423 = vld [vmem:[%s1 + $0x210] sm:$0xf]
      %v424 = vld [vmem:[%s1 + $0x214] sm:$0xf]
      %v425 = vld [vmem:[%s1 + $0x218] sm:$0xf]
      %v426 = vld [vmem:[%s1 + $0x21c] sm:$0xf]
      %v427 = vld [vmem:[%s1 + $0x220] sm:$0xf]
      %v428 = vld [vmem:[%s1 + $0x224] sm:$0xf]
      %v429 = vld [vmem:[%s1 + $0x228] sm:$0xf]
      %v430 = vld [vmem:[%s1 + $0x22c] sm:$0xf]
      %v431 = vld [vmem:[%s1 + $0x230] sm:$0xf]
      %v432 = vld [vmem:[%s1 + $0x234] sm:$0xf]
      %v433 = vld [vmem:[%s1 + $0x238] sm:$0xf]
      %v434 = vld [vmem:[%s1 + $0x23c] sm:$0xf]
      %v435 = vld [vmem:[%s1 + $0x240] sm:$0xf]
      %v436 = vld [vmem:[%s1 + $0x244] sm:$0xf]
      %v437 = vld [vmem:[%s1 + $0x248] sm:$0xf]
      %v438 = vld [vmem:[%s1 + $0x24c] sm:$0xf]
      %v439 = vld [vmem:[%s1 + $0x250] sm:$0xf]
      %v440 = vld [vmem:[%s1 + $0x254] sm:$0xf]
      %v441 = vld [vmem:[%s1 + $0x258] sm:$0xf]
      %v442 = vld [vmem:[%s1 + $0x25c] sm:$0xf]
      %v443 = vld [vmem:[%s1 + $0x260] sm:$0xf]
      %v444 = vld [vmem:[%s1 + $0x264] sm:$0xf]
      %v445 = vld [vmem:[%s1 + $0x268] sm:$0xf]
      %v446 = vld [vmem:[%s1 + $0x26c] sm:$0xf]
      %v447 = vld [vmem:[%s1 + $0x270] sm:$0xf]
      %v448 = vld [vmem:[%s1 + $0x274] sm:$0xf]
      %v449 = vld [vmem:[%s1 + $0x278] sm:$0xf]
      %v450 = vld [vmem:[%s1 + $0x27c] sm:$0xf]
      %v451 = vld [vmem:[%s1 + $0x280] sm:$0xf]
      %v452 = vld [vmem:[%s1 + $0x284] sm:$0xf]
      %v453 = vld [vmem:[%s1 + $0x288] sm:$0xf]
      %v454 = vld [vmem:[%s1 + $0x28c] sm:$0xf]
      %v455 = vld [vmem:[%s1 + $0x290] sm:$0xf]
      %v456 = vld [vmem:[%s1 + $0x294] sm:$0xf]
      %v457 = vld [vmem:[%s1 + $0x298] sm:$0xf]
      %v458 = vld [vmem:[%s1 + $0x29c] sm:$0xf]
      %v459 = vld [vmem:[%s1 + $0x2a0] sm:$0xf]
      %v460 = vld [vmem:[%s1 + $0x2a4] sm:$0xf]
      %v461 = vld [vmem:[%s1 + $0x2a8] sm:$0xf]
      %v462 = vld [vmem:[%s1 + $0x2ac] sm:$0xf]
      %v463 = vld [vmem:[%s1 + $0x2b0] sm:$0xf]
      %v464 = vld [vmem:[%s1 + $0x2b4] sm:$0xf]
      %v465 = vld [vmem:[%s1 + $0x2b8] sm:$0xf]
      %v466 = vld [vmem:[%s1 + $0x2bc] sm:$0xf]
      %v467 = vld [vmem:[%s1 + $0x2c0] sm:$0xf]
      %v468 = vld [vmem:[%s1 + $0x2c4] sm:$0xf]
      %v469 = vld [vmem:[%s1 + $0x2c8] sm:$0xf]
      %v470 = vld [vmem:[%s1 + $0x2cc] sm:$0xf]
      %v471 = vld [vmem:[%s1 + $0x2d0] sm:$0xf]
      %v472 = vld [vmem:[%s1 + $0x2d4] sm:$0xf]
      %v473 = vld [vmem:[%s1 + $0x2d8] sm:$0xf]
      %v474 = vld [vmem:[%s1 + $0x2dc] sm:$0xf]
      %v475 = vld [vmem:[%s1 + $0x2e0] sm:$0xf]
      %v476 = vld [vmem:[%s1 + $0x2e4] sm:$0xf]
      %v477 = vld [vmem:[%s1 + $0x2e8] sm:$0xf]
      %v478 = vld [vmem:[%s1 + $0x2ec] sm:$0xf]
      %v479 = vld [vmem:[%s1 + $0x2f0] sm:$0xf]
      %v480 = vld [vmem:[%s1 + $0x2f4] sm:$0xf]
      %v481 = vld [vmem:[%s1 + $0x2f8] sm:$0xf]
      %v482 = vld [vmem:[%s1 + $0x2fc] sm:$0xf]
      %v483 = vld [vmem:[%s1 + $0x300] sm:$0xf]
      %v484 = vld [vmem:[%s1 + $0x304] sm:$0xf]
      %v485 = vld [vmem:[%s1 + $0x308] sm:$0xf]
      %v486 = vld [vmem:[%s1 + $0x30c] sm:$0xf]
      %v487 = vld [vmem:[%s1 + $0x310] sm:$0xf]
      %v488 = vld [vmem:[%s1 + $0x314] sm:$0xf]
      %v489 = vld [vmem:[%s1 + $0x318] sm:$0xf]
      %v490 = vld [vmem:[%s1 + $0x31c] sm:$0xf]
      %v491 = vld [vmem:[%s1 + $0x320] sm:$0xf]
      %v492 = vld [vmem:[%s1 + $0x324] sm:$0xf]
      %v493 = vld [vmem:[%s1 + $0x328] sm:$0xf]
      %v494 = vld [vmem:[%s1 + $0x32c] sm:$0xf]
      %v495 = vld [vmem:[%s1 + $0x330] sm:$0xf]
      %v496 = vld [vmem:[%s1 + $0x334] sm:$0xf]
      %v497 = vld [vmem:[%s1 + $0x338] sm:$0xf]
      %v498 = vld [vmem:[%s1 + $0x33c] sm:$0xf]
      %v499 = vld [vmem:[%s1 + $0x340] sm:$0xf]
      %v500 = vld [vmem:[%s1 + $0x344] sm:$0xf]
      %v501 = vld [vmem:[%s1 + $0x348] sm:$0xf]
      %v502 = vld [vmem:[%s1 + $0x34c] sm:$0xf]
      %v503 = vld [vmem:[%s1 + $0x350] sm:$0xf]
      %v504 = vld [vmem:[%s1 + $0x354] sm:$0xf]
      %v505 = vld [vmem:[%s1 + $0x358] sm:$0xf]
      %v506 = vld [vmem:[%s1 + $0x35c] sm:$0xf]
      %v507 = vld [vmem:[%s1 + $0x360] sm:$0xf]
      %v508 = vld [vmem:[%s1 + $0x364] sm:$0xf]
      %v509 = vld [vmem:[%s1 + $0x368] sm:$0xf]
      %v510 = vld [vmem:[%s1 + $0x36c] sm:$0xf]
      %v511 = vld [vmem:[%s1 + $0x370] sm:$0xf]
      %v512 = vld [vmem:[%s1 + $0x374] sm:$0xf]
      %v513 = vld [vmem:[%s1 + $0x378] sm:$0xf]
      %v514 = vld [vmem:[%s1 + $0x37c] sm:$0xf]
      %v515 = vld [vmem:[%s1 + $0x380] sm:$0xf]
      %v516 = vld [vmem:[%s1 + $0x384] sm:$0xf]
      %v517 = vld [vmem:[%s1 + $0x388] sm:$0xf]
      %v518 = vld [vmem:[%s1 + $0x38c] sm:$0xf]
      %v519 = vld [vmem:[%s1 + $0x390] sm:$0xf]
      %v520 = vld [vmem:[%s1 + $0x394] sm:$0xf]
      %v521 = vld [vmem:[%s1 + $0x398] sm:$0xf]
      %v522 = vld [vmem:[%s1 + $0x39c] sm:$0xf]
      %v523 = vld [vmem:[%s1 + $0x3a0] sm:$0xf]
      %v524 = vld [vmem:[%s1 + $0x3a4] sm:$0xf]
      %v525 = vld [vmem:[%s1 + $0x3a8] sm:$0xf]
      %v526 = vld [vmem:[%s1 + $0x3ac] sm:$0xf]
      %v527 = vld [vmem:[%s1 + $0x3b0] sm:$0xf]
      %v528 = vld [vmem:[%s1 + $0x3b4] sm:$0xf]
      %v529 = vld [vmem:[%s1 + $0x3b8] sm:$0xf]
      %v530 = vld [vmem:[%s1 + $0x3bc] sm:$0xf]
      %v531 = vld [vmem:[%s1 + $0x3c0] sm:$0xf]
      %v532 = vld [vmem:[%s1 + $0x3c4] sm:$0xf]
      %v533 = vld [vmem:[%s1 + $0x3c8] sm:$0xf]
      %v534 = vld [vmem:[%s1 + $0x3cc] sm:$0xf]
      %v535 = vld [vmem:[%s1 + $0x3d0] sm:$0xf]
      %v536 = vld [vmem:[%s1 + $0x3d4] sm:$0xf]
      %v537 = vld [vmem:[%s1 + $0x3d8] sm:$0xf]
      %v538 = vld [vmem:[%s1 + $0x3dc] sm:$0xf]
      %v539 = vld [vmem:[%s1 + $0x3e0] sm:$0xf]
      %v540 = vld [vmem:[%s1 + $0x3e4] sm:$0xf]
      %v541 = vld [vmem:[%s1 + $0x3e8] sm:$0xf]
      %v542 = vld [vmem:[%s1 + $0x3ec] sm:$0xf]
      %v543 = vld [vmem:[%s1 + $0x3f0] sm:$0xf]
      %v544 = vld [vmem:[%s1 + $0x3f4] sm:$0xf]
      %v545 = vld [vmem:[%s1 + $0x3f8] sm:$0xf]
      %v546 = vld [vmem:[%s1 + $0x3fc] sm:$0xf]
      %v547 = vld [vmem:[%s1 + $0x400] sm:$0xf]
      %v548 = vld [vmem:[%s1 + $0x404] sm:$0xf]
      %v549 = vld [vmem:[%s1 + $0x408] sm:$0xf]
      %v550 = vld [vmem:[%s1 + $0x40c] sm:$0xf]
      %v551 = vld [vmem:[%s1 + $0x410] sm:$0xf]
      %v552 = vld [vmem:[%s1 + $0x414] sm:$0xf]
      %v553 = vld [vmem:[%s1 + $0x418] sm:$0xf]
      %v554 = vld [vmem:[%s1 + $0x41c] sm:$0xf]
      %v555 = vld [vmem:[%s1 + $0x420] sm:$0xf]
      %v556 = vld [vmem:[%s1 + $0x424] sm:$0xf]
      %v557 = vld [vmem:[%s1 + $0x428] sm:$0xf]
      %v558 = vld [vmem:[%s1 + $0x42c] sm:$0xf]
      %v559 = vld [vmem:[%s1 + $0x430] sm:$0xf]
      %v560 = vld [vmem:[%s1 + $0x434] sm:$0xf]
      %v561 = vld [vmem:[%s1 + $0x438] sm:$0xf]
      %v562 = vld [vmem:[%s1 + $0x43c] sm:$0xf]
      %v563 = vld [vmem:[%s1 + $0x440] sm:$0xf]
      %v564 = vld [vmem:[%s1 + $0x444] sm:$0xf]
      %v565 = vld [vmem:[%s1 + $0x448] sm:$0xf]
      %v566 = vld [vmem:[%s1 + $0x44c] sm:$0xf]
      %v567 = vld [vmem:[%s1 + $0x450] sm:$0xf]
      %v568 = vld [vmem:[%s1 + $0x454] sm:$0xf]
      %v569 = vld [vmem:[%s1 + $0x458] sm:$0xf]
      %v570 = vld [vmem:[%s1 + $0x45c] sm:$0xf]
      %v571 = vld [vmem:[%s1 + $0x460] sm:$0xf]
      %v572 = vld [vmem:[%s1 + $0x464] sm:$0xf]
      %v573 = vld [vmem:[%s1 + $0x468] sm:$0xf]
      %v574 = vld [vmem:[%s1 + $0x46c] sm:$0xf]
      %v575 = vld [vmem:[%s1 + $0x470] sm:$0xf]
      %v576 = vld [vmem:[%s1 + $0x474] sm:$0xf]
      %v577 = vld [vmem:[%s1 + $0x478] sm:$0xf]
      %v578 = vld [vmem:[%s1 + $0x47c] sm:$0xf]
      %v579 = vld [vmem:[%s1 + $0x480] sm:$0xf]
      %v580 = vld [vmem:[%s1 + $0x484] sm:$0xf]
      %v581 = vld [vmem:[%s1 + $0x488] sm:$0xf]
      %v582 = vld [vmem:[%s1 + $0x48c] sm:$0xf]
      %v583 = vld [vmem:[%s1 + $0x490] sm:$0xf]
      %v584 = vld [vmem:[%s1 + $0x494] sm:$0xf]
      %v585 = vld [vmem:[%s1 + $0x498] sm:$0xf]
      %v586 = vld [vmem:[%s1 + $0x49c] sm:$0xf]
      %v587 = vld [vmem:[%s1 + $0x4a0] sm:$0xf]
      %v588 = vld [vmem:[%s1 + $0x4a4] sm:$0xf]
      %v589 = vld [vmem:[%s1 + $0x4a8] sm:$0xf]
      %v590 = vld [vmem:[%s1 + $0x4ac] sm:$0xf]
      %v591 = vld [vmem:[%s1 + $0x4b0] sm:$0xf]
      %v592 = vld [vmem:[%s1 + $0x4b4] sm:$0xf]
      %v593 = vld [vmem:[%s1 + $0x4b8] sm:$0xf]
      %v594 = vld [vmem:[%s1 + $0x4bc] sm:$0xf]
      %v595 = vld [vmem:[%s1 + $0x4c0] sm:$0xf]
      %v596 = vld [vmem:[%s1 + $0x4c4] sm:$0xf]
      %v597 = vld [vmem:[%s1 + $0x4c8] sm:$0xf]
      %v598 = vld [vmem:[%s1 + $0x4cc] sm:$0xf]
      %v599 = vld [vmem:[%s1 + $0x4d0] sm:$0xf]
      %v600 = vld [vmem:[%s1 + $0x4d4] sm:$0xf]
      %v601 = vld [vmem:[%s1 + $0x4d8] sm:$0xf]
      %v602 = vld [vmem:[%s1 + $0x4dc] sm:$0xf]
      %v603 = vld [vmem:[%s1 + $0x4e0] sm:$0xf]
      %v604 = vld [vmem:[%s1 + $0x4e4] sm:$0xf]
      %v605 = vld [vmem:[%s1 + $0x4e8] sm:$0xf]
      %v606 = vld [vmem:[%s1 + $0x4ec] sm:$0xf]
      %v607 = vld [vmem:[%s1 + $0x4f0] sm:$0xf]
      %v608 = vld [vmem:[%s1 + $0x4f4] sm:$0xf]
      %v609 = vld [vmem:[%s1 + $0x4f8] sm:$0xf]
      %v610 = vld [vmem:[%s1 + $0x4fc] sm:$0xf]
      %v611 = vld [vmem:[%s1 + $0x500] sm:$0xf]
      %v612 = vld [vmem:[%s1 + $0x504] sm:$0xf]
      %v613 = vld [vmem:[%s1 + $0x508] sm:$0xf]
      %v614 = vld [vmem:[%s1 + $0x50c] sm:$0xf]
      %v615 = vld [vmem:[%s1 + $0x510] sm:$0xf]
      %v616 = vld [vmem:[%s1 + $0x514] sm:$0xf]
      %v617 = vld [vmem:[%s1 + $0x518] sm:$0xf]
      %v618 = vld [vmem:[%s1 + $0x51c] sm:$0xf]
      %v619 = vld [vmem:[%s1 + $0x520] sm:$0xf]
      %v620 = vld [vmem:[%s1 + $0x524] sm:$0xf]
      %v621 = vld [vmem:[%s1 + $0x528] sm:$0xf]
      %v622 = vld [vmem:[%s1 + $0x52c] sm:$0xf]
      %v623 = vld [vmem:[%s1 + $0x530] sm:$0xf]
      %v624 = vld [vmem:[%s1 + $0x534] sm:$0xf]
      %v625 = vld [vmem:[%s1 + $0x538] sm:$0xf]
      %v626 = vld [vmem:[%s1 + $0x53c] sm:$0xf]
      %v627 = vld [vmem:[%s1 + $0x540] sm:$0xf]
      %v628 = vld [vmem:[%s1 + $0x544] sm:$0xf]
      %v629 = vld [vmem:[%s1 + $0x548] sm:$0xf]
      %v630 = vld [vmem:[%s1 + $0x54c] sm:$0xf]
      %v631 = vld [vmem:[%s1 + $0x550] sm:$0xf]
      %v632 = vld [vmem:[%s1 + $0x554] sm:$0xf]
      %v633 = vld [vmem:[%s1 + $0x558] sm:$0xf]
      %v634 = vld [vmem:[%s1 + $0x55c] sm:$0xf]
      %v635 = vld [vmem:[%s1 + $0x560] sm:$0xf]
      %v636 = vld [vmem:[%s1 + $0x564] sm:$0xf]
      %v637 = vld [vmem:[%s1 + $0x568] sm:$0xf]
      %v638 = vld [vmem:[%s1 + $0x56c] sm:$0xf]
      %v639 = vld [vmem:[%s1 + $0x570] sm:$0xf]
      %v640 = vld [vmem:[%s1 + $0x574] sm:$0xf]
      %v641 = vld [vmem:[%s1 + $0x578] sm:$0xf]
      %v642 = vld [vmem:[%s1 + $0x57c] sm:$0xf]
      %v643 = vld [vmem:[%s1 + $0x580] sm:$0xf]
      %v644 = vld [vmem:[%s1 + $0x584] sm:$0xf]
      %v645 = vld [vmem:[%s1 + $0x588] sm:$0xf]
      %v646 = vld [vmem:[%s1 + $0x58c] sm:$0xf]
      %v647 = vld [vmem:[%s1 + $0x590] sm:$0xf]
      %v648 = vld [vmem:[%s1 + $0x594] sm:$0xf]
      %v649 = vld [vmem:[%s1 + $0x598] sm:$0xf]
      %v650 = vld [vmem:[%s1 + $0x59c] sm:$0xf]
      %v651 = vld [vmem:[%s1 + $0x5a0] sm:$0xf]
      %v652 = vld [vmem:[%s1 + $0x5a4] sm:$0xf]
      %v653 = vld [vmem:[%s1 + $0x5a8] sm:$0xf]
      %v654 = vld [vmem:[%s1 + $0x5ac] sm:$0xf]
      %v655 = vld [vmem:[%s1 + $0x5b0] sm:$0xf]
      %v656 = vld [vmem:[%s1 + $0x5b4] sm:$0xf]
      %v657 = vld [vmem:[%s1 + $0x5b8] sm:$0xf]
      %v658 = vld [vmem:[%s1 + $0x5bc] sm:$0xf]
      %v659 = vld [vmem:[%s1 + $0x5c0] sm:$0xf]
      %v660 = vld [vmem:[%s1 + $0x5c4] sm:$0xf]
      %v661 = vld [vmem:[%s1 + $0x5c8] sm:$0xf]
      %v662 = vld [vmem:[%s1 + $0x5cc] sm:$0xf]
      %v663 = vld [vmem:[%s1 + $0x5d0] sm:$0xf]
      %v664 = vld [vmem:[%s1 + $0x5d4] sm:$0xf]
      %v665 = vld [vmem:[%s1 + $0x5d8] sm:$0xf]
      %v666 = vld [vmem:[%s1 + $0x5dc] sm:$0xf]
      %v667 = vld [vmem:[%s1 + $0x5e0] sm:$0xf]
      %v668 = vld [vmem:[%s1 + $0x5e4] sm:$0xf]
      %v669 = vld [vmem:[%s1 + $0x5e8] sm:$0xf]
      %v670 = vld [vmem:[%s1 + $0x5ec] sm:$0xf]
      %v671 = vld [vmem:[%s1 + $0x5f0] sm:$0xf]
      %v672 = vld [vmem:[%s1 + $0x5f4] sm:$0xf]
      %v673 = vld [vmem:[%s1 + $0x5f8] sm:$0xf]
      %v674 = vld [vmem:[%s1 + $0x5fc] sm:$0xf]
      %v675 = vld [vmem:[%s1 + $0x600] sm:$0xf]
      %v676 = vld [vmem:[%s1 + $0x604] sm:$0xf]
      %v677 = vld [vmem:[%s1 + $0x608] sm:$0xf]
      %v678 = vld [vmem:[%s1 + $0x60c] sm:$0xf]
      %v679 = vld [vmem:[%s1 + $0x610] sm:$0xf]
      %v680 = vld [vmem:[%s1 + $0x614] sm:$0xf]
      %v681 = vld [vmem:[%s1 + $0x618] sm:$0xf]
      %v682 = vld [vmem:[%s1 + $0x61c] sm:$0xf]
      %v683 = vld [vmem:[%s1 + $0x620] sm:$0xf]
      %v684 = vld [vmem:[%s1 + $0x624] sm:$0xf]
      %v685 = vld [vmem:[%s1 + $0x628] sm:$0xf]
      %v686 = vld [vmem:[%s1 + $0x62c] sm:$0xf]
      %v687 = vld [vmem:[%s1 + $0x630] sm:$0xf]
      %v688 = vld [vmem:[%s1 + $0x634] sm:$0xf]
      %v689 = vld [vmem:[%s1 + $0x638] sm:$0xf]
      %v690 = vld [vmem:[%s1 + $0x63c] sm:$0xf]
      %v691 = vld [vmem:[%s2] sm:$0x1]
      %v693 = vlaneseq
      %v694 = vshrl.u32 %v693, 7
      %v695 = vsub.s32 0, %v694
      %v696 = vrot.slane %v691, %v695
      %v711 = vunpack.c.l.b16 %v278
      %v712 = vunpack.c.h.b16 %v278
      %v713 = vunpack.c.l.b16 %v279
      %v714 = vunpack.c.h.b16 %v279
      %v715 = vunpack.c.l.b16 %v280
      %v716 = vunpack.c.h.b16 %v280
      %v717 = vunpack.c.l.b16 %v281
      %v718 = vunpack.c.h.b16 %v281
      %v719 = vunpack.c.l.b16 %v282
      %v720 = vunpack.c.h.b16 %v282
      %v721 = vunpack.c.l.b16 %v283
      %v722 = vunpack.c.h.b16 %v283
      %v723 = vunpack.c.l.b16 %v284
      %v724 = vunpack.c.h.b16 %v284
      %v725 = vunpack.c.l.b16 %v285
      %v726 = vunpack.c.h.b16 %v285
      %v727 = vunpack.c.l.b16 %v286
      %v728 = vunpack.c.h.b16 %v286
      %v729 = vunpack.c.l.b16 %v287
      %v730 = vunpack.c.h.b16 %v287
      %v731 = vunpack.c.l.b16 %v288
      %v732 = vunpack.c.h.b16 %v288
      %v733 = vunpack.c.l.b16 %v289
      %v734 = vunpack.c.h.b16 %v289
      %v735 = vunpack.c.l.b16 %v290
      %v736 = vpack.c.b16 %v711, %v711
      %v737 = vpack.c.b16 %v712, %v712
      %v738 = vpack.c.b16 %v713, %v713
      %v739 = vpack.c.b16 %v714, %v714
      %v740 = vpack.c.b16 %v715, %v715
      %v741 = vpack.c.b16 %v716, %v716
      %v742 = vpack.c.b16 %v717, %v717
      %v743 = vpack.c.b16 %v718, %v718
      %v744 = vpack.c.b16 %v719, %v719
      %v745 = vpack.c.b16 %v720, %v720
      %v746 = vpack.c.b16 %v721, %v721
      %v747 = vpack.c.b16 %v722, %v722
      %v748 = vpack.c.b16 %v723, %v723
      %v749 = vpack.c.b16 %v724, %v724
      %v750 = vpack.c.b16 %v725, %v725
      %v751 = vpack.c.b16 %v726, %v726
      %v752 = vpack.c.b16 %v727, %v727
      %v753 = vpack.c.b16 %v728, %v728
      %v754 = vpack.c.b16 %v729, %v729
      %v755 = vpack.c.b16 %v730, %v730
      %v756 = vpack.c.b16 %v731, %v731
      %v757 = vpack.c.b16 %v732, %v732
      %v758 = vpack.c.b16 %v733, %v733
      %v759 = vpack.c.b16 %v734, %v734
      %v760 = vpack.c.b16 %v735, %v735
      %v1186 = vunpack.c.l.b16 %v291
      %v1187 = vunpack.c.l.b16 %v292
      %v1188 = vunpack.c.l.b16 %v293
      %v1189 = vunpack.c.l.b16 %v294
      %v1190 = vunpack.c.l.b16 %v295
      %v1191 = vunpack.c.l.b16 %v296
      %v1192 = vunpack.c.l.b16 %v297
      %v1193 = vunpack.c.l.b16 %v298
      %v1194 = vunpack.c.l.b16 %v299
      %v1195 = vunpack.c.l.b16 %v300
      %v1196 = vunpack.c.l.b16 %v301
      %v1197 = vunpack.c.l.b16 %v302
      %v1198 = vunpack.c.l.b16 %v303
      %v1199 = vunpack.c.l.b16 %v304
      %v1200 = vunpack.c.l.b16 %v305
      %v1201 = vunpack.c.l.b16 %v306
      %v1202 = vunpack.c.l.b16 %v307
      %v1203 = vunpack.c.l.b16 %v308
      %v1204 = vunpack.c.l.b16 %v309
      %v1205 = vunpack.c.l.b16 %v310
      %v1206 = vunpack.c.l.b16 %v311
      %v1207 = vunpack.c.l.b16 %v312
      %v1208 = vunpack.c.l.b16 %v313
      %v1209 = vunpack.c.l.b16 %v314
      %v1210 = vunpack.c.l.b16 %v315
      %v1211 = vunpack.c.l.b16 %v316
      %v1212 = vunpack.c.l.b16 %v317
      %v1213 = vunpack.c.l.b16 %v318
      %v1214 = vunpack.c.l.b16 %v319
      %v1215 = vunpack.c.l.b16 %v320
      %v1216 = vunpack.c.l.b16 %v321
      %v1217 = vunpack.c.l.b16 %v322
      %v1218 = vunpack.c.l.b16 %v323
      %v1219 = vunpack.c.l.b16 %v324
      %v1220 = vunpack.c.l.b16 %v325
      %v1221 = vunpack.c.l.b16 %v326
      %v1222 = vunpack.c.l.b16 %v327
      %v1223 = vunpack.c.l.b16 %v328
      %v1224 = vunpack.c.l.b16 %v329
      %v1225 = vunpack.c.l.b16 %v330
      %v1226 = vunpack.c.l.b16 %v331
      %v1227 = vunpack.c.l.b16 %v332
      %v1228 = vunpack.c.l.b16 %v333
      %v1229 = vunpack.c.l.b16 %v334
      %v1230 = vunpack.c.l.b16 %v335
      %v1231 = vunpack.c.l.b16 %v336
      %v1232 = vunpack.c.l.b16 %v337
      %v1233 = vunpack.c.l.b16 %v338
      %v1234 = vunpack.c.l.b16 %v339
      %v1235 = vunpack.c.l.b16 %v340
      %v1236 = vunpack.c.l.b16 %v341
      %v1237 = vunpack.c.l.b16 %v342
      %v1238 = vunpack.c.l.b16 %v343
      %v1239 = vunpack.c.l.b16 %v344
      %v1240 = vunpack.c.l.b16 %v345
      %v1241 = vunpack.c.l.b16 %v346
      %v1242 = vunpack.c.l.b16 %v347
      %v1243 = vunpack.c.l.b16 %v348
      %v1244 = vunpack.c.l.b16 %v349
      %v1245 = vunpack.c.l.b16 %v350
      %v1246 = vunpack.c.l.b16 %v351
      %v1247 = vunpack.c.l.b16 %v352
      %v1248 = vunpack.c.l.b16 %v353
      %v1249 = vunpack.c.l.b16 %v354
      %v1250 = vunpack.c.l.b16 %v355
      %v1251 = vunpack.c.l.b16 %v356
      %v1252 = vunpack.c.l.b16 %v357
      %v1253 = vunpack.c.l.b16 %v358
      %v1254 = vunpack.c.l.b16 %v359
      %v1255 = vunpack.c.l.b16 %v360
      %v1256 = vunpack.c.l.b16 %v361
      %v1257 = vunpack.c.l.b16 %v362
      %v1258 = vunpack.c.l.b16 %v363
      %v1259 = vunpack.c.l.b16 %v364
      %v1260 = vunpack.c.l.b16 %v365
      %v1261 = vunpack.c.l.b16 %v366
      %v1262 = vunpack.c.l.b16 %v367
      %v1263 = vunpack.c.l.b16 %v368
      %v1264 = vunpack.c.l.b16 %v369
      %v1265 = vunpack.c.l.b16 %v370
      %v1266 = vunpack.c.l.b16 %v371
      %v1267 = vunpack.c.l.b16 %v372
      %v1268 = vunpack.c.l.b16 %v373
      %v1269 = vunpack.c.l.b16 %v374
      %v1270 = vunpack.c.l.b16 %v375
      %v1271 = vunpack.c.l.b16 %v376
      %v1272 = vunpack.c.l.b16 %v377
      %v1273 = vunpack.c.l.b16 %v378
      %v1274 = vunpack.c.l.b16 %v379
      %v1275 = vunpack.c.l.b16 %v380
      %v1276 = vunpack.c.l.b16 %v381
      %v1277 = vunpack.c.l.b16 %v382
      %v1278 = vunpack.c.l.b16 %v383
      %v1279 = vunpack.c.l.b16 %v384
      %v1280 = vunpack.c.l.b16 %v385
      %v1281 = vunpack.c.l.b16 %v386
      %v1282 = vunpack.c.l.b16 %v387
      %v1283 = vunpack.c.l.b16 %v388
      %v1284 = vunpack.c.l.b16 %v389
      %v1285 = vunpack.c.l.b16 %v390
      %v1286 = vunpack.c.l.b16 %v391
      %v1287 = vunpack.c.l.b16 %v392
      %v1288 = vunpack.c.l.b16 %v393
      %v1289 = vunpack.c.l.b16 %v394
      %v1290 = vunpack.c.l.b16 %v395
      %v1291 = vunpack.c.l.b16 %v396
      %v1292 = vunpack.c.l.b16 %v397
      %v1293 = vunpack.c.l.b16 %v398
      %v1294 = vunpack.c.l.b16 %v399
      %v1295 = vunpack.c.l.b16 %v400
      %v1296 = vunpack.c.l.b16 %v401
      %v1297 = vunpack.c.l.b16 %v402
      %v1298 = vunpack.c.l.b16 %v403
      %v1299 = vunpack.c.l.b16 %v404
      %v1300 = vunpack.c.l.b16 %v405
      %v1301 = vunpack.c.l.b16 %v406
      %v1302 = vunpack.c.l.b16 %v407
      %v1303 = vunpack.c.l.b16 %v408
      %v1304 = vunpack.c.l.b16 %v409
      %v1305 = vunpack.c.l.b16 %v410
      %v1306 = vunpack.c.l.b16 %v411
      %v1307 = vunpack.c.l.b16 %v412
      %v1308 = vunpack.c.l.b16 %v413
      %v1309 = vunpack.c.l.b16 %v414
      %v1310 = vunpack.c.l.b16 %v415
      %v1311 = vunpack.c.l.b16 %v416
      %v1312 = vunpack.c.l.b16 %v417
      %v1313 = vunpack.c.l.b16 %v418
      %v1314 = vunpack.c.l.b16 %v419
      %v1315 = vunpack.c.l.b16 %v420
      %v1316 = vunpack.c.l.b16 %v421
      %v1317 = vunpack.c.l.b16 %v422
      %v1318 = vunpack.c.l.b16 %v423
      %v1319 = vunpack.c.l.b16 %v424
      %v1320 = vunpack.c.l.b16 %v425
      %v1321 = vunpack.c.l.b16 %v426
      %v1322 = vunpack.c.l.b16 %v427
      %v1323 = vunpack.c.l.b16 %v428
      %v1324 = vunpack.c.l.b16 %v429
      %v1325 = vunpack.c.l.b16 %v430
      %v1326 = vunpack.c.l.b16 %v431
      %v1327 = vunpack.c.l.b16 %v432
      %v1328 = vunpack.c.l.b16 %v433
      %v1329 = vunpack.c.l.b16 %v434
      %v1330 = vunpack.c.l.b16 %v435
      %v1331 = vunpack.c.l.b16 %v436
      %v1332 = vunpack.c.l.b16 %v437
      %v1333 = vunpack.c.l.b16 %v438
      %v1334 = vunpack.c.l.b16 %v439
      %v1335 = vunpack.c.l.b16 %v440
      %v1336 = vunpack.c.l.b16 %v441
      %v1337 = vunpack.c.l.b16 %v442
      %v1338 = vunpack.c.l.b16 %v443
      %v1339 = vunpack.c.l.b16 %v444
      %v1340 = vunpack.c.l.b16 %v445
      %v1341 = vunpack.c.l.b16 %v446
      %v1342 = vunpack.c.l.b16 %v447
      %v1343 = vunpack.c.l.b16 %v448
      %v1344 = vunpack.c.l.b16 %v449
      %v1345 = vunpack.c.l.b16 %v450
      %v1346 = vunpack.c.l.b16 %v451
      %v1347 = vunpack.c.l.b16 %v452
      %v1348 = vunpack.c.l.b16 %v453
      %v1349 = vunpack.c.l.b16 %v454
      %v1350 = vunpack.c.l.b16 %v455
      %v1351 = vunpack.c.l.b16 %v456
      %v1352 = vunpack.c.l.b16 %v457
      %v1353 = vunpack.c.l.b16 %v458
      %v1354 = vunpack.c.l.b16 %v459
      %v1355 = vunpack.c.l.b16 %v460
      %v1356 = vunpack.c.l.b16 %v461
      %v1357 = vunpack.c.l.b16 %v462
      %v1358 = vunpack.c.l.b16 %v463
      %v1359 = vunpack.c.l.b16 %v464
      %v1360 = vunpack.c.l.b16 %v465
      %v1361 = vunpack.c.l.b16 %v466
      %v1362 = vunpack.c.l.b16 %v467
      %v1363 = vunpack.c.l.b16 %v468
      %v1364 = vunpack.c.l.b16 %v469
      %v1365 = vunpack.c.l.b16 %v470
      %v1366 = vunpack.c.l.b16 %v471
      %v1367 = vunpack.c.l.b16 %v472
      %v1368 = vunpack.c.l.b16 %v473
      %v1369 = vunpack.c.l.b16 %v474
      %v1370 = vunpack.c.l.b16 %v475
      %v1371 = vunpack.c.l.b16 %v476
      %v1372 = vunpack.c.l.b16 %v477
      %v1373 = vunpack.c.l.b16 %v478
      %v1374 = vunpack.c.l.b16 %v479
      %v1375 = vunpack.c.l.b16 %v480
      %v1376 = vunpack.c.l.b16 %v481
      %v1377 = vunpack.c.l.b16 %v482
      %v1378 = vunpack.c.l.b16 %v483
      %v1379 = vunpack.c.l.b16 %v484
      %v1380 = vunpack.c.l.b16 %v485
      %v1381 = vunpack.c.l.b16 %v486
      %v1382 = vunpack.c.l.b16 %v487
      %v1383 = vunpack.c.l.b16 %v488
      %v1384 = vunpack.c.l.b16 %v489
      %v1385 = vunpack.c.l.b16 %v490
      %v1386 = vunpack.c.l.b16 %v491
      %v1387 = vunpack.c.l.b16 %v492
      %v1388 = vunpack.c.l.b16 %v493
      %v1389 = vunpack.c.l.b16 %v494
      %v1390 = vunpack.c.l.b16 %v495
      %v1391 = vunpack.c.l.b16 %v496
      %v1392 = vunpack.c.l.b16 %v497
      %v1393 = vunpack.c.l.b16 %v498
      %v1394 = vunpack.c.l.b16 %v499
      %v1395 = vunpack.c.l.b16 %v500
      %v1396 = vunpack.c.l.b16 %v501
      %v1397 = vunpack.c.l.b16 %v502
      %v1398 = vunpack.c.l.b16 %v503
      %v1399 = vunpack.c.l.b16 %v504
      %v1400 = vunpack.c.l.b16 %v505
      %v1401 = vunpack.c.l.b16 %v506
      %v1402 = vunpack.c.l.b16 %v507
      %v1403 = vunpack.c.l.b16 %v508
      %v1404 = vunpack.c.l.b16 %v509
      %v1405 = vunpack.c.l.b16 %v510
      %v1406 = vunpack.c.l.b16 %v511
      %v1407 = vunpack.c.l.b16 %v512
      %v1408 = vunpack.c.l.b16 %v513
      %v1409 = vunpack.c.l.b16 %v514
      %v1410 = vunpack.c.l.b16 %v515
      %v1411 = vunpack.c.l.b16 %v516
      %v1412 = vunpack.c.l.b16 %v517
      %v1413 = vunpack.c.l.b16 %v518
      %v1414 = vunpack.c.l.b16 %v519
      %v1415 = vunpack.c.l.b16 %v520
      %v1416 = vunpack.c.l.b16 %v521
      %v1417 = vunpack.c.l.b16 %v522
      %v1418 = vunpack.c.l.b16 %v523
      %v1419 = vunpack.c.l.b16 %v524
      %v1420 = vunpack.c.l.b16 %v525
      %v1421 = vunpack.c.l.b16 %v526
      %v1422 = vunpack.c.l.b16 %v527
      %v1423 = vunpack.c.l.b16 %v528
      %v1424 = vunpack.c.l.b16 %v529
      %v1425 = vunpack.c.l.b16 %v530
      %v1426 = vunpack.c.l.b16 %v531
      %v1427 = vunpack.c.l.b16 %v532
      %v1428 = vunpack.c.l.b16 %v533
      %v1429 = vunpack.c.l.b16 %v534
      %v1430 = vunpack.c.l.b16 %v535
      %v1431 = vunpack.c.l.b16 %v536
      %v1432 = vunpack.c.l.b16 %v537
      %v1433 = vunpack.c.l.b16 %v538
      %v1434 = vunpack.c.l.b16 %v539
      %v1435 = vunpack.c.l.b16 %v540
      %v1436 = vunpack.c.l.b16 %v541
      %v1437 = vunpack.c.l.b16 %v542
      %v1438 = vunpack.c.l.b16 %v543
      %v1439 = vunpack.c.l.b16 %v544
      %v1440 = vunpack.c.l.b16 %v545
      %v1441 = vunpack.c.l.b16 %v546
      %v1442 = vunpack.c.l.b16 %v547
      %v1443 = vunpack.c.l.b16 %v548
      %v1444 = vunpack.c.l.b16 %v549
      %v1445 = vunpack.c.l.b16 %v550
      %v1446 = vunpack.c.l.b16 %v551
      %v1447 = vunpack.c.l.b16 %v552
      %v1448 = vunpack.c.l.b16 %v553
      %v1449 = vunpack.c.l.b16 %v554
      %v1450 = vunpack.c.l.b16 %v555
      %v1451 = vunpack.c.l.b16 %v556
      %v1452 = vunpack.c.l.b16 %v557
      %v1453 = vunpack.c.l.b16 %v558
      %v1454 = vunpack.c.l.b16 %v559
      %v1455 = vunpack.c.l.b16 %v560
      %v1456 = vunpack.c.l.b16 %v561
      %v1457 = vunpack.c.l.b16 %v562
      %v1458 = vunpack.c.l.b16 %v563
      %v1459 = vunpack.c.l.b16 %v564
      %v1460 = vunpack.c.l.b16 %v565
      %v1461 = vunpack.c.l.b16 %v566
      %v1462 = vunpack.c.l.b16 %v567
      %v1463 = vunpack.c.l.b16 %v568
      %v1464 = vunpack.c.l.b16 %v569
      %v1465 = vunpack.c.l.b16 %v570
      %v1466 = vunpack.c.l.b16 %v571
      %v1467 = vunpack.c.l.b16 %v572
      %v1468 = vunpack.c.l.b16 %v573
      %v1469 = vunpack.c.l.b16 %v574
      %v1470 = vunpack.c.l.b16 %v575
      %v1471 = vunpack.c.l.b16 %v576
      %v1472 = vunpack.c.l.b16 %v577
      %v1473 = vunpack.c.l.b16 %v578
      %v1474 = vunpack.c.l.b16 %v579
      %v1475 = vunpack.c.l.b16 %v580
      %v1476 = vunpack.c.l.b16 %v581
      %v1477 = vunpack.c.l.b16 %v582
      %v1478 = vunpack.c.l.b16 %v583
      %v1479 = vunpack.c.l.b16 %v584
      %v1480 = vunpack.c.l.b16 %v585
      %v1481 = vunpack.c.l.b16 %v586
      %v1482 = vunpack.c.l.b16 %v587
      %v1483 = vunpack.c.l.b16 %v588
      %v1484 = vunpack.c.l.b16 %v589
      %v1485 = vunpack.c.l.b16 %v590
      %v1486 = vunpack.c.l.b16 %v591
      %v1487 = vunpack.c.l.b16 %v592
      %v1488 = vunpack.c.l.b16 %v593
      %v1489 = vunpack.c.l.b16 %v594
      %v1490 = vunpack.c.l.b16 %v595
      %v1491 = vunpack.c.l.b16 %v596
      %v1492 = vunpack.c.l.b16 %v597
      %v1493 = vunpack.c.l.b16 %v598
      %v1494 = vunpack.c.l.b16 %v599
      %v1495 = vunpack.c.l.b16 %v600
      %v1496 = vunpack.c.l.b16 %v601
      %v1497 = vunpack.c.l.b16 %v602
      %v1498 = vunpack.c.l.b16 %v603
      %v1499 = vunpack.c.l.b16 %v604
      %v1500 = vunpack.c.l.b16 %v605
      %v1501 = vunpack.c.l.b16 %v606
      %v1502 = vunpack.c.l.b16 %v607
      %v1503 = vunpack.c.l.b16 %v608
      %v1504 = vunpack.c.l.b16 %v609
      %v1505 = vunpack.c.l.b16 %v610
      %v1506 = vunpack.c.l.b16 %v611
      %v1507 = vunpack.c.l.b16 %v612
      %v1508 = vunpack.c.l.b16 %v613
      %v1509 = vunpack.c.l.b16 %v614
      %v1510 = vunpack.c.l.b16 %v615
      %v1511 = vunpack.c.l.b16 %v616
      %v1512 = vunpack.c.l.b16 %v617
      %v1513 = vunpack.c.l.b16 %v618
      %v1514 = vunpack.c.l.b16 %v619
      %v1515 = vunpack.c.l.b16 %v620
      %v1516 = vunpack.c.l.b16 %v621
      %v1517 = vunpack.c.l.b16 %v622
      %v1518 = vunpack.c.l.b16 %v623
      %v1519 = vunpack.c.l.b16 %v624
      %v1520 = vunpack.c.l.b16 %v625
      %v1521 = vunpack.c.l.b16 %v626
      %v1522 = vunpack.c.l.b16 %v627
      %v1523 = vunpack.c.l.b16 %v628
      %v1524 = vunpack.c.l.b16 %v629
      %v1525 = vunpack.c.l.b16 %v630
      %v1526 = vunpack.c.l.b16 %v631
      %v1527 = vunpack.c.l.b16 %v632
      %v1528 = vunpack.c.l.b16 %v633
      %v1529 = vunpack.c.l.b16 %v634
      %v1530 = vunpack.c.l.b16 %v635
      %v1531 = vunpack.c.l.b16 %v636
      %v1532 = vunpack.c.l.b16 %v637
      %v1533 = vunpack.c.l.b16 %v638
      %v1534 = vunpack.c.l.b16 %v639
      %v1535 = vunpack.c.l.b16 %v640
      %v1536 = vunpack.c.l.b16 %v641
      %v1537 = vunpack.c.l.b16 %v642
      %v1538 = vunpack.c.l.b16 %v643
      %v1539 = vunpack.c.l.b16 %v644
      %v1540 = vunpack.c.l.b16 %v645
      %v1541 = vunpack.c.l.b16 %v646
      %v1542 = vunpack.c.l.b16 %v647
      %v1543 = vunpack.c.l.b16 %v648
      %v1544 = vunpack.c.l.b16 %v649
      %v1545 = vunpack.c.l.b16 %v650
      %v1546 = vunpack.c.l.b16 %v651
      %v1547 = vunpack.c.l.b16 %v652
      %v1548 = vunpack.c.l.b16 %v653
      %v1549 = vunpack.c.l.b16 %v654
      %v1550 = vunpack.c.l.b16 %v655
      %v1551 = vunpack.c.l.b16 %v656
      %v1552 = vunpack.c.l.b16 %v657
      %v1553 = vunpack.c.l.b16 %v658
      %v1554 = vunpack.c.l.b16 %v659
      %v1555 = vunpack.c.l.b16 %v660
      %v1556 = vunpack.c.l.b16 %v661
      %v1557 = vunpack.c.l.b16 %v662
      %v1558 = vunpack.c.l.b16 %v663
      %v1559 = vunpack.c.l.b16 %v664
      %v1560 = vunpack.c.l.b16 %v665
      %v1561 = vunpack.c.l.b16 %v666
      %v1562 = vunpack.c.l.b16 %v667
      %v1563 = vunpack.c.l.b16 %v668
      %v1564 = vunpack.c.l.b16 %v669
      %v1565 = vunpack.c.l.b16 %v670
      %v1566 = vunpack.c.l.b16 %v671
      %v1567 = vunpack.c.l.b16 %v672
      %v1568 = vunpack.c.l.b16 %v673
      %v1569 = vunpack.c.l.b16 %v674
      %v1570 = vunpack.c.l.b16 %v675
      %v1571 = vunpack.c.l.b16 %v676
      %v1572 = vunpack.c.l.b16 %v677
      %v1573 = vunpack.c.l.b16 %v678
      %v1574 = vunpack.c.l.b16 %v679
      %v1575 = vunpack.c.l.b16 %v680
      %v1576 = vunpack.c.l.b16 %v681
      %v1577 = vunpack.c.l.b16 %v682
      %v1578 = vunpack.c.l.b16 %v683
      %v1579 = vunpack.c.l.b16 %v684
      %v1580 = vunpack.c.l.b16 %v685
      %v1581 = vunpack.c.l.b16 %v686
      %v1582 = vunpack.c.l.b16 %v687
      %v1583 = vunpack.c.l.b16 %v688
      %v1584 = vunpack.c.l.b16 %v689
      %v1585 = vunpack.c.l.b16 %v690
      %v1586 = vpack.c.b16 %v1187, %v1186
      %v1587 = vpack.c.b16 %v1189, %v1188
      %v1588 = vpack.c.b16 %v1191, %v1190
      %v1589 = vpack.c.b16 %v1193, %v1192
      %v1590 = vpack.c.b16 %v1195, %v1194
      %v1591 = vpack.c.b16 %v1197, %v1196
      %v1592 = vpack.c.b16 %v1199, %v1198
      %v1593 = vpack.c.b16 %v1201, %v1200
      %v1594 = vpack.c.b16 %v1203, %v1202
      %v1595 = vpack.c.b16 %v1205, %v1204
      %v1596 = vpack.c.b16 %v1207, %v1206
      %v1597 = vpack.c.b16 %v1209, %v1208
      %v1598 = vpack.c.b16 %v1211, %v1210
      %v1599 = vpack.c.b16 %v1213, %v1212
      %v1600 = vpack.c.b16 %v1215, %v1214
      %v1601 = vpack.c.b16 %v1217, %v1216
      %v1602 = vpack.c.b16 %v1219, %v1218
      %v1603 = vpack.c.b16 %v1221, %v1220
      %v1604 = vpack.c.b16 %v1223, %v1222
      %v1605 = vpack.c.b16 %v1225, %v1224
      %v1606 = vpack.c.b16 %v1227, %v1226
      %v1607 = vpack.c.b16 %v1229, %v1228
      %v1608 = vpack.c.b16 %v1231, %v1230
      %v1609 = vpack.c.b16 %v1233, %v1232
      %v1610 = vpack.c.b16 %v1235, %v1234
      %v1611 = vpack.c.b16 %v1237, %v1236
      %v1612 = vpack.c.b16 %v1239, %v1238
      %v1613 = vpack.c.b16 %v1241, %v1240
      %v1614 = vpack.c.b16 %v1243, %v1242
      %v1615 = vpack.c.b16 %v1245, %v1244
      %v1616 = vpack.c.b16 %v1247, %v1246
      %v1617 = vpack.c.b16 %v1249, %v1248
      %v1618 = vpack.c.b16 %v1251, %v1250
      %v1619 = vpack.c.b16 %v1253, %v1252
      %v1620 = vpack.c.b16 %v1255, %v1254
      %v1621 = vpack.c.b16 %v1257, %v1256
      %v1622 = vpack.c.b16 %v1259, %v1258
      %v1623 = vpack.c.b16 %v1261, %v1260
      %v1624 = vpack.c.b16 %v1263, %v1262
      %v1625 = vpack.c.b16 %v1265, %v1264
      %v1626 = vpack.c.b16 %v1267, %v1266
      %v1627 = vpack.c.b16 %v1269, %v1268
      %v1628 = vpack.c.b16 %v1271, %v1270
      %v1629 = vpack.c.b16 %v1273, %v1272
      %v1630 = vpack.c.b16 %v1275, %v1274
      %v1631 = vpack.c.b16 %v1277, %v1276
      %v1632 = vpack.c.b16 %v1279, %v1278
      %v1633 = vpack.c.b16 %v1281, %v1280
      %v1634 = vpack.c.b16 %v1283, %v1282
      %v1635 = vpack.c.b16 %v1285, %v1284
      %v1636 = vpack.c.b16 %v1287, %v1286
      %v1637 = vpack.c.b16 %v1289, %v1288
      %v1638 = vpack.c.b16 %v1291, %v1290
      %v1639 = vpack.c.b16 %v1293, %v1292
      %v1640 = vpack.c.b16 %v1295, %v1294
      %v1641 = vpack.c.b16 %v1297, %v1296
      %v1642 = vpack.c.b16 %v1299, %v1298
      %v1643 = vpack.c.b16 %v1301, %v1300
      %v1644 = vpack.c.b16 %v1303, %v1302
      %v1645 = vpack.c.b16 %v1305, %v1304
      %v1646 = vpack.c.b16 %v1307, %v1306
      %v1647 = vpack.c.b16 %v1309, %v1308
      %v1648 = vpack.c.b16 %v1311, %v1310
      %v1649 = vpack.c.b16 %v1313, %v1312
      %v1650 = vpack.c.b16 %v1315, %v1314
      %v1651 = vpack.c.b16 %v1317, %v1316
      %v1652 = vpack.c.b16 %v1319, %v1318
      %v1653 = vpack.c.b16 %v1321, %v1320
      %v1654 = vpack.c.b16 %v1323, %v1322
      %v1655 = vpack.c.b16 %v1325, %v1324
      %v1656 = vpack.c.b16 %v1327, %v1326
      %v1657 = vpack.c.b16 %v1329, %v1328
      %v1658 = vpack.c.b16 %v1331, %v1330
      %v1659 = vpack.c.b16 %v1333, %v1332
      %v1660 = vpack.c.b16 %v1335, %v1334
      %v1661 = vpack.c.b16 %v1337, %v1336
      %v1662 = vpack.c.b16 %v1339, %v1338
      %v1663 = vpack.c.b16 %v1341, %v1340
      %v1664 = vpack.c.b16 %v1343, %v1342
      %v1665 = vpack.c.b16 %v1345, %v1344
      %v1666 = vpack.c.b16 %v1347, %v1346
      %v1667 = vpack.c.b16 %v1349, %v1348
      %v1668 = vpack.c.b16 %v1351, %v1350
      %v1669 = vpack.c.b16 %v1353, %v1352
      %v1670 = vpack.c.b16 %v1355, %v1354
      %v1671 = vpack.c.b16 %v1357, %v1356
      %v1672 = vpack.c.b16 %v1359, %v1358
      %v1673 = vpack.c.b16 %v1361, %v1360
      %v1674 = vpack.c.b16 %v1363, %v1362
      %v1675 = vpack.c.b16 %v1365, %v1364
      %v1676 = vpack.c.b16 %v1367, %v1366
      %v1677 = vpack.c.b16 %v1369, %v1368
      %v1678 = vpack.c.b16 %v1371, %v1370
      %v1679 = vpack.c.b16 %v1373, %v1372
      %v1680 = vpack.c.b16 %v1375, %v1374
      %v1681 = vpack.c.b16 %v1377, %v1376
      %v1682 = vpack.c.b16 %v1379, %v1378
      %v1683 = vpack.c.b16 %v1381, %v1380
      %v1684 = vpack.c.b16 %v1383, %v1382
      %v1685 = vpack.c.b16 %v1385, %v1384
      %v1686 = vpack.c.b16 %v1387, %v1386
      %v1687 = vpack.c.b16 %v1389, %v1388
      %v1688 = vpack.c.b16 %v1391, %v1390
      %v1689 = vpack.c.b16 %v1393, %v1392
      %v1690 = vpack.c.b16 %v1395, %v1394
      %v1691 = vpack.c.b16 %v1397, %v1396
      %v1692 = vpack.c.b16 %v1399, %v1398
      %v1693 = vpack.c.b16 %v1401, %v1400
      %v1694 = vpack.c.b16 %v1403, %v1402
      %v1695 = vpack.c.b16 %v1405, %v1404
      %v1696 = vpack.c.b16 %v1407, %v1406
      %v1697 = vpack.c.b16 %v1409, %v1408
      %v1698 = vpack.c.b16 %v1411, %v1410
      %v1699 = vpack.c.b16 %v1413, %v1412
      %v1700 = vpack.c.b16 %v1415, %v1414
      %v1701 = vpack.c.b16 %v1417, %v1416
      %v1702 = vpack.c.b16 %v1419, %v1418
      %v1703 = vpack.c.b16 %v1421, %v1420
      %v1704 = vpack.c.b16 %v1423, %v1422
      %v1705 = vpack.c.b16 %v1425, %v1424
      %v1706 = vpack.c.b16 %v1427, %v1426
      %v1707 = vpack.c.b16 %v1429, %v1428
      %v1708 = vpack.c.b16 %v1431, %v1430
      %v1709 = vpack.c.b16 %v1433, %v1432
      %v1710 = vpack.c.b16 %v1435, %v1434
      %v1711 = vpack.c.b16 %v1437, %v1436
      %v1712 = vpack.c.b16 %v1439, %v1438
      %v1713 = vpack.c.b16 %v1441, %v1440
      %v1714 = vpack.c.b16 %v1443, %v1442
      %v1715 = vpack.c.b16 %v1445, %v1444
      %v1716 = vpack.c.b16 %v1447, %v1446
      %v1717 = vpack.c.b16 %v1449, %v1448
      %v1718 = vpack.c.b16 %v1451, %v1450
      %v1719 = vpack.c.b16 %v1453, %v1452
      %v1720 = vpack.c.b16 %v1455, %v1454
      %v1721 = vpack.c.b16 %v1457, %v1456
      %v1722 = vpack.c.b16 %v1459, %v1458
      %v1723 = vpack.c.b16 %v1461, %v1460
      %v1724 = vpack.c.b16 %v1463, %v1462
      %v1725 = vpack.c.b16 %v1465, %v1464
      %v1726 = vpack.c.b16 %v1467, %v1466
      %v1727 = vpack.c.b16 %v1469, %v1468
      %v1728 = vpack.c.b16 %v1471, %v1470
      %v1729 = vpack.c.b16 %v1473, %v1472
      %v1730 = vpack.c.b16 %v1475, %v1474
      %v1731 = vpack.c.b16 %v1477, %v1476
      %v1732 = vpack.c.b16 %v1479, %v1478
      %v1733 = vpack.c.b16 %v1481, %v1480
      %v1734 = vpack.c.b16 %v1483, %v1482
      %v1735 = vpack.c.b16 %v1485, %v1484
      %v1736 = vpack.c.b16 %v1487, %v1486
      %v1737 = vpack.c.b16 %v1489, %v1488
      %v1738 = vpack.c.b16 %v1491, %v1490
      %v1739 = vpack.c.b16 %v1493, %v1492
      %v1740 = vpack.c.b16 %v1495, %v1494
      %v1741 = vpack.c.b16 %v1497, %v1496
      %v1742 = vpack.c.b16 %v1499, %v1498
      %v1743 = vpack.c.b16 %v1501, %v1500
      %v1744 = vpack.c.b16 %v1503, %v1502
      %v1745 = vpack.c.b16 %v1505, %v1504
      %v1746 = vpack.c.b16 %v1507, %v1506
      %v1747 = vpack.c.b16 %v1509, %v1508
      %v1748 = vpack.c.b16 %v1511, %v1510
      %v1749 = vpack.c.b16 %v1513, %v1512
      %v1750 = vpack.c.b16 %v1515, %v1514
      %v1751 = vpack.c.b16 %v1517, %v1516
      %v1752 = vpack.c.b16 %v1519, %v1518
      %v1753 = vpack.c.b16 %v1521, %v1520
      %v1754 = vpack.c.b16 %v1523, %v1522
      %v1755 = vpack.c.b16 %v1525, %v1524
      %v1756 = vpack.c.b16 %v1527, %v1526
      %v1757 = vpack.c.b16 %v1529, %v1528
      %v1758 = vpack.c.b16 %v1531, %v1530
      %v1759 = vpack.c.b16 %v1533, %v1532
      %v1760 = vpack.c.b16 %v1535, %v1534
      %v1761 = vpack.c.b16 %v1537, %v1536
      %v1762 = vpack.c.b16 %v1539, %v1538
      %v1763 = vpack.c.b16 %v1541, %v1540
      %v1764 = vpack.c.b16 %v1543, %v1542
      %v1765 = vpack.c.b16 %v1545, %v1544
      %v1766 = vpack.c.b16 %v1547, %v1546
      %v1767 = vpack.c.b16 %v1549, %v1548
      %v1768 = vpack.c.b16 %v1551, %v1550
      %v1769 = vpack.c.b16 %v1553, %v1552
      %v1770 = vpack.c.b16 %v1555, %v1554
      %v1771 = vpack.c.b16 %v1557, %v1556
      %v1772 = vpack.c.b16 %v1559, %v1558
      %v1773 = vpack.c.b16 %v1561, %v1560
      %v1774 = vpack.c.b16 %v1563, %v1562
      %v1775 = vpack.c.b16 %v1565, %v1564
      %v1776 = vpack.c.b16 %v1567, %v1566
      %v1777 = vpack.c.b16 %v1569, %v1568
      %v1778 = vpack.c.b16 %v1571, %v1570
      %v1779 = vpack.c.b16 %v1573, %v1572
      %v1780 = vpack.c.b16 %v1575, %v1574
      %v1781 = vpack.c.b16 %v1577, %v1576
      %v1782 = vpack.c.b16 %v1579, %v1578
      %v1783 = vpack.c.b16 %v1581, %v1580
      %v1784 = vpack.c.b16 %v1583, %v1582
      %v1785 = vpack.c.b16 %v1585, %v1584
      %1986 = vmatprep.subr.bf16.mxu0 0
      %1987 = vmatpush1.bf16.msra.mxu0 %v1586
      %1988 = vmatprep.subr.bf16.mxu0 0
      %1989 = vmatpush1.bf16.msra.mxu0 %v1587
      %1990 = vmatprep.subr.bf16.mxu0 0
      %1991 = vmatpush1.bf16.msra.mxu0 %v1588
      %1992 = vmatprep.subr.bf16.mxu0 0
      %1993 = vmatpush1.bf16.msra.mxu0 %v1589
      %1994 = vmatprep.subr.bf16.mxu0 0
      %1995 = vmatpush1.bf16.msra.mxu0 %v1590
      %1996 = vmatprep.subr.bf16.mxu0 0
      %1997 = vmatpush1.bf16.msra.mxu0 %v1591
      %1998 = vmatprep.subr.bf16.mxu0 0
      %1999 = vmatpush1.bf16.msra.mxu0 %v1592
      %2000 = vmatprep.subr.bf16.mxu0 0
      %2001 = vmatpush1.bf16.msra.mxu0 %v1593
      %2002 = vmatprep.subr.bf16.mxu0 0
      %2003 = vmatpush1.bf16.msra.mxu0 %v1594
      %2004 = vmatprep.subr.bf16.mxu0 0
      %2005 = vmatpush1.bf16.msra.mxu0 %v1595
      %2006 = vmatprep.subr.bf16.mxu0 0
      %2007 = vmatpush1.bf16.msra.mxu0 %v1596
      %2008 = vmatprep.subr.bf16.mxu0 0
      %2009 = vmatpush1.bf16.msra.mxu0 %v1597
      %2010 = vmatprep.subr.bf16.mxu0 0
      %2011 = vmatpush1.bf16.msra.mxu0 %v1598
      %2012 = vmatprep.subr.bf16.mxu0 0
      %2013 = vmatpush1.bf16.msra.mxu0 %v1599
      %2014 = vmatprep.subr.bf16.mxu0 0
      %2015 = vmatpush1.bf16.msra.mxu0 %v1600
      %2016 = vmatprep.subr.bf16.mxu0 0
      %2017 = vmatpush1.bf16.msra.mxu0 %v1601
      %2018 = vmatprep.mubr.bf16.mxu0 %v737
      %2019 = vmatmul.mubr.bf16.gmra.mrb[0].mxu0 %v736
      %v2020 = vpop.f32.mrb[0].mxu0
      %v2021 = vadd.f32 %v696, %v2020
      %v2022 = vpop.f32.mrb[0].mxu0
      %v2023 = vpop.f32.mrb[0].mxu0
      %v2024 = vpop.f32.mrb[0].mxu0
      %2025 = vdwg.mxu0
      %2026 = vmatprep.subr.bf16.mxu0 0
      %2027 = vmatpush1.bf16.msra.mxu0 %v1602
      %2028 = vmatprep.subr.bf16.mxu0 0
      %2029 = vmatpush1.bf16.msra.mxu0 %v1603
      %2030 = vmatprep.subr.bf16.mxu0 0
      %2031 = vmatpush1.bf16.msra.mxu0 %v1604
      %2032 = vmatprep.subr.bf16.mxu0 0
      %2033 = vmatpush1.bf16.msra.mxu0 %v1605
      %2034 = vmatprep.subr.bf16.mxu0 0
      %2035 = vmatpush1.bf16.msra.mxu0 %v1606
      %2036 = vmatprep.subr.bf16.mxu0 0
      %2037 = vmatpush1.bf16.msra.mxu0 %v1607
      %2038 = vmatprep.subr.bf16.mxu0 0
      %2039 = vmatpush1.bf16.msra.mxu0 %v1608
      %2040 = vmatprep.subr.bf16.mxu0 0
      %2041 = vmatpush1.bf16.msra.mxu0 %v1609
      %2042 = vmatprep.subr.bf16.mxu0 0
      %2043 = vmatpush1.bf16.msra.mxu0 %v1610
      %2044 = vmatprep.subr.bf16.mxu0 0
      %2045 = vmatpush1.bf16.msra.mxu0 %v1611
      %2046 = vmatprep.subr.bf16.mxu0 0
      %2047 = vmatpush1.bf16.msra.mxu0 %v1612
      %2048 = vmatprep.subr.bf16.mxu0 0
      %2049 = vmatpush1.bf16.msra.mxu0 %v1613
      %2050 = vmatprep.subr.bf16.mxu0 0
      %2051 = vmatpush1.bf16.msra.mxu0 %v1614
      %2052 = vmatprep.subr.bf16.mxu0 0
      %2053 = vmatpush1.bf16.msra.mxu0 %v1615
      %2054 = vmatprep.subr.bf16.mxu0 0
      %2055 = vmatpush1.bf16.msra.mxu0 %v1616
      %2056 = vmatprep.subr.bf16.mxu0 0
      %2057 = vmatpush1.bf16.msra.mxu0 %v1617
      %2058 = vmatprep.mubr.bf16.mxu0 %v739
      %2059 = vmatmul.mubr.bf16.gmra.mrb[0].mxu0 %v738
      %v2060 = vpop.f32.mrb[0].mxu0
      %v2061 = vadd.f32 %v2021, %v2060
      %v2062 = vpop.f32.mrb[0].mxu0
      %v2063 = vpop.f32.mrb[0].mxu0
      %v2064 = vpop.f32.mrb[0].mxu0
      %2065 = vdwg.mxu0
      %2066 = vmatprep.subr.bf16.mxu0 0
      %2067 = vmatpush1.bf16.msra.mxu0 %v1618
      %2068 = vmatprep.subr.bf16.mxu0 0
      %2069 = vmatpush1.bf16.msra.mxu0 %v1619
      %2070 = vmatprep.subr.bf16.mxu0 0
      %2071 = vmatpush1.bf16.msra.mxu0 %v1620
      %2072 = vmatprep.subr.bf16.mxu0 0
      %2073 = vmatpush1.bf16.msra.mxu0 %v1621
      %2074 = vmatprep.subr.bf16.mxu0 0
      %2075 = vmatpush1.bf16.msra.mxu0 %v1622
      %2076 = vmatprep.subr.bf16.mxu0 0
      %2077 = vmatpush1.bf16.msra.mxu0 %v1623
      %2078 = vmatprep.subr.bf16.mxu0 0
      %2079 = vmatpush1.bf16.msra.mxu0 %v1624
      %2080 = vmatprep.subr.bf16.mxu0 0
      %2081 = vmatpush1.bf16.msra.mxu0 %v1625
      %2082 = vmatprep.subr.bf16.mxu0 0
      %2083 = vmatpush1.bf16.msra.mxu0 %v1626
      %2084 = vmatprep.subr.bf16.mxu0 0
      %2085 = vmatpush1.bf16.msra.mxu0 %v1627
      %2086 = vmatprep.subr.bf16.mxu0 0
      %2087 = vmatpush1.bf16.msra.mxu0 %v1628
      %2088 = vmatprep.subr.bf16.mxu0 0
      %2089 = vmatpush1.bf16.msra.mxu0 %v1629
      %2090 = vmatprep.subr.bf16.mxu0 0
      %2091 = vmatpush1.bf16.msra.mxu0 %v1630
      %2092 = vmatprep.subr.bf16.mxu0 0
      %2093 = vmatpush1.bf16.msra.mxu0 %v1631
      %2094 = vmatprep.subr.bf16.mxu0 0
      %2095 = vmatpush1.bf16.msra.mxu0 %v1632
      %2096 = vmatprep.subr.bf16.mxu0 0
      %2097 = vmatpush1.bf16.msra.mxu0 %v1633
      %2098 = vmatprep.mubr.bf16.mxu0 %v741
      %2099 = vmatmul.mubr.bf16.gmra.mrb[0].mxu0 %v740
      %v2100 = vpop.f32.mrb[0].mxu0
      %v2101 = vadd.f32 %v2061, %v2100
      %v2102 = vpop.f32.mrb[0].mxu0
      %v2103 = vpop.f32.mrb[0].mxu0
      %v2104 = vpop.f32.mrb[0].mxu0
      %2105 = vdwg.mxu0
      %2106 = vmatprep.subr.bf16.mxu0 0
      %2107 = vmatpush1.bf16.msra.mxu0 %v1634
      %2108 = vmatprep.subr.bf16.mxu0 0
      %2109 = vmatpush1.bf16.msra.mxu0 %v1635
      %2110 = vmatprep.subr.bf16.mxu0 0
      %2111 = vmatpush1.bf16.msra.mxu0 %v1636
      %2112 = vmatprep.subr.bf16.mxu0 0
      %2113 = vmatpush1.bf16.msra.mxu0 %v1637
      %2114 = vmatprep.subr.bf16.mxu0 0
      %2115 = vmatpush1.bf16.msra.mxu0 %v1638
      %2116 = vmatprep.subr.bf16.mxu0 0
      %2117 = vmatpush1.bf16.msra.mxu0 %v1639
      %2118 = vmatprep.subr.bf16.mxu0 0
      %2119 = vmatpush1.bf16.msra.mxu0 %v1640
      %2120 = vmatprep.subr.bf16.mxu0 0
      %2121 = vmatpush1.bf16.msra.mxu0 %v1641
      %2122 = vmatprep.subr.bf16.mxu0 0
      %2123 = vmatpush1.bf16.msra.mxu0 %v1642
      %2124 = vmatprep.subr.bf16.mxu0 0
      %2125 = vmatpush1.bf16.msra.mxu0 %v1643
      %2126 = vmatprep.subr.bf16.mxu0 0
      %2127 = vmatpush1.bf16.msra.mxu0 %v1644
      %2128 = vmatprep.subr.bf16.mxu0 0
      %2129 = vmatpush1.bf16.msra.mxu0 %v1645
      %2130 = vmatprep.subr.bf16.mxu0 0
      %2131 = vmatpush1.bf16.msra.mxu0 %v1646
      %2132 = vmatprep.subr.bf16.mxu0 0
      %2133 = vmatpush1.bf16.msra.mxu0 %v1647
      %2134 = vmatprep.subr.bf16.mxu0 0
      %2135 = vmatpush1.bf16.msra.mxu0 %v1648
      %2136 = vmatprep.subr.bf16.mxu0 0
      %2137 = vmatpush1.bf16.msra.mxu0 %v1649
      %2138 = vmatprep.mubr.bf16.mxu0 %v743
      %2139 = vmatmul.mubr.bf16.gmra.mrb[0].mxu0 %v742
      %v2140 = vpop.f32.mrb[0].mxu0
      %v2141 = vadd.f32 %v2101, %v2140
      %v2142 = vpop.f32.mrb[0].mxu0
      %v2143 = vpop.f32.mrb[0].mxu0
      %v2144 = vpop.f32.mrb[0].mxu0
      %2145 = vdwg.mxu0
      %2146 = vmatprep.subr.bf16.mxu0 0
      %2147 = vmatpush1.bf16.msra.mxu0 %v1650
      %2148 = vmatprep.subr.bf16.mxu0 0
      %2149 = vmatpush1.bf16.msra.mxu0 %v1651
      %2150 = vmatprep.subr.bf16.mxu0 0
      %2151 = vmatpush1.bf16.msra.mxu0 %v1652
      %2152 = vmatprep.subr.bf16.mxu0 0
      %2153 = vmatpush1.bf16.msra.mxu0 %v1653
      %2154 = vmatprep.subr.bf16.mxu0 0
      %2155 = vmatpush1.bf16.msra.mxu0 %v1654
      %2156 = vmatprep.subr.bf16.mxu0 0
      %2157 = vmatpush1.bf16.msra.mxu0 %v1655
      %2158 = vmatprep.subr.bf16.mxu0 0
      %2159 = vmatpush1.bf16.msra.mxu0 %v1656
      %2160 = vmatprep.subr.bf16.mxu0 0
      %2161 = vmatpush1.bf16.msra.mxu0 %v1657
      %2162 = vmatprep.subr.bf16.mxu0 0
      %2163 = vmatpush1.bf16.msra.mxu0 %v1658
      %2164 = vmatprep.subr.bf16.mxu0 0
      %2165 = vmatpush1.bf16.msra.mxu0 %v1659
      %2166 = vmatprep.subr.bf16.mxu0 0
      %2167 = vmatpush1.bf16.msra.mxu0 %v1660
      %2168 = vmatprep.subr.bf16.mxu0 0
      %2169 = vmatpush1.bf16.msra.mxu0 %v1661
      %2170 = vmatprep.subr.bf16.mxu0 0
      %2171 = vmatpush1.bf16.msra.mxu0 %v1662
      %2172 = vmatprep.subr.bf16.mxu0 0
      %2173 = vmatpush1.bf16.msra.mxu0 %v1663
      %2174 = vmatprep.subr.bf16.mxu0 0
      %2175 = vmatpush1.bf16.msra.mxu0 %v1664
      %2176 = vmatprep.subr.bf16.mxu0 0
      %2177 = vmatpush1.bf16.msra.mxu0 %v1665
      %2178 = vmatprep.mubr.bf16.mxu0 %v745
      %2179 = vmatmul.mubr.bf16.gmra.mrb[0].mxu0 %v744
      %v2180 = vpop.f32.mrb[0].mxu0
      %v2181 = vadd.f32 %v2141, %v2180
      %v2182 = vpop.f32.mrb[0].mxu0
      %v2183 = vpop.f32.mrb[0].mxu0
      %v2184 = vpop.f32.mrb[0].mxu0
      %2185 = vdwg.mxu0
      %2186 = vmatprep.subr.bf16.mxu0 0
      %2187 = vmatpush1.bf16.msra.mxu0 %v1666
      %2188 = vmatprep.subr.bf16.mxu0 0
      %2189 = vmatpush1.bf16.msra.mxu0 %v1667
      %2190 = vmatprep.subr.bf16.mxu0 0
      %2191 = vmatpush1.bf16.msra.mxu0 %v1668
      %2192 = vmatprep.subr.bf16.mxu0 0
      %2193 = vmatpush1.bf16.msra.mxu0 %v1669
      %2194 = vmatprep.subr.bf16.mxu0 0
      %2195 = vmatpush1.bf16.msra.mxu0 %v1670
      %2196 = vmatprep.subr.bf16.mxu0 0
      %2197 = vmatpush1.bf16.msra.mxu0 %v1671
      %2198 = vmatprep.subr.bf16.mxu0 0
      %2199 = vmatpush1.bf16.msra.mxu0 %v1672
      %2200 = vmatprep.subr.bf16.mxu0 0
      %2201 = vmatpush1.bf16.msra.mxu0 %v1673
      %2202 = vmatprep.subr.bf16.mxu0 0
      %2203 = vmatpush1.bf16.msra.mxu0 %v1674
      %2204 = vmatprep.subr.bf16.mxu0 0
      %2205 = vmatpush1.bf16.msra.mxu0 %v1675
      %2206 = vmatprep.subr.bf16.mxu0 0
      %2207 = vmatpush1.bf16.msra.mxu0 %v1676
      %2208 = vmatprep.subr.bf16.mxu0 0
      %2209 = vmatpush1.bf16.msra.mxu0 %v1677
      %2210 = vmatprep.subr.bf16.mxu0 0
      %2211 = vmatpush1.bf16.msra.mxu0 %v1678
      %2212 = vmatprep.subr.bf16.mxu0 0
      %2213 = vmatpush1.bf16.msra.mxu0 %v1679
      %2214 = vmatprep.subr.bf16.mxu0 0
      %2215 = vmatpush1.bf16.msra.mxu0 %v1680
      %2216 = vmatprep.subr.bf16.mxu0 0
      %2217 = vmatpush1.bf16.msra.mxu0 %v1681
      %2218 = vmatprep.mubr.bf16.mxu0 %v747
      %2219 = vmatmul.mubr.bf16.gmra.mrb[0].mxu0 %v746
      %v2220 = vpop.f32.mrb[0].mxu0
      %v2221 = vadd.f32 %v2181, %v2220
      %v2222 = vpop.f32.mrb[0].mxu0
      %v2223 = vpop.f32.mrb[0].mxu0
      %v2224 = vpop.f32.mrb[0].mxu0
      %2225 = vdwg.mxu0
      %2226 = vmatprep.subr.bf16.mxu0 0
      %2227 = vmatpush1.bf16.msra.mxu0 %v1682
      %2228 = vmatprep.subr.bf16.mxu0 0
      %2229 = vmatpush1.bf16.msra.mxu0 %v1683
      %2230 = vmatprep.subr.bf16.mxu0 0
      %2231 = vmatpush1.bf16.msra.mxu0 %v1684
      %2232 = vmatprep.subr.bf16.mxu0 0
      %2233 = vmatpush1.bf16.msra.mxu0 %v1685
      %2234 = vmatprep.subr.bf16.mxu0 0
      %2235 = vmatpush1.bf16.msra.mxu0 %v1686
      %2236 = vmatprep.subr.bf16.mxu0 0
      %2237 = vmatpush1.bf16.msra.mxu0 %v1687
      %2238 = vmatprep.subr.bf16.mxu0 0
      %2239 = vmatpush1.bf16.msra.mxu0 %v1688
      %2240 = vmatprep.subr.bf16.mxu0 0
      %2241 = vmatpush1.bf16.msra.mxu0 %v1689
      %2242 = vmatprep.subr.bf16.mxu0 0
      %2243 = vmatpush1.bf16.msra.mxu0 %v1690
      %2244 = vmatprep.subr.bf16.mxu0 0
      %2245 = vmatpush1.bf16.msra.mxu0 %v1691
      %2246 = vmatprep.subr.bf16.mxu0 0
      %2247 = vmatpush1.bf16.msra.mxu0 %v1692
      %2248 = vmatprep.subr.bf16.mxu0 0
      %2249 = vmatpush1.bf16.msra.mxu0 %v1693
      %2250 = vmatprep.subr.bf16.mxu0 0
      %2251 = vmatpush1.bf16.msra.mxu0 %v1694
      %2252 = vmatprep.subr.bf16.mxu0 0
      %2253 = vmatpush1.bf16.msra.mxu0 %v1695
      %2254 = vmatprep.subr.bf16.mxu0 0
      %2255 = vmatpush1.bf16.msra.mxu0 %v1696
      %2256 = vmatprep.subr.bf16.mxu0 0
      %2257 = vmatpush1.bf16.msra.mxu0 %v1697
      %2258 = vmatprep.mubr.bf16.mxu0 %v749
      %2259 = vmatmul.mubr.bf16.gmra.mrb[0].mxu0 %v748
      %v2260 = vpop.f32.mrb[0].mxu0
      %v2261 = vadd.f32 %v2221, %v2260
      %v2262 = vpop.f32.mrb[0].mxu0
      %v2263 = vpop.f32.mrb[0].mxu0
      %v2264 = vpop.f32.mrb[0].mxu0
      %2265 = vdwg.mxu0
      %2266 = vmatprep.subr.bf16.mxu0 0
      %2267 = vmatpush1.bf16.msra.mxu0 %v1698
      %2268 = vmatprep.subr.bf16.mxu0 0
      %2269 = vmatpush1.bf16.msra.mxu0 %v1699
      %2270 = vmatprep.subr.bf16.mxu0 0
      %2271 = vmatpush1.bf16.msra.mxu0 %v1700
      %2272 = vmatprep.subr.bf16.mxu0 0
      %2273 = vmatpush1.bf16.msra.mxu0 %v1701
      %2274 = vmatprep.subr.bf16.mxu0 0
      %2275 = vmatpush1.bf16.msra.mxu0 %v1702
      %2276 = vmatprep.subr.bf16.mxu0 0
      %2277 = vmatpush1.bf16.msra.mxu0 %v1703
      %2278 = vmatprep.subr.bf16.mxu0 0
      %2279 = vmatpush1.bf16.msra.mxu0 %v1704
      %2280 = vmatprep.subr.bf16.mxu0 0
      %2281 = vmatpush1.bf16.msra.mxu0 %v1705
      %2282 = vmatprep.subr.bf16.mxu0 0
      %2283 = vmatpush1.bf16.msra.mxu0 %v1706
      %2284 = vmatprep.subr.bf16.mxu0 0
      %2285 = vmatpush1.bf16.msra.mxu0 %v1707
      %2286 = vmatprep.subr.bf16.mxu0 0
      %2287 = vmatpush1.bf16.msra.mxu0 %v1708
      %2288 = vmatprep.subr.bf16.mxu0 0
      %2289 = vmatpush1.bf16.msra.mxu0 %v1709
      %2290 = vmatprep.subr.bf16.mxu0 0
      %2291 = vmatpush1.bf16.msra.mxu0 %v1710
      %2292 = vmatprep.subr.bf16.mxu0 0
      %2293 = vmatpush1.bf16.msra.mxu0 %v1711
      %2294 = vmatprep.subr.bf16.mxu0 0
      %2295 = vmatpush1.bf16.msra.mxu0 %v1712
      %2296 = vmatprep.subr.bf16.mxu0 0
      %2297 = vmatpush1.bf16.msra.mxu0 %v1713
      %2298 = vmatprep.mubr.bf16.mxu0 %v751
      %2299 = vmatmul.mubr.bf16.gmra.mrb[0].mxu0 %v750
      %v2300 = vpop.f32.mrb[0].mxu0
      %v2301 = vadd.f32 %v2261, %v2300
      %v2302 = vpop.f32.mrb[0].mxu0
      %v2303 = vpop.f32.mrb[0].mxu0
      %v2304 = vpop.f32.mrb[0].mxu0
      %2305 = vdwg.mxu0
      %2306 = vmatprep.subr.bf16.mxu0 0
      %2307 = vmatpush1.bf16.msra.mxu0 %v1714
      %2308 = vmatprep.subr.bf16.mxu0 0
      %2309 = vmatpush1.bf16.msra.mxu0 %v1715
      %2310 = vmatprep.subr.bf16.mxu0 0
      %2311 = vmatpush1.bf16.msra.mxu0 %v1716
      %2312 = vmatprep.subr.bf16.mxu0 0
      %2313 = vmatpush1.bf16.msra.mxu0 %v1717
      %2314 = vmatprep.subr.bf16.mxu0 0
      %2315 = vmatpush1.bf16.msra.mxu0 %v1718
      %2316 = vmatprep.subr.bf16.mxu0 0
      %2317 = vmatpush1.bf16.msra.mxu0 %v1719
      %2318 = vmatprep.subr.bf16.mxu0 0
      %2319 = vmatpush1.bf16.msra.mxu0 %v1720
      %2320 = vmatprep.subr.bf16.mxu0 0
      %2321 = vmatpush1.bf16.msra.mxu0 %v1721
      %2322 = vmatprep.subr.bf16.mxu0 0
      %2323 = vmatpush1.bf16.msra.mxu0 %v1722
      %2324 = vmatprep.subr.bf16.mxu0 0
      %2325 = vmatpush1.bf16.msra.mxu0 %v1723
      %2326 = vmatprep.subr.bf16.mxu0 0
      %2327 = vmatpush1.bf16.msra.mxu0 %v1724
      %2328 = vmatprep.subr.bf16.mxu0 0
      %2329 = vmatpush1.bf16.msra.mxu0 %v1725
      %2330 = vmatprep.subr.bf16.mxu0 0
      %2331 = vmatpush1.bf16.msra.mxu0 %v1726
      %2332 = vmatprep.subr.bf16.mxu0 0
      %2333 = vmatpush1.bf16.msra.mxu0 %v1727
      %2334 = vmatprep.subr.bf16.mxu0 0
      %2335 = vmatpush1.bf16.msra.mxu0 %v1728
      %2336 = vmatprep.subr.bf16.mxu0 0
      %2337 = vmatpush1.bf16.msra.mxu0 %v1729
      %2338 = vmatprep.mubr.bf16.mxu0 %v753
      %2339 = vmatmul.mubr.bf16.gmra.mrb[0].mxu0 %v752
      %v2340 = vpop.f32.mrb[0].mxu0
      %v2341 = vadd.f32 %v2301, %v2340
      %v2342 = vpop.f32.mrb[0].mxu0
      %v2343 = vpop.f32.mrb[0].mxu0
      %v2344 = vpop.f32.mrb[0].mxu0
      %2345 = vdwg.mxu0
      %2346 = vmatprep.subr.bf16.mxu0 0
      %2347 = vmatpush1.bf16.msra.mxu0 %v1730
      %2348 = vmatprep.subr.bf16.mxu0 0
      %2349 = vmatpush1.bf16.msra.mxu0 %v1731
      %2350 = vmatprep.subr.bf16.mxu0 0
      %2351 = vmatpush1.bf16.msra.mxu0 %v1732
      %2352 = vmatprep.subr.bf16.mxu0 0
      %2353 = vmatpush1.bf16.msra.mxu0 %v1733
      %2354 = vmatprep.subr.bf16.mxu0 0
      %2355 = vmatpush1.bf16.msra.mxu0 %v1734
      %2356 = vmatprep.subr.bf16.mxu0 0
      %2357 = vmatpush1.bf16.msra.mxu0 %v1735
      %2358 = vmatprep.subr.bf16.mxu0 0
      %2359 = vmatpush1.bf16.msra.mxu0 %v1736
      %2360 = vmatprep.subr.bf16.mxu0 0
      %2361 = vmatpush1.bf16.msra.mxu0 %v1737
      %2362 = vmatprep.subr.bf16.mxu0 0
      %2363 = vmatpush1.bf16.msra.mxu0 %v1738
      %2364 = vmatprep.subr.bf16.mxu0 0
      %2365 = vmatpush1.bf16.msra.mxu0 %v1739
      %2366 = vmatprep.subr.bf16.mxu0 0
      %2367 = vmatpush1.bf16.msra.mxu0 %v1740
      %2368 = vmatprep.subr.bf16.mxu0 0
      %2369 = vmatpush1.bf16.msra.mxu0 %v1741
      %2370 = vmatprep.subr.bf16.mxu0 0
      %2371 = vmatpush1.bf16.msra.mxu0 %v1742
      %2372 = vmatprep.subr.bf16.mxu0 0
      %2373 = vmatpush1.bf16.msra.mxu0 %v1743
      %2374 = vmatprep.subr.bf16.mxu0 0
      %2375 = vmatpush1.bf16.msra.mxu0 %v1744
      %2376 = vmatprep.subr.bf16.mxu0 0
      %2377 = vmatpush1.bf16.msra.mxu0 %v1745
      %2378 = vmatprep.mubr.bf16.mxu0 %v755
      %2379 = vmatmul.mubr.bf16.gmra.mrb[0].mxu0 %v754
      %v2380 = vpop.f32.mrb[0].mxu0
      %v2381 = vadd.f32 %v2341, %v2380
      %v2382 = vpop.f32.mrb[0].mxu0
      %v2383 = vpop.f32.mrb[0].mxu0
      %v2384 = vpop.f32.mrb[0].mxu0
      %2385 = vdwg.mxu0
      %2386 = vmatprep.subr.bf16.mxu0 0
      %2387 = vmatpush1.bf16.msra.mxu0 %v1746
      %2388 = vmatprep.subr.bf16.mxu0 0
      %2389 = vmatpush1.bf16.msra.mxu0 %v1747
      %2390 = vmatprep.subr.bf16.mxu0 0
      %2391 = vmatpush1.bf16.msra.mxu0 %v1748
      %2392 = vmatprep.subr.bf16.mxu0 0
      %2393 = vmatpush1.bf16.msra.mxu0 %v1749
      %2394 = vmatprep.subr.bf16.mxu0 0
      %2395 = vmatpush1.bf16.msra.mxu0 %v1750
      %2396 = vmatprep.subr.bf16.mxu0 0
      %2397 = vmatpush1.bf16.msra.mxu0 %v1751
      %2398 = vmatprep.subr.bf16.mxu0 0
      %2399 = vmatpush1.bf16.msra.mxu0 %v1752
      %2400 = vmatprep.subr.bf16.mxu0 0
      %2401 = vmatpush1.bf16.msra.mxu0 %v1753
      %2402 = vmatprep.subr.bf16.mxu0 0
      %2403 = vmatpush1.bf16.msra.mxu0 %v1754
      %2404 = vmatprep.subr.bf16.mxu0 0
      %2405 = vmatpush1.bf16.msra.mxu0 %v1755
      %2406 = vmatprep.subr.bf16.mxu0 0
      %2407 = vmatpush1.bf16.msra.mxu0 %v1756
      %2408 = vmatprep.subr.bf16.mxu0 0
      %2409 = vmatpush1.bf16.msra.mxu0 %v1757
      %2410 = vmatprep.subr.bf16.mxu0 0
      %2411 = vmatpush1.bf16.msra.mxu0 %v1758
      %2412 = vmatprep.subr.bf16.mxu0 0
      %2413 = vmatpush1.bf16.msra.mxu0 %v1759
      %2414 = vmatprep.subr.bf16.mxu0 0
      %2415 = vmatpush1.bf16.msra.mxu0 %v1760
      %2416 = vmatprep.subr.bf16.mxu0 0
      %2417 = vmatpush1.bf16.msra.mxu0 %v1761
      %2418 = vmatprep.mubr.bf16.mxu0 %v757
      %2419 = vmatmul.mubr.bf16.gmra.mrb[0].mxu0 %v756
      %v2420 = vpop.f32.mrb[0].mxu0
      %v2421 = vadd.f32 %v2381, %v2420
      %v2422 = vpop.f32.mrb[0].mxu0
      %v2423 = vpop.f32.mrb[0].mxu0
      %v2424 = vpop.f32.mrb[0].mxu0
      %2425 = vdwg.mxu0
      %2426 = vmatprep.subr.bf16.mxu0 0
      %2427 = vmatpush1.bf16.msra.mxu0 %v1762
      %2428 = vmatprep.subr.bf16.mxu0 0
      %2429 = vmatpush1.bf16.msra.mxu0 %v1763
      %2430 = vmatprep.subr.bf16.mxu0 0
      %2431 = vmatpush1.bf16.msra.mxu0 %v1764
      %2432 = vmatprep.subr.bf16.mxu0 0
      %2433 = vmatpush1.bf16.msra.mxu0 %v1765
      %2434 = vmatprep.subr.bf16.mxu0 0
      %2435 = vmatpush1.bf16.msra.mxu0 %v1766
      %2436 = vmatprep.subr.bf16.mxu0 0
      %2437 = vmatpush1.bf16.msra.mxu0 %v1767
      %2438 = vmatprep.subr.bf16.mxu0 0
      %2439 = vmatpush1.bf16.msra.mxu0 %v1768
      %2440 = vmatprep.subr.bf16.mxu0 0
      %2441 = vmatpush1.bf16.msra.mxu0 %v1769
      %2442 = vmatprep.subr.bf16.mxu0 0
      %2443 = vmatpush1.bf16.msra.mxu0 %v1770
      %2444 = vmatprep.subr.bf16.mxu0 0
      %2445 = vmatpush1.bf16.msra.mxu0 %v1771
      %2446 = vmatprep.subr.bf16.mxu0 0
      %2447 = vmatpush1.bf16.msra.mxu0 %v1772
      %2448 = vmatprep.subr.bf16.mxu0 0
      %2449 = vmatpush1.bf16.msra.mxu0 %v1773
      %2450 = vmatprep.subr.bf16.mxu0 0
      %2451 = vmatpush1.bf16.msra.mxu0 %v1774
      %2452 = vmatprep.subr.bf16.mxu0 0
      %2453 = vmatpush1.bf16.msra.mxu0 %v1775
      %2454 = vmatprep.subr.bf16.mxu0 0
      %2455 = vmatpush1.bf16.msra.mxu0 %v1776
      %2456 = vmatprep.subr.bf16.mxu0 0
      %2457 = vmatpush1.bf16.msra.mxu0 %v1777
      %2458 = vmatprep.mubr.bf16.mxu0 %v759
      %2459 = vmatmul.mubr.bf16.gmra.mrb[0].mxu0 %v758
      %v2460 = vpop.f32.mrb[0].mxu0
      %v2461 = vadd.f32 %v2421, %v2460
      %v2462 = vpop.f32.mrb[0].mxu0
      %v2463 = vpop.f32.mrb[0].mxu0
      %v2464 = vpop.f32.mrb[0].mxu0
      %2465 = vdwg.mxu0
      %2466 = vmatprep.subr.bf16.mxu0 0
      %2467 = vmatpush1.bf16.msra.mxu0 %v1778
      %2468 = vmatprep.subr.bf16.mxu0 0
      %2469 = vmatpush1.bf16.msra.mxu0 %v1779
      %2470 = vmatprep.subr.bf16.mxu0 0
      %2471 = vmatpush1.bf16.msra.mxu0 %v1780
      %2472 = vmatprep.subr.bf16.mxu0 0
      %2473 = vmatpush1.bf16.msra.mxu0 %v1781
      %2474 = vmatprep.subr.bf16.mxu0 0
      %2475 = vmatpush1.bf16.msra.mxu0 %v1782
      %2476 = vmatprep.subr.bf16.mxu0 0
      %2477 = vmatpush1.bf16.msra.mxu0 %v1783
      %2478 = vmatprep.subr.bf16.mxu0 0
      %2479 = vmatpush1.bf16.msra.mxu0 %v1784
      %2480 = vmatprep.subr.bf16.mxu0 0
      %2481 = vmatpush1.bf16.msra.mxu0 %v1785
      %2482 = vmatprep.subr.bf16.mxu0 0
      %2483 = vmatpush1.bf16.msra.mxu0 0
      %2484 = vmatprep.subr.bf16.mxu0 0
      %2485 = vmatpush1.bf16.msra.mxu0 0
      %2486 = vmatprep.subr.bf16.mxu0 0
      %2487 = vmatpush1.bf16.msra.mxu0 0
      %2488 = vmatprep.subr.bf16.mxu0 0
      %2489 = vmatpush1.bf16.msra.mxu0 0
      %2490 = vmatprep.subr.bf16.mxu0 0
      %2491 = vmatpush1.bf16.msra.mxu0 0
      %2492 = vmatprep.subr.bf16.mxu0 0
      %2493 = vmatpush1.bf16.msra.mxu0 0
      %2494 = vmatprep.subr.bf16.mxu0 0
      %2495 = vmatpush1.bf16.msra.mxu0 0
      %2496 = vmatprep.subr.bf16.mxu0 0
      %2497 = vmatpush1.bf16.msra.mxu0 0
      %2498 = vmatprep.mubr.bf16.mxu0 0
      %2499 = vmatmul.mubr.bf16.gmra.mrb[0].mxu0 %v760
      %v2500 = vpop.f32.mrb[0].mxu0
      %v2501 = vadd.f32 %v2461, %v2500
      %v2502 = vpop.f32.mrb[0].mxu0
      %v2503 = vpop.f32.mrb[0].mxu0
      %v2504 = vpop.f32.mrb[0].mxu0
      %2505 = vdwg.mxu0
      %v2506 = vpack.c.bf16 %v2501, %v2501
      %v2507 = vld [vmem:[%s3] sm:$0xf]
      %v2508 = vld [vmem:[%s3 + $0x4] sm:$0xf]
      %v2509 = vld [vmem:[%s3 + $0x8] sm:$0xf]
      %v2510 = vld [vmem:[%s3 + $0xc] sm:$0xf]
      %v2511 = vld [vmem:[%s3 + $0x10] sm:$0xf]
      %v2512 = vld [vmem:[%s3 + $0x14] sm:$0xf]
      %v2513 = vld [vmem:[%s3 + $0x18] sm:$0xf]
      %v2514 = vld [vmem:[%s3 + $0x1c] sm:$0xf]
      %v2515 = vld [vmem:[%s3 + $0x20] sm:$0xf]
      %v2516 = vld [vmem:[%s3 + $0x24] sm:$0xf]
      %v2517 = vld [vmem:[%s3 + $0x28] sm:$0xf]
      %v2518 = vld [vmem:[%s3 + $0x2c] sm:$0xf]
      %v2519 = vld [vmem:[%s3 + $0x30] sm:$0xf]
      %v2520 = vld [vmem:[%s3 + $0x34] sm:$0xf]
      %v2521 = vld [vmem:[%s3 + $0x38] sm:$0xf]
      %v2522 = vld [vmem:[%s3 + $0x3c] sm:$0xf]
      %v2523 = vld [vmem:[%s4] sm:$0x1]
      %v2525 = vlaneseq
      %v2526 = vshrl.u32 %v2525, 7
      %v2527 = vsub.s32 0, %v2526
      %v2528 = vrot.slane %v2523, %v2527
      %v2546 = vunpack.c.l.b16 %v2507
      %v2547 = vunpack.c.l.b16 %v2508
      %v2548 = vunpack.c.l.b16 %v2509
      %v2549 = vunpack.c.l.b16 %v2510
      %v2550 = vunpack.c.l.b16 %v2511
      %v2551 = vunpack.c.l.b16 %v2512
      %v2552 = vunpack.c.l.b16 %v2513
      %v2553 = vunpack.c.l.b16 %v2514
      %v2554 = vunpack.c.l.b16 %v2515
      %v2555 = vunpack.c.l.b16 %v2516
      %v2556 = vunpack.c.l.b16 %v2517
      %v2557 = vunpack.c.l.b16 %v2518
      %v2558 = vunpack.c.l.b16 %v2519
      %v2559 = vunpack.c.l.b16 %v2520
      %v2560 = vunpack.c.l.b16 %v2521
      %v2561 = vunpack.c.l.b16 %v2522
      %v2562 = vpack.c.b16 %v2547, %v2546
      %v2563 = vpack.c.b16 %v2549, %v2548
      %v2564 = vpack.c.b16 %v2551, %v2550
      %v2565 = vpack.c.b16 %v2553, %v2552
      %v2566 = vpack.c.b16 %v2555, %v2554
      %v2567 = vpack.c.b16 %v2557, %v2556
      %v2568 = vpack.c.b16 %v2559, %v2558
      %v2569 = vpack.c.b16 %v2561, %v2560
      %2578 = vmatprep.subr.bf16.mxu0 0
      %2579 = vmatpush1.bf16.msra.mxu0 %v2562
      %2580 = vmatprep.subr.bf16.mxu0 0
      %2581 = vmatpush1.bf16.msra.mxu0 %v2563
      %2582 = vmatprep.subr.bf16.mxu0 0
      %2583 = vmatpush1.bf16.msra.mxu0 %v2564
      %2584 = vmatprep.subr.bf16.mxu0 0
      %2585 = vmatpush1.bf16.msra.mxu0 %v2565
      %2586 = vmatprep.subr.bf16.mxu0 0
      %2587 = vmatpush1.bf16.msra.mxu0 %v2566
      %2588 = vmatprep.subr.bf16.mxu0 0
      %2589 = vmatpush1.bf16.msra.mxu0 %v2567
      %2590 = vmatprep.subr.bf16.mxu0 0
      %2591 = vmatpush1.bf16.msra.mxu0 %v2568
      %2592 = vmatprep.subr.bf16.mxu0 0
      %2593 = vmatpush1.bf16.msra.mxu0 %v2569
      %2594 = vmatprep.subr.bf16.mxu0 0
      %2595 = vmatpush1.bf16.msra.mxu0 0
      %2596 = vmatprep.subr.bf16.mxu0 0
      %2597 = vmatpush1.bf16.msra.mxu0 0
      %2598 = vmatprep.subr.bf16.mxu0 0
      %2599 = vmatpush1.bf16.msra.mxu0 0
      %2600 = vmatprep.subr.bf16.mxu0 0
      %2601 = vmatpush1.bf16.msra.mxu0 0
      %2602 = vmatprep.subr.bf16.mxu0 0
      %2603 = vmatpush1.bf16.msra.mxu0 0
      %2604 = vmatprep.subr.bf16.mxu0 0
      %2605 = vmatpush1.bf16.msra.mxu0 0
      %2606 = vmatprep.subr.bf16.mxu0 0
      %2607 = vmatpush1.bf16.msra.mxu0 0
      %2608 = vmatprep.subr.bf16.mxu0 0
      %2609 = vmatpush1.bf16.msra.mxu0 0
      %2610 = vmatprep.mubr.bf16.mxu0 0
      %2611 = vmatmul.mubr.bf16.gmra.mrb[0].mxu0 %v2506
      %v2612 = vpop.f32.mrb[0].mxu0
      %v2613 = vadd.f32 %v2528, %v2612
      %v2614 = vpop.f32.mrb[0].mxu0
      %v2615 = vpop.f32.mrb[0].mxu0
      %v2616 = vpop.f32.mrb[0].mxu0
      %2617 = vdwg.mxu0
      %v2618 = vpack.c.bf16 %v2613, %v2613
      %v2619 = vld [vmem:[%s5] sm:$0xf]
      %v2620 = vld [vmem:[%s5 + $0x4] sm:$0xf]
      %v2621 = vld [vmem:[%s5 + $0x8] sm:$0xf]
      %v2622 = vld [vmem:[%s5 + $0xc] sm:$0xf]
      %v2623 = vld [vmem:[%s5 + $0x10] sm:$0xf]
      %v2624 = vld [vmem:[%s5 + $0x14] sm:$0xf]
      %v2625 = vld [vmem:[%s5 + $0x18] sm:$0xf]
      %v2626 = vld [vmem:[%s5 + $0x1c] sm:$0xf]
      %v2627 = vld [vmem:[%s5 + $0x20] sm:$0xf]
      %v2628 = vld [vmem:[%s5 + $0x24] sm:$0xf]
      %v2629 = vld [vmem:[%s5 + $0x28] sm:$0xf]
      %v2630 = vld [vmem:[%s5 + $0x2c] sm:$0xf]
      %v2631 = vld [vmem:[%s5 + $0x30] sm:$0xf]
      %v2632 = vld [vmem:[%s5 + $0x34] sm:$0xf]
      %v2633 = vld [vmem:[%s5 + $0x38] sm:$0xf]
      %v2634 = vld [vmem:[%s5 + $0x3c] sm:$0xf]
      %v2635 = vld [vmem:[%s6] sm:$0x1]
      %v2637 = vlaneseq
      %v2638 = vshrl.u32 %v2637, 7
      %v2639 = vsub.s32 0, %v2638
      %v2640 = vrot.slane %v2635, %v2639
      %v2658 = vunpack.c.l.b16 %v2619
      %v2659 = vunpack.c.l.b16 %v2620
      %v2660 = vunpack.c.l.b16 %v2621
      %v2661 = vunpack.c.l.b16 %v2622
      %v2662 = vunpack.c.l.b16 %v2623
      %v2663 = vunpack.c.l.b16 %v2624
      %v2664 = vunpack.c.l.b16 %v2625
      %v2665 = vunpack.c.l.b16 %v2626
      %v2666 = vunpack.c.l.b16 %v2627
      %v2667 = vunpack.c.l.b16 %v2628
      %v2668 = vunpack.c.l.b16 %v2629
      %v2669 = vunpack.c.l.b16 %v2630
      %v2670 = vunpack.c.l.b16 %v2631
      %v2671 = vunpack.c.l.b16 %v2632
      %v2672 = vunpack.c.l.b16 %v2633
      %v2673 = vunpack.c.l.b16 %v2634
      %v2674 = vpack.c.b16 %v2659, %v2658
      %v2675 = vpack.c.b16 %v2661, %v2660
      %v2676 = vpack.c.b16 %v2663, %v2662
      %v2677 = vpack.c.b16 %v2665, %v2664
      %v2678 = vpack.c.b16 %v2667, %v2666
      %v2679 = vpack.c.b16 %v2669, %v2668
      %v2680 = vpack.c.b16 %v2671, %v2670
      %v2681 = vpack.c.b16 %v2673, %v2672
      %2690 = vmatprep.subr.bf16.mxu0 0
      %2691 = vmatpush1.bf16.msra.mxu0 %v2674
      %2692 = vmatprep.subr.bf16.mxu0 0
      %2693 = vmatpush1.bf16.msra.mxu0 %v2675
      %2694 = vmatprep.subr.bf16.mxu0 0
      %2695 = vmatpush1.bf16.msra.mxu0 %v2676
      %2696 = vmatprep.subr.bf16.mxu0 0
      %2697 = vmatpush1.bf16.msra.mxu0 %v2677
      %2698 = vmatprep.subr.bf16.mxu0 0
      %2699 = vmatpush1.bf16.msra.mxu0 %v2678
      %2700 = vmatprep.subr.bf16.mxu0 0
      %2701 = vmatpush1.bf16.msra.mxu0 %v2679
      %2702 = vmatprep.subr.bf16.mxu0 0
      %2703 = vmatpush1.bf16.msra.mxu0 %v2680
      %2704 = vmatprep.subr.bf16.mxu0 0
      %2705 = vmatpush1.bf16.msra.mxu0 %v2681
      %2706 = vmatprep.subr.bf16.mxu0 0
      %2707 = vmatpush1.bf16.msra.mxu0 0
      %2708 = vmatprep.subr.bf16.mxu0 0
      %2709 = vmatpush1.bf16.msra.mxu0 0
      %2710 = vmatprep.subr.bf16.mxu0 0
      %2711 = vmatpush1.bf16.msra.mxu0 0
      %2712 = vmatprep.subr.bf16.mxu0 0
      %2713 = vmatpush1.bf16.msra.mxu0 0
      %2714 = vmatprep.subr.bf16.mxu0 0
      %2715 = vmatpush1.bf16.msra.mxu0 0
      %2716 = vmatprep.subr.bf16.mxu0 0
      %2717 = vmatpush1.bf16.msra.mxu0 0
      %2718 = vmatprep.subr.bf16.mxu0 0
      %2719 = vmatpush1.bf16.msra.mxu0 0
      %2720 = vmatprep.subr.bf16.mxu0 0
      %2721 = vmatpush1.bf16.msra.mxu0 0
      %2722 = vmatprep.mubr.bf16.mxu0 0
      %2723 = vmatmul.mubr.bf16.gmra.mrb[0].mxu0 %v2618
      %v2724 = vpop.f32.mrb[0].mxu0
      %v2725 = vadd.f32 %v2640, %v2724
      %v2726 = vpop.f32.mrb[0].mxu0
      %v2727 = vpop.f32.mrb[0].mxu0
      %v2728 = vpop.f32.mrb[0].mxu0
      %2729 = vdwg.mxu0
      %2730 = vst [vmem:[%s276] sm:$0xff] %v2725
      %p2731 = scmp.lt.s32.totalorder %s18, 1
      %s2732 = scalar_select %p2731, %s18, 1
      %s2733 = smul.addr %s2732, 8
      %s2734 = scalar_lea.vmem %s7, %s2733
      // Predicated region
      $region49: #{lenet_forward.5} parent=47 // pred_check
        %p2735 = pneg %p188
      $region50: #{lenet_forward.5} parent=47 // pred_check_branch
        %2737 = sbr.rel (%p2735) target = $region52
      $region51: #{lenet_forward.5} parent=47 // pred_region
        _
      $region52: #{lenet_forward.5} parent=47 // pred_fallthru
        _
    $region48: #{lenet_forward.5} parent=5 // pred_fallthru
      _
    %p2738 = scmp.le.s32.totalorder 2, %s13
    // Predicated region
    $region53: #{lenet_forward.5} parent=5 // pred_check
      %p2739 = pneg %p2738
    $region54: #{lenet_forward.5} parent=5 // pred_check_branch
      %2741 = sbr.rel (%p2739) target = $region56
    $region55: #{lenet_forward.5} parent=5 // pred_region
      %s2742 = ssub.s32 %s13, 2
      // Predicated region
      $region57: #{lenet_forward.5} parent=55 // pred_check
        %p2743 = pneg %p194
      $region58: #{lenet_forward.5} parent=55 // pred_check_branch
        %2745 = sbr.rel (%p2743) target = $region60
      $region59: #{lenet_forward.5} parent=55 // pred_region
        %p2746 = scmp.lt.s32.totalorder %s19, 1
        %s2747 = scalar_select %p2746, %s19, 1
        %s2748 = smul.addr %s2747, 8
        %s2749 = scalar_lea.vmem %s7, %s2748
      $region60: #{lenet_forward.5} parent=55 // pred_fallthru
        _
    $region56: #{lenet_forward.5} parent=5 // pred_fallthru
      _
  $region6: #{lenet_forward.5} parent=0 // loop_footer
    %s17 = sadd.s32 1, %s13
  $region7: #{lenet_forward.5} parent=0 // loop_footer_branch
    %12 = sbr.rel target = $region3
  $region8: #{lenet_forward.5} parent=0 // loop_exit
    _

</llo_original>
